<compile_context>
chip_gen: v7x
topology: tpu7x:2x2x1
jax: 0.10.0
libtpu: 0.0.40
codegen_flags: <defaults>
</compile_context>

<pallas_src>
import functools
import numpy as np
import jax
import jax.numpy as jnp
from jax.experimental import pallas as pl
from jax.experimental.pallas import tpu as pltpu

LN_EPS = 1e-5   # PyTorch nn.LayerNorm default


def _ceil_to(n, m):
    return ((n + m - 1) // m) * m


# ----------------------------------------------------------------------------
# Kernel: one batch tile x one encoder layer per grid point.
# grid = (num_batch_tiles, num_layers); batch "parallel", layers "arbitrary".
# The hidden state is carried across the layer axis in VMEM scratch, which is
# only valid because the layer axis is the innermost, sequentially iterated,
# "arbitrary" grid axis -- do not reorder the grid or mark it "parallel".
# ----------------------------------------------------------------------------
def _universal_model_kernel(
    multihot_ref,    # VMEM (TB, Vp)   bf16  -- multi-hot categorical counts
    num_ref,         # VMEM (TB, Np)   f32
    cat_emb_ref,     # VMEM (Vp, Ecp)  bf16  -- embedding table
    ln_g_ref,        # VMEM (1, Np)    f32
    ln_b_ref,        # VMEM (1, Np)    f32
    num_w_ref,       # VMEM (Np, Enp)  bf16
    wcat_ref,        # VMEM (Ecp, Ip)  bf16  -- all_w rows for categorical half
    wnum_ref,        # VMEM (Enp, Ip)  bf16  -- all_w rows for numerical half
    enc_w1_ref,      # VMEM (1, Ip, INp) bf16  (streamed over layer grid axis)
    enc_w2_ref,      # VMEM (1, INp, Ip) bf16  (streamed over layer grid axis)
    dec_w_ref,       # VMEM (Ip, Cp)   bf16
    out_ref,         # VMEM (TB, Cp)   f32
    h_scr,           # VMEM (TB, Ip)   f32 scratch (hidden, carried over l)
    res_scr,         # VMEM (TB, Ip)   f32 scratch (outer residual)
    *,
    num_numerical, label_size, apply_softmax,
):
    f32, bf16 = jnp.float32, jnp.bfloat16
    l = pl.program_id(1)

    # ---------------- pre-encoder (only on the first layer step) ------------
    @pl.when(l == 0)
    def _init():
        # Categorical embedding-sum as one MXU matmul:
        #   multi_hot (TB, Vp) @ table (Vp, Ecp) == sum of embedding rows.
        h1 = jnp.dot(multihot_ref[...], cat_emb_ref[...],
                     preferred_element_type=f32)

        # Numerical branch: LayerNorm over the TRUE feature count (two-pass
        # variance, zero-padded lanes masked out), then Linear (no bias).
        x = num_ref[...]
        col = jax.lax.broadcasted_iota(jnp.int32, x.shape, 1)
        lane_ok = col < num_numerical
        inv_n = 1.0 / float(num_numerical)
        mu = jnp.sum(x, axis=-1, keepdims=True) * inv_n
        diff = jnp.where(lane_ok, x - mu, 0.0)
        var = jnp.sum(diff * diff, axis=-1, keepdims=True) * inv_n
        xn = diff * jax.lax.rsqrt(var + LN_EPS)
        xn = xn * ln_g_ref[...] + ln_b_ref[...]
        h2 = jnp.dot(xn.astype(bf16), num_w_ref[...], preferred_element_type=f32)

        # all_embed without concat: split weight -> two MXU calls + VPU add.
        h = (jnp.dot(h1.astype(bf16), wcat_ref[...], preferred_element_type=f32)
             + jnp.dot(h2.astype(bf16), wnum_ref[...], preferred_element_type=f32))
        h_scr[...] = h
        res_scr[...] = h

    # ---------------- one encoder layer (weights streamed per grid step) ----
    hs = h_scr[...]
    y = jnp.dot(hs.astype(bf16), enc_w1_ref[0], preferred_element_type=f32)
    y = jax.nn.gelu(y, approximate=True)                   # tanh form -> EUP
    y = jnp.dot(y.astype(bf16), enc_w2_ref[0], preferred_element_type=f32)
    h_scr[...] = hs + y

    # ---------------- decoder + softmax (only on the last layer step) -------
    @pl.when(l == pl.num_programs(1) - 1)
    def _final():
        hf = h_scr[...] + res_scr[...]
        logits = jnp.dot(hf.astype(bf16), dec_w_ref[...],
                         preferred_element_type=f32)
        if apply_softmax:
            col = jax.lax.broadcasted_iota(jnp.int32, logits.shape, 1)
            logits = jnp.where(col < label_size, logits, -1e30)
            out_ref[...] = jax.nn.softmax(logits, axis=-1)
        else:
            out_ref[...] = logits


# ----------------------------------------------------------------------------
# Wrapper: padding, bf16 casting, BlockSpecs, grid, VMEM budget, cost estimate.
# ----------------------------------------------------------------------------
@functools.partial(
    jax.jit,
    static_argnames=("batch_tile", "apply_softmax", "single_buffer_constants"))
def _forward_impl(cat_ids, num, params, *, batch_tile, apply_softmax,
                  single_buffer_constants):
    f32, bf16 = jnp.float32, jnp.bfloat16
    B, NC = cat_ids.shape
    Nn = num.shape[1]
    Vc, Ec = params["cat_emb"].shape
    En = params["num_w"].shape[1]
    I = params["all_w"].shape[1]          # inner hidden size
    L, _, IN = params["enc_w1"].shape     # IN = 2 * I (MLP expansion)
    C = params["dec_w"].shape[1]

    TB = batch_tile
    Bp = max(_ceil_to(B, TB), TB)
    Vp = _ceil_to(Vc, 128)
    Np, Ecp, Enp = _ceil_to(Nn, 128), _ceil_to(Ec, 128), _ceil_to(En, 128)
    Ip, INp, Cp = _ceil_to(I, 128), _ceil_to(IN, 128), _ceil_to(C, 128)

    # --- pad + cast (zero padding is mathematically inert everywhere) -------
    # Multi-hot counts: exact small integers, representable in bf16.
    # TODO(synk): for very large Vc build an HBM-gather path instead.
    multihot = jax.nn.one_hot(cat_ids, Vp, dtype=bf16).sum(axis=1)   # (B, Vp)
    multihot_p = jnp.pad(multihot, ((0, Bp - B), (0, 0)))
    num_p = jnp.pad(num.astype(f32), ((0, Bp - B), (0, Np - Nn)))
    cat_emb_p = jnp.pad(params["cat_emb"],
                        ((0, Vp - Vc), (0, Ecp - Ec))).astype(bf16)
    ln_g_p = jnp.pad(params["ln_g"].astype(f32), ((0, 0), (0, Np - Nn)))
    ln_b_p = jnp.pad(params["ln_b"].astype(f32), ((0, 0), (0, Np - Nn)))
    num_w_p = jnp.pad(params["num_w"], ((0, Np - Nn), (0, Enp - En))).astype(bf16)
    wcat_p = jnp.pad(params["all_w"][:Ec], ((0, Ecp - Ec), (0, Ip - I))).astype(bf16)
    wnum_p = jnp.pad(params["all_w"][Ec:], ((0, Enp - En), (0, Ip - I))).astype(bf16)
    w1_p = jnp.pad(params["enc_w1"], ((0, 0), (0, Ip - I), (0, INp - IN))).astype(bf16)
    w2_p = jnp.pad(params["enc_w2"], ((0, 0), (0, INp - IN), (0, Ip - I))).astype(bf16)
    dec_p = jnp.pad(params["dec_w"], ((0, Ip - I), (0, Cp - C))).astype(bf16)

    inputs = (multihot_p, num_p, cat_emb_p, ln_g_p, ln_b_p, num_w_p,
              wcat_p, wnum_p, w1_p, w2_p, dec_p)

    # Constant-index blocks: single-buffer them (their index_map never changes,
    # so double-buffering only wastes VMEM -- matters on v7x's 64 MiB).
    def const_spec(shape):
        idx_map = lambda b, l: (0,) * len(shape)
        if single_buffer_constants:
            return pl.BlockSpec(shape, idx_map, pipeline_mode=pl.Buffered(1))
        return pl.BlockSpec(shape, idx_map)

    in_specs = [
        pl.BlockSpec((TB, Vp), lambda b, l: (b, 0)),        # multi-hot
        pl.BlockSpec((TB, Np), lambda b, l: (b, 0)),        # numerical
        const_spec((Vp, Ecp)),                              # embedding table
        const_spec((1, Np)),                                # ln_g
        const_spec((1, Np)),                                # ln_b
        const_spec((Np, Enp)),                              # num_w
        const_spec((Ecp, Ip)),                              # W_cat
        const_spec((Enp, Ip)),                              # W_num
        pl.BlockSpec((1, Ip, INp), lambda b, l: (l, 0, 0)),  # enc_w1[l] streamed
        pl.BlockSpec((1, INp, Ip), lambda b, l: (l, 0, 0)),  # enc_w2[l] streamed
        const_spec((Ip, Cp)),                               # dec_w
    ]

    kernel = functools.partial(
        _universal_model_kernel,
        num_numerical=Nn, label_size=C, apply_softmax=apply_softmax)

    n_btiles = Bp // TB
    grid = (n_btiles, L)

    # --- VMEM budget: per-block bytes x buffer count + scratch + headroom ---
    const_buf = 1 if single_buffer_constants else 2
    const_bytes = (Vp * Ecp * 2 + 2 * Np * 4 + Np * Enp * 2 + Ecp * Ip * 2
                   + Enp * Ip * 2 + Ip * Cp * 2)
    batch_stream_bytes = 2 * (TB * Vp * 2 + TB * Np * 4 + TB * Cp * 4)
    layer_stream_bytes = 2 * (Ip * INp * 2 + INp * Ip * 2)
    scratch_bytes = 2 * TB * Ip * 4
    vmem_limit = int(const_buf * const_bytes + batch_stream_bytes
                     + layer_stream_bytes + scratch_bytes + 8 * 1024 * 1024)
    vmem_limit = min(vmem_limit, 56 * 1024 * 1024)   # stay under v7x's 64 MiB

    flops = int(2 * Bp * (Vp * Ecp + Np * Enp + Ecp * Ip + Enp * Ip
                          + L * (Ip * INp + INp * Ip) + Ip * Cp))
    transcendentals = int(Bp * (L * INp + Cp))
    bytes_accessed = int(
        multihot_p.size * 2 + num_p.size * 4 + Bp * Cp * 4
        + const_bytes
        + n_btiles * L * (Ip * INp + INp * Ip) * 2)   # weights re-streamed per batch tile

    out_p = pl.pallas_call(
        kernel,
        out_shape=jax.ShapeDtypeStruct((Bp, Cp), f32),
        grid_spec=pltpu.PrefetchScalarGridSpec(
            num_scalar_prefetch=0,
            grid=grid,
            in_specs=in_specs,
            out_specs=pl.BlockSpec((TB, Cp), lambda b, l: (b, 0)),
            scratch_shapes=[
                pltpu.VMEM((TB, Ip), f32),    # hidden state (carried over l)
                pltpu.VMEM((TB, Ip), f32),    # outer residual
            ],
        ),
        compiler_params=pltpu.CompilerParams(
            dimension_semantics=("parallel", "arbitrary"),
            vmem_limit_bytes=vmem_limit,
        ),
        cost_estimate=pl.CostEstimate(
            flops=flops, transcendentals=transcendentals,
            bytes_accessed=bytes_accessed),
    )(*inputs)

    return out_p[:B, :C]


def universal_model_forward(cat_ids, num, params, *, batch_tile=128,
                            apply_softmax=True):
    # batch_tile: 128 is MXU-native on v5e; prefer 256 on v6e/v7x when B is
    # large enough to keep >= 2 batch tiles (megacore sharding on v7x).
    try:
        return _forward_impl(cat_ids, num, params, batch_tile=batch_tile,
                             apply_softmax=apply_softmax,
                             single_buffer_constants=True)
    except Exception:
        # Installed JAX does not support pipeline_mode=pl.Buffered(1) on this
        # path -> fall back to default double-buffered constant blocks.
        return _forward_impl(cat_ids, num, params, batch_tile=batch_tile,
                             apply_softmax=apply_softmax,
                             single_buffer_constants=False)


# ----------------------------------------------------------------------------
# Pure-JAX reference mirroring the module forward (with the same bf16 weight /
# matmul-operand rounding the kernel applies, so the check is tight).
# ----------------------------------------------------------------------------
def reference_forward(cat_ids, num, params):
    bf = lambda a: a.astype(jnp.bfloat16).astype(jnp.float32)
    emb = bf(params["cat_emb"])
    h1 = emb[cat_ids].sum(axis=1)                          # (B, Ec)
    mu = num.mean(-1, keepdims=True)
    var = ((num - mu) ** 2).mean(-1, keepdims=True)
    xn = (num - mu) / jnp.sqrt(var + LN_EPS)
    xn = xn * params["ln_g"] + params["ln_b"]
    h2 = bf(xn) @ bf(params["num_w"])
    Ec = params["cat_emb"].shape[1]
    h = bf(h1) @ bf(params["all_w"][:Ec]) + bf(h2) @ bf(params["all_w"][Ec:])
    res = h
    for l in range(params["enc_w1"].shape[0]):
        y = jax.nn.gelu(bf(h) @ bf(params["enc_w1"][l]), approximate=True)
        h = h + bf(y) @ bf(params["enc_w2"][l])
    h = h + res
    logits = bf(h) @ bf(params["dec_w"])
    return jax.nn.softmax(logits, axis=-1)


# ----------------------------------------------------------------------------
# Feature-map preprocessing (mirrors _get_feature_initial_representation).
# ----------------------------------------------------------------------------
def build_vocab(feature_map):
    categorical2id, numerical2id = {}, {}
    cid, nid = 0, 0
    for name, info in feature_map.items():
        if info["type"].lower() == "categorical":
            for val in info["values"]:
                categorical2id[f"{name}->{val}"] = cid
                cid += 1
        elif info["type"].lower() == "numerical":
            numerical2id[name] = nid
            nid += 1
        else:
            raise Exception("error")
    return categorical2id, numerical2id


def featurize(xs, feature_map, categorical2id, numerical2id):
    if isinstance(xs, dict):
        xs = [xs]
    cat_names = [n for n, i in feature_map.items() if i["type"].lower() == "categorical"]
    B, NC, Nn = len(xs), len(cat_names), len(numerical2id)
    cat_ids = np.zeros((B, NC), dtype=np.int32)
    numerical = np.zeros((B, Nn), dtype=np.float32)
    for i, x in enumerate(xs):
        for j, name in enumerate(cat_names):
            cat_ids[i, j] = categorical2id[f"{name}->{x[name]}"]
        for name, nid in numerical2id.items():
            minimum, mean, maximum = feature_map[name]["values"]
            val = x.get(name, None)
            if val is None:
                val = mean
            numerical[i, nid] = (val - minimum) / (maximum - minimum)
    return jnp.asarray(cat_ids), jnp.asarray(numerical)


def init_params(key, cat_vocab, num_feats, layer_num, label_size):
    cat_emb_dim = cat_vocab // 2
    num_emb_dim = num_feats // 2
    hidden = cat_emb_dim + num_emb_dim
    inner = hidden * 2
    ks = jax.random.split(key, 6)
    scale = 0.05
    return {
        "cat_emb": scale * jax.random.normal(ks[0], (cat_vocab, cat_emb_dim), jnp.float32),
        "ln_g": jnp.ones((1, num_feats), jnp.float32),
        "ln_b": jnp.zeros((1, num_feats), jnp.float32),
        "num_w": scale * jax.random.normal(ks[1], (num_feats, num_emb_dim), jnp.float32),
        "all_w": scale * jax.random.normal(ks[2], (hidden, inner), jnp.float32),
        "enc_w1": scale * jax.random.normal(ks[3], (layer_num, inner, 2 * inner), jnp.float32),
        "enc_w2": scale * jax.random.normal(ks[4], (layer_num, 2 * inner, inner), jnp.float32),
        "dec_w": scale * jax.random.normal(ks[5], (inner, label_size), jnp.float32),
    }


if __name__ == "__main__":
    # Small synthetic feature map: 3 categorical (10 total values), 4 numerical.
    feature_map = {
        "age":    {"type": "numerical", "values": [1, 30, 99]},
        "income": {"type": "numerical", "values": [0, 50, 200]},
        "height": {"type": "numerical", "values": [100, 170, 210]},
        "weight": {"type": "numerical", "values": [30, 70, 150]},
        "sex":    {"type": "categorical", "values": ["male", "female"]},
        "city":   {"type": "categorical", "values": ["a", "b", "c", "d"]},
        "edu":    {"type": "categorical", "values": ["hs", "bs", "ms", "phd"]},
    }
    label_size = 2
    layer_num = 4   # module default is 24; same streamed-layer kernel structure

    categorical2id, numerical2id = build_vocab(feature_map)
    cat_vocab = len(categorical2id)   # 10
    num_feats = len(numerical2id)     # 4

    params = init_params(jax.random.PRNGKey(0), cat_vocab, num_feats,
                         layer_num, label_size)

    xs = [
        {"age": 25, "income": 40, "height": 172, "weight": 65,
         "sex": "male", "city": "a", "edu": "bs"},
        {"age": 61, "income": 120, "height": 160, "weight": 80,
         "sex": "female", "city": "c", "edu": "phd"},
        {"age": 33, "income": 75, "height": 185, "weight": 90,
         "sex": "male", "city": "d", "edu": "ms"},
        {"age": 47, "income": 10, "height": 150, "weight": 55,
         "sex": "female", "city": "b", "edu": "hs"},
    ]
    cat_ids, numerical = featurize(xs, feature_map, categorical2id, numerical2id)

    out = universal_model_forward(cat_ids, numerical, params)
    out = jax.block_until_ready(out)

    ref = reference_forward(cat_ids, numerical, params)
    np.testing.assert_allclose(np.asarray(out), np.asarray(ref), rtol=2e-2, atol=2e-3)
    assert out.shape == (len(xs), label_size)
    np.testing.assert_allclose(np.asarray(out).sum(-1), 1.0, rtol=1e-5, atol=1e-5)

    print("KERNEL_OK")
</pallas_src>

<mosaic_0001>
module attributes {stable_mosaic.version = 11 : i64} {
  func.func @_universal_model_kernel(%arg0: i32, %arg1: i32, %arg2: memref<128x128xbf16, #tpu.memory_space<vmem>>, %arg3: memref<128x128xf32, #tpu.memory_space<vmem>>, %arg4: memref<128x128xbf16, #tpu.memory_space<vmem>>, %arg5: memref<1x128xf32, #tpu.memory_space<vmem>>, %arg6: memref<1x128xf32, #tpu.memory_space<vmem>>, %arg7: memref<128x128xbf16, #tpu.memory_space<vmem>>, %arg8: memref<128x128xbf16, #tpu.memory_space<vmem>>, %arg9: memref<128x128xbf16, #tpu.memory_space<vmem>>, %arg10: memref<1x128x128xbf16, #tpu.memory_space<vmem>>, %arg11: memref<1x128x128xbf16, #tpu.memory_space<vmem>>, %arg12: memref<128x128xbf16, #tpu.memory_space<vmem>>, %arg13: memref<128x128xf32, #tpu.memory_space<vmem>>, %arg14: memref<128x128xf32, #tpu.memory_space<vmem>>, %arg15: memref<128x128xf32, #tpu.memory_space<vmem>>) attributes {dimension_semantics = [#tpu.dimension_semantics<parallel>, #tpu.dimension_semantics<arbitrary>], iteration_bounds = array<i64: 1, 4>, scalar_prefetch = 0 : i64, scratch_operands = 2 : i64, tpu.core_type = #tpu.core_type<tc>, window_params = [{transform_indices = @transform_0, window_bounds = array<i64: 128, 128>}, {transform_indices = @transform_1, window_bounds = array<i64: 128, 128>}, {pipeline_mode = #tpu.pipeline_mode<synchronous>, transform_indices = @transform_2, window_bounds = array<i64: 128, 128>}, {pipeline_mode = #tpu.pipeline_mode<synchronous>, transform_indices = @transform_3, window_bounds = array<i64: 1, 128>}, {pipeline_mode = #tpu.pipeline_mode<synchronous>, transform_indices = @transform_4, window_bounds = array<i64: 1, 128>}, {pipeline_mode = #tpu.pipeline_mode<synchronous>, transform_indices = @transform_5, window_bounds = array<i64: 128, 128>}, {pipeline_mode = #tpu.pipeline_mode<synchronous>, transform_indices = @transform_6, window_bounds = array<i64: 128, 128>}, {pipeline_mode = #tpu.pipeline_mode<synchronous>, transform_indices = @transform_7, window_bounds = array<i64: 128, 128>}, {transform_indices = @transform_8, window_bounds = array<i64: 1, 128, 128>}, {transform_indices = @transform_9, window_bounds = array<i64: 1, 128, 128>}, {pipeline_mode = #tpu.pipeline_mode<synchronous>, transform_indices = @transform_10, window_bounds = array<i64: 128, 128>}, {transform_indices = @transform_11, window_bounds = array<i64: 128, 128>}]} {
    %c0_i32 = arith.constant 0 : i32
    %0 = arith.cmpi eq, %arg1, %c0_i32 : i32
    %1 = arith.extui %0 : i1 to i32
    %c0_i32_0 = arith.constant 0 : i32
    %2 = arith.cmpi ne, %1, %c0_i32_0 : i32
    scf.if %2 {
      %c0_16 = arith.constant 0 : index
      %c0_17 = arith.constant 0 : index
      %30 = vector.load %arg2[%c0_16, %c0_17] : memref<128x128xbf16, #tpu.memory_space<vmem>>, vector<128x128xbf16>
      %c0_18 = arith.constant 0 : index
      %c0_19 = arith.constant 0 : index
      %31 = vector.load %arg4[%c0_18, %c0_19] : memref<128x128xbf16, #tpu.memory_space<vmem>>, vector<128x128xbf16>
      %cst_20 = arith.constant dense<0.000000e+00> : vector<128x128xf32>
      %32 = tpu.matmul %30, %31, %cst_20 {dimension_numbers = #tpu.dot_dimension_numbers<[1], [0], [0], [1], [0, 0, 1, 1], [], []>} : vector<128x128xbf16>, vector<128x128xbf16>, vector<128x128xf32> -> vector<128x128xf32>
      %c0_21 = arith.constant 0 : index
      %c0_22 = arith.constant 0 : index
      %33 = vector.load %arg3[%c0_21, %c0_22] : memref<128x128xf32, #tpu.memory_space<vmem>>, vector<128x128xf32>
      %34 = tpu.iota {dimensions = array<i32: 1>} : vector<128x128xi32>
      %c4_i32 = arith.constant 4 : i32
      %35 = vector.broadcast %c4_i32 : i32 to vector<128x128xi32>
      %36 = arith.cmpi slt, %34, %35 : vector<128x128xi32>
      %cst_23 = arith.constant dense<0.000000e+00> : vector<128xf32>
      %37 = vector.multi_reduction <add>, %33, %cst_23 [1] : vector<128x128xf32> to vector<128xf32>
      %38 = vector.shape_cast %37 : vector<128xf32> to vector<128x1xf32>
      %cst_24 = arith.constant 2.500000e-01 : f32
      %39 = vector.broadcast %cst_24 : f32 to vector<128x1xf32>
      %40 = arith.mulf %38, %39 : vector<128x1xf32>
      %41 = vector.broadcast %40 : vector<128x1xf32> to vector<128x128xf32>
      %42 = arith.subf %33, %41 : vector<128x128xf32>
      %cst_25 = arith.constant 0.000000e+00 : f32
      %43 = vector.broadcast %cst_25 : f32 to vector<128x128xf32>
      %44 = arith.select %36, %42, %43 : vector<128x128xi1>, vector<128x128xf32>
      %45 = arith.mulf %44, %44 : vector<128x128xf32>
      %cst_26 = arith.constant dense<0.000000e+00> : vector<128xf32>
      %46 = vector.multi_reduction <add>, %45, %cst_26 [1] : vector<128x128xf32> to vector<128xf32>
      %47 = vector.shape_cast %46 : vector<128xf32> to vector<128x1xf32>
      %cst_27 = arith.constant 2.500000e-01 : f32
      %48 = vector.broadcast %cst_27 : f32 to vector<128x1xf32>
      %49 = arith.mulf %47, %48 : vector<128x1xf32>
      %cst_28 = arith.constant 9.99999974E-6 : f32
      %50 = vector.broadcast %cst_28 : f32 to vector<128x1xf32>
      %51 = arith.addf %49, %50 : vector<128x1xf32>
      %52 = math.rsqrt %51 : vector<128x1xf32>
      %53 = vector.broadcast %52 : vector<128x1xf32> to vector<128x128xf32>
      %54 = arith.mulf %44, %53 : vector<128x128xf32>
      %c0_29 = arith.constant 0 : index
      %c0_30 = arith.constant 0 : index
      %55 = vector.load %arg5[%c0_29, %c0_30] : memref<1x128xf32, #tpu.memory_space<vmem>>, vector<1x128xf32>
      %56 = vector.broadcast %55 : vector<1x128xf32> to vector<128x128xf32>
      %57 = arith.mulf %54, %56 : vector<128x128xf32>
      %c0_31 = arith.constant 0 : index
      %c0_32 = arith.constant 0 : index
      %58 = vector.load %arg6[%c0_31, %c0_32] : memref<1x128xf32, #tpu.memory_space<vmem>>, vector<1x128xf32>
      %59 = vector.broadcast %58 : vector<1x128xf32> to vector<128x128xf32>
      %60 = arith.addf %57, %59 : vector<128x128xf32>
      %61 = arith.truncf %60 : vector<128x128xf32> to vector<128x128xbf16>
      %c0_33 = arith.constant 0 : index
      %c0_34 = arith.constant 0 : index
      %62 = vector.load %arg7[%c0_33, %c0_34] : memref<128x128xbf16, #tpu.memory_space<vmem>>, vector<128x128xbf16>
      %cst_35 = arith.constant dense<0.000000e+00> : vector<128x128xf32>
      %63 = tpu.matmul %61, %62, %cst_35 {dimension_numbers = #tpu.dot_dimension_numbers<[1], [0], [0], [1], [0, 0, 1, 1], [], []>} : vector<128x128xbf16>, vector<128x128xbf16>, vector<128x128xf32> -> vector<128x128xf32>
      %64 = arith.truncf %32 : vector<128x128xf32> to vector<128x128xbf16>
      %c0_36 = arith.constant 0 : index
      %c0_37 = arith.constant 0 : index
      %65 = vector.load %arg8[%c0_36, %c0_37] : memref<128x128xbf16, #tpu.memory_space<vmem>>, vector<128x128xbf16>
      %cst_38 = arith.constant dense<0.000000e+00> : vector<128x128xf32>
      %66 = tpu.matmul %64, %65, %cst_38 {dimension_numbers = #tpu.dot_dimension_numbers<[1], [0], [0], [1], [0, 0, 1, 1], [], []>} : vector<128x128xbf16>, vector<128x128xbf16>, vector<128x128xf32> -> vector<128x128xf32>
      %67 = arith.truncf %63 : vector<128x128xf32> to vector<128x128xbf16>
      %c0_39 = arith.constant 0 : index
      %c0_40 = arith.constant 0 : index
      %68 = vector.load %arg9[%c0_39, %c0_40] : memref<128x128xbf16, #tpu.memory_space<vmem>>, vector<128x128xbf16>
      %cst_41 = arith.constant dense<0.000000e+00> : vector<128x128xf32>
      %69 = tpu.matmul %67, %68, %cst_41 {dimension_numbers = #tpu.dot_dimension_numbers<[1], [0], [0], [1], [0, 0, 1, 1], [], []>} : vector<128x128xbf16>, vector<128x128xbf16>, vector<128x128xf32> -> vector<128x128xf32>
      %70 = arith.addf %66, %69 : vector<128x128xf32>
      %c0_42 = arith.constant 0 : index
      %c0_43 = arith.constant 0 : index
      %71 = vector.load %arg14[%c0_42, %c0_43] : memref<128x128xf32, #tpu.memory_space<vmem>>, vector<128x128xf32>
      tpu.vector_store %arg14[%c0_42, %c0_43], %70 {strides = array<i32>} : memref<128x128xf32, #tpu.memory_space<vmem>>, vector<128x128xf32>,
      %c0_44 = arith.constant 0 : index
      %c0_45 = arith.constant 0 : index
      %72 = vector.load %arg15[%c0_44, %c0_45] : memref<128x128xf32, #tpu.memory_space<vmem>>, vector<128x128xf32>
      tpu.vector_store %arg15[%c0_44, %c0_45], %70 {strides = array<i32>} : memref<128x128xf32, #tpu.memory_space<vmem>>, vector<128x128xf32>,
    } else {
    }
    %c0 = arith.constant 0 : index
    %c0_1 = arith.constant 0 : index
    %3 = vector.load %arg14[%c0, %c0_1] : memref<128x128xf32, #tpu.memory_space<vmem>>, vector<128x128xf32>
    %4 = arith.truncf %3 : vector<128x128xf32> to vector<128x128xbf16>
    %c0_2 = arith.constant 0 : index
    %c0_3 = arith.constant 0 : index
    %c0_4 = arith.constant 0 : index
    %5 = vector.load %arg10[%c0_2, %c0_3, %c0_4] : memref<1x128x128xbf16, #tpu.memory_space<vmem>>, vector<1x128x128xbf16>
    %6 = vector.shape_cast %5 : vector<1x128x128xbf16> to vector<128x128xbf16>
    %cst = arith.constant dense<0.000000e+00> : vector<128x128xf32>
    %7 = tpu.matmul %4, %6, %cst {dimension_numbers = #tpu.dot_dimension_numbers<[1], [0], [0], [1], [0, 0, 1, 1], [], []>} : vector<128x128xbf16>, vector<128x128xbf16>, vector<128x128xf32> -> vector<128x128xf32>
    %8 = arith.mulf %7, %7 : vector<128x128xf32>
    %9 = arith.mulf %7, %8 : vector<128x128xf32>
    %cst_5 = arith.constant 4.471500e-02 : f32
    %10 = vector.broadcast %cst_5 : f32 to vector<128x128xf32>
    %11 = arith.mulf %10, %9 : vector<128x128xf32>
    %12 = arith.addf %7, %11 : vector<128x128xf32>
    %cst_6 = arith.constant 0.797884583 : f32
    %13 = vector.broadcast %cst_6 : f32 to vector<128x128xf32>
    %14 = arith.mulf %13, %12 : vector<128x128xf32>
    %15 = math.tanh %14 : vector<128x128xf32>
    %cst_7 = arith.constant 1.000000e+00 : f32
    %16 = vector.broadcast %cst_7 : f32 to vector<128x128xf32>
    %17 = arith.addf %16, %15 : vector<128x128xf32>
    %cst_8 = arith.constant 5.000000e-01 : f32
    %18 = vector.broadcast %cst_8 : f32 to vector<128x128xf32>
    %19 = arith.mulf %18, %17 : vector<128x128xf32>
    %20 = arith.mulf %7, %19 : vector<128x128xf32>
    %21 = arith.truncf %20 : vector<128x128xf32> to vector<128x128xbf16>
    %c0_9 = arith.constant 0 : index
    %c0_10 = arith.constant 0 : index
    %c0_11 = arith.constant 0 : index
    %22 = vector.load %arg11[%c0_9, %c0_10, %c0_11] : memref<1x128x128xbf16, #tpu.memory_space<vmem>>, vector<1x128x128xbf16>
    %23 = vector.shape_cast %22 : vector<1x128x128xbf16> to vector<128x128xbf16>
    %cst_12 = arith.constant dense<0.000000e+00> : vector<128x128xf32>
    %24 = tpu.matmul %21, %23, %cst_12 {dimension_numbers = #tpu.dot_dimension_numbers<[1], [0], [0], [1], [0, 0, 1, 1], [], []>} : vector<128x128xbf16>, vector<128x128xbf16>, vector<128x128xf32> -> vector<128x128xf32>
    %25 = arith.addf %3, %24 : vector<128x128xf32>
    %c0_13 = arith.constant 0 : index
    %c0_14 = arith.constant 0 : index
    %26 = vector.load %arg14[%c0_13, %c0_14] : memref<128x128xf32, #tpu.memory_space<vmem>>, vector<128x128xf32>
    tpu.vector_store %arg14[%c0_13, %c0_14], %25 {strides = array<i32>} : memref<128x128xf32, #tpu.memory_space<vmem>>, vector<128x128xf32>,
    %c3_i32 = arith.constant 3 : i32
    %27 = arith.cmpi eq, %arg1, %c3_i32 : i32
    %28 = arith.extui %27 : i1 to i32
    %c0_i32_15 = arith.constant 0 : i32
    %29 = arith.cmpi ne, %28, %c0_i32_15 : i32
    scf.if %29 {
      %c0_16 = arith.constant 0 : index
      %c0_17 = arith.constant 0 : index
      %30 = vector.load %arg14[%c0_16, %c0_17] : memref<128x128xf32, #tpu.memory_space<vmem>>, vector<128x128xf32>
      %c0_18 = arith.constant 0 : index
      %c0_19 = arith.constant 0 : index
      %31 = vector.load %arg15[%c0_18, %c0_19] : memref<128x128xf32, #tpu.memory_space<vmem>>, vector<128x128xf32>
      %32 = arith.addf %30, %31 : vector<128x128xf32>
      %33 = arith.truncf %32 : vector<128x128xf32> to vector<128x128xbf16>
      %c0_20 = arith.constant 0 : index
      %c0_21 = arith.constant 0 : index
      %34 = vector.load %arg12[%c0_20, %c0_21] : memref<128x128xbf16, #tpu.memory_space<vmem>>, vector<128x128xbf16>
      %cst_22 = arith.constant dense<0.000000e+00> : vector<128x128xf32>
      %35 = tpu.matmul %33, %34, %cst_22 {dimension_numbers = #tpu.dot_dimension_numbers<[1], [0], [0], [1], [0, 0, 1, 1], [], []>} : vector<128x128xbf16>, vector<128x128xbf16>, vector<128x128xf32> -> vector<128x128xf32>
      %36 = tpu.iota {dimensions = array<i32: 1>} : vector<128x128xi32>
      %c2_i32 = arith.constant 2 : i32
      %37 = vector.broadcast %c2_i32 : i32 to vector<128x128xi32>
      %38 = arith.cmpi slt, %36, %37 : vector<128x128xi32>
      %cst_23 = arith.constant -1.000000e+30 : f32
      %39 = vector.broadcast %cst_23 : f32 to vector<128x128xf32>
      %40 = arith.select %38, %35, %39 : vector<128x128xi1>, vector<128x128xf32>
      %cst_24 = arith.constant dense<0xFF800000> : vector<128xf32>
      %41 = vector.multi_reduction <maximumf>, %40, %cst_24 [1] : vector<128x128xf32> to vector<128xf32>
      %cst_25 = arith.constant 0xFF800000 : f32
      %42 = vector.broadcast %cst_25 : f32 to vector<128xf32>
      %43 = arith.maximumf %42, %41 : vector<128xf32>
      %44 = vector.shape_cast %43 : vector<128xf32> to vector<128x1xf32>
      %45 = vector.broadcast %44 : vector<128x1xf32> to vector<128x128xf32>
      %46 = arith.subf %40, %45 : vector<128x128xf32>
      %47 = math.exp %46 : vector<128x128xf32>
      %cst_26 = arith.constant dense<0.000000e+00> : vector<128xf32>
      %48 = vector.multi_reduction <add>, %47, %cst_26 [1] : vector<128x128xf32> to vector<128xf32>
      %49 = vector.shape_cast %48 : vector<128xf32> to vector<128x1xf32>
      %50 = vector.broadcast %49 : vector<128x1xf32> to vector<128x128xf32>
      %51 = arith.divf %47, %50 : vector<128x128xf32>
      %c0_27 = arith.constant 0 : index
      %c0_28 = arith.constant 0 : index
      %52 = vector.load %arg13[%c0_27, %c0_28] : memref<128x128xf32, #tpu.memory_space<vmem>>, vector<128x128xf32>
      tpu.vector_store %arg13[%c0_27, %c0_28], %51 {strides = array<i32>} : memref<128x128xf32, #tpu.memory_space<vmem>>, vector<128x128xf32>,
    } else {
    }
    return
  }
  func.func @transform_0(%arg0: i32, %arg1: i32) -> (i32, i32) {
    %c0_i32 = arith.constant 0 : i32
    %c0_i32_0 = arith.constant 0 : i32
    return %arg0, %c0_i32 : i32, i32
  }
  func.func @transform_1(%arg0: i32, %arg1: i32) -> (i32, i32) {
    %c0_i32 = arith.constant 0 : i32
    %c0_i32_0 = arith.constant 0 : i32
    return %arg0, %c0_i32 : i32, i32
  }
  func.func @transform_2(%arg0: i32, %arg1: i32) -> (i32, i32) {
    %c0_i32 = arith.constant 0 : i32
    %c0_i32_0 = arith.constant 0 : i32
    %c0_i32_1 = arith.constant 0 : i32
    return %c0_i32, %c0_i32_0 : i32, i32
  }
  func.func @transform_3(%arg0: i32, %arg1: i32) -> (i32, i32) {
    %c0_i32 = arith.constant 0 : i32
    %c0_i32_0 = arith.constant 0 : i32
    %c0_i32_1 = arith.constant 0 : i32
    return %c0_i32, %c0_i32_0 : i32, i32
  }
  func.func @transform_4(%arg0: i32, %arg1: i32) -> (i32, i32) {
    %c0_i32 = arith.constant 0 : i32
    %c0_i32_0 = arith.constant 0 : i32
    %c0_i32_1 = arith.constant 0 : i32
    return %c0_i32, %c0_i32_0 : i32, i32
  }
  func.func @transform_5(%arg0: i32, %arg1: i32) -> (i32, i32) {
    %c0_i32 = arith.constant 0 : i32
    %c0_i32_0 = arith.constant 0 : i32
    %c0_i32_1 = arith.constant 0 : i32
    return %c0_i32, %c0_i32_0 : i32, i32
  }
  func.func @transform_6(%arg0: i32, %arg1: i32) -> (i32, i32) {
    %c0_i32 = arith.constant 0 : i32
    %c0_i32_0 = arith.constant 0 : i32
    %c0_i32_1 = arith.constant 0 : i32
    return %c0_i32, %c0_i32_0 : i32, i32
  }
  func.func @transform_7(%arg0: i32, %arg1: i32) -> (i32, i32) {
    %c0_i32 = arith.constant 0 : i32
    %c0_i32_0 = arith.constant 0 : i32
    %c0_i32_1 = arith.constant 0 : i32
    return %c0_i32, %c0_i32_0 : i32, i32
  }
  func.func @transform_8(%arg0: i32, %arg1: i32) -> (i32, i32, i32) {
    %c0_i32 = arith.constant 0 : i32
    %c0_i32_0 = arith.constant 0 : i32
    %c0_i32_1 = arith.constant 0 : i32
    return %arg1, %c0_i32, %c0_i32_0 : i32, i32, i32
  }
  func.func @transform_9(%arg0: i32, %arg1: i32) -> (i32, i32, i32) {
    %c0_i32 = arith.constant 0 : i32
    %c0_i32_0 = arith.constant 0 : i32
    %c0_i32_1 = arith.constant 0 : i32
    return %arg1, %c0_i32, %c0_i32_0 : i32, i32, i32
  }
  func.func @transform_10(%arg0: i32, %arg1: i32) -> (i32, i32) {
    %c0_i32 = arith.constant 0 : i32
    %c0_i32_0 = arith.constant 0 : i32
    %c0_i32_1 = arith.constant 0 : i32
    return %c0_i32, %c0_i32_0 : i32, i32
  }
  func.func @transform_11(%arg0: i32, %arg1: i32) -> (i32, i32) {
    %c0_i32 = arith.constant 0 : i32
    %c0_i32_0 = arith.constant 0 : i32
    return %arg0, %c0_i32 : i32, i32
  }
}

module attributes {stable_mosaic.version = 11 : i64} {
  func.func @_universal_model_kernel(%arg0: i32, %arg1: i32, %arg2: memref<128x128xbf16, #tpu.memory_space<vmem>>, %arg3: memref<128x128xf32, #tpu.memory_space<vmem>>, %arg4: memref<128x128xbf16, #tpu.memory_space<vmem>>, %arg5: memref<1x128xf32, #tpu.memory_space<vmem>>, %arg6: memref<1x128xf32, #tpu.memory_space<vmem>>, %arg7: memref<128x128xbf16, #tpu.memory_space<vmem>>, %arg8: memref<128x128xbf16, #tpu.memory_space<vmem>>, %arg9: memref<128x128xbf16, #tpu.memory_space<vmem>>, %arg10: memref<1x128x128xbf16, #tpu.memory_space<vmem>>, %arg11: memref<1x128x128xbf16, #tpu.memory_space<vmem>>, %arg12: memref<128x128xbf16, #tpu.memory_space<vmem>>, %arg13: memref<128x128xf32, #tpu.memory_space<vmem>>, %arg14: memref<128x128xf32, #tpu.memory_space<vmem>>, %arg15: memref<128x128xf32, #tpu.memory_space<vmem>>) attributes {dimension_semantics = [#tpu.dimension_semantics<parallel>, #tpu.dimension_semantics<arbitrary>], iteration_bounds = array<i64: 1, 4>, scalar_prefetch = 0 : i64, scratch_operands = 2 : i64, tpu.core_type = #tpu.core_type<tc>, window_params = [{transform_indices = @transform_0, window_bounds = array<i64: 128, 128>}, {transform_indices = @transform_1, window_bounds = array<i64: 128, 128>}, {pipeline_mode = #tpu.pipeline_mode<synchronous>, transform_indices = @transform_2, window_bounds = array<i64: 128, 128>}, {pipeline_mode = #tpu.pipeline_mode<synchronous>, transform_indices = @transform_3, window_bounds = array<i64: 1, 128>}, {pipeline_mode = #tpu.pipeline_mode<synchronous>, transform_indices = @transform_4, window_bounds = array<i64: 1, 128>}, {pipeline_mode = #tpu.pipeline_mode<synchronous>, transform_indices = @transform_5, window_bounds = array<i64: 128, 128>}, {pipeline_mode = #tpu.pipeline_mode<synchronous>, transform_indices = @transform_6, window_bounds = array<i64: 128, 128>}, {pipeline_mode = #tpu.pipeline_mode<synchronous>, transform_indices = @transform_7, window_bounds = array<i64: 128, 128>}, {transform_indices = @transform_8, window_bounds = array<i64: 1, 128, 128>}, {transform_indices = @transform_9, window_bounds = array<i64: 1, 128, 128>}, {pipeline_mode = #tpu.pipeline_mode<synchronous>, transform_indices = @transform_10, window_bounds = array<i64: 128, 128>}, {transform_indices = @transform_11, window_bounds = array<i64: 128, 128>}]} {
    %c0_i32 = arith.constant 0 : i32
    %0 = arith.cmpi eq, %arg1, %c0_i32 : i32
    %1 = arith.extui %0 : i1 to i32
    %c0_i32_0 = arith.constant 0 : i32
    %2 = arith.cmpi ne, %1, %c0_i32_0 : i32
    scf.if %2 {
      %c0_16 = arith.constant 0 : index
      %c0_17 = arith.constant 0 : index
      %30 = vector.load %arg2[%c0_16, %c0_17] : memref<128x128xbf16, #tpu.memory_space<vmem>>, vector<128x128xbf16>
      %c0_18 = arith.constant 0 : index
      %c0_19 = arith.constant 0 : index
      %31 = vector.load %arg4[%c0_18, %c0_19] : memref<128x128xbf16, #tpu.memory_space<vmem>>, vector<128x128xbf16>
      %cst_20 = arith.constant dense<0.000000e+00> : vector<128x128xf32>
      %32 = tpu.matmul %30, %31, %cst_20 {dimension_numbers = #tpu.dot_dimension_numbers<[1], [0], [0], [1], [0, 0, 1, 1], [], []>} : vector<128x128xbf16>, vector<128x128xbf16>, vector<128x128xf32> -> vector<128x128xf32>
      %c0_21 = arith.constant 0 : index
      %c0_22 = arith.constant 0 : index
      %33 = vector.load %arg3[%c0_21, %c0_22] : memref<128x128xf32, #tpu.memory_space<vmem>>, vector<128x128xf32>
      %34 = tpu.iota {dimensions = array<i32: 1>} : vector<128x128xi32>
      %c4_i32 = arith.constant 4 : i32
      %35 = vector.broadcast %c4_i32 : i32 to vector<128x128xi32>
      %36 = arith.cmpi slt, %34, %35 : vector<128x128xi32>
      %cst_23 = arith.constant dense<0.000000e+00> : vector<128xf32>
      %37 = vector.multi_reduction <add>, %33, %cst_23 [1] : vector<128x128xf32> to vector<128xf32>
      %38 = vector.shape_cast %37 : vector<128xf32> to vector<128x1xf32>
      %cst_24 = arith.constant 2.500000e-01 : f32
      %39 = vector.broadcast %cst_24 : f32 to vector<128x1xf32>
      %40 = arith.mulf %38, %39 : vector<128x1xf32>
      %41 = vector.broadcast %40 : vector<128x1xf32> to vector<128x128xf32>
      %42 = arith.subf %33, %41 : vector<128x128xf32>
      %cst_25 = arith.constant 0.000000e+00 : f32
      %43 = vector.broadcast %cst_25 : f32 to vector<128x128xf32>
      %44 = arith.select %36, %42, %43 : vector<128x128xi1>, vector<128x128xf32>
      %45 = arith.mulf %44, %44 : vector<128x128xf32>
      %cst_26 = arith.constant dense<0.000000e+00> : vector<128xf32>
      %46 = vector.multi_reduction <add>, %45, %cst_26 [1] : vector<128x128xf32> to vector<128xf32>
      %47 = vector.shape_cast %46 : vector<128xf32> to vector<128x1xf32>
      %cst_27 = arith.constant 2.500000e-01 : f32
      %48 = vector.broadcast %cst_27 : f32 to vector<128x1xf32>
      %49 = arith.mulf %47, %48 : vector<128x1xf32>
      %cst_28 = arith.constant 9.99999974E-6 : f32
      %50 = vector.broadcast %cst_28 : f32 to vector<128x1xf32>
      %51 = arith.addf %49, %50 : vector<128x1xf32>
      %52 = math.rsqrt %51 : vector<128x1xf32>
      %53 = vector.broadcast %52 : vector<128x1xf32> to vector<128x128xf32>
      %54 = arith.mulf %44, %53 : vector<128x128xf32>
      %c0_29 = arith.constant 0 : index
      %c0_30 = arith.constant 0 : index
      %55 = vector.load %arg5[%c0_29, %c0_30] : memref<1x128xf32, #tpu.memory_space<vmem>>, vector<1x128xf32>
      %56 = vector.broadcast %55 : vector<1x128xf32> to vector<128x128xf32>
      %57 = arith.mulf %54, %56 : vector<128x128xf32>
      %c0_31 = arith.constant 0 : index
      %c0_32 = arith.constant 0 : index
      %58 = vector.load %arg6[%c0_31, %c0_32] : memref<1x128xf32, #tpu.memory_space<vmem>>, vector<1x128xf32>
      %59 = vector.broadcast %58 : vector<1x128xf32> to vector<128x128xf32>
      %60 = arith.addf %57, %59 : vector<128x128xf32>
      %61 = arith.truncf %60 : vector<128x128xf32> to vector<128x128xbf16>
      %c0_33 = arith.constant 0 : index
      %c0_34 = arith.constant 0 : index
      %62 = vector.load %arg7[%c0_33, %c0_34] : memref<128x128xbf16, #tpu.memory_space<vmem>>, vector<128x128xbf16>
      %cst_35 = arith.constant dense<0.000000e+00> : vector<128x128xf32>
      %63 = tpu.matmul %61, %62, %cst_35 {dimension_numbers = #tpu.dot_dimension_numbers<[1], [0], [0], [1], [0, 0, 1, 1], [], []>} : vector<128x128xbf16>, vector<128x128xbf16>, vector<128x128xf32> -> vector<128x128xf32>
      %64 = arith.truncf %32 : vector<128x128xf32> to vector<128x128xbf16>
      %c0_36 = arith.constant 0 : index
      %c0_37 = arith.constant 0 : index
      %65 = vector.load %arg8[%c0_36, %c0_37] : memref<128x128xbf16, #tpu.memory_space<vmem>>, vector<128x128xbf16>
      %cst_38 = arith.constant dense<0.000000e+00> : vector<128x128xf32>
      %66 = tpu.matmul %64, %65, %cst_38 {dimension_numbers = #tpu.dot_dimension_numbers<[1], [0], [0], [1], [0, 0, 1, 1], [], []>} : vector<128x128xbf16>, vector<128x128xbf16>, vector<128x128xf32> -> vector<128x128xf32>
      %67 = arith.truncf %63 : vector<128x128xf32> to vector<128x128xbf16>
      %c0_39 = arith.constant 0 : index
      %c0_40 = arith.constant 0 : index
      %68 = vector.load %arg9[%c0_39, %c0_40] : memref<128x128xbf16, #tpu.memory_space<vmem>>, vector<128x128xbf16>
      %cst_41 = arith.constant dense<0.000000e+00> : vector<128x128xf32>
      %69 = tpu.matmul %67, %68, %cst_41 {dimension_numbers = #tpu.dot_dimension_numbers<[1], [0], [0], [1], [0, 0, 1, 1], [], []>} : vector<128x128xbf16>, vector<128x128xbf16>, vector<128x128xf32> -> vector<128x128xf32>
      %70 = arith.addf %66, %69 : vector<128x128xf32>
      %c0_42 = arith.constant 0 : index
      %c0_43 = arith.constant 0 : index
      %71 = vector.load %arg14[%c0_42, %c0_43] : memref<128x128xf32, #tpu.memory_space<vmem>>, vector<128x128xf32>
      tpu.vector_store %arg14[%c0_42, %c0_43], %70 {strides = array<i32>} : memref<128x128xf32, #tpu.memory_space<vmem>>, vector<128x128xf32>,
      %c0_44 = arith.constant 0 : index
      %c0_45 = arith.constant 0 : index
      %72 = vector.load %arg15[%c0_44, %c0_45] : memref<128x128xf32, #tpu.memory_space<vmem>>, vector<128x128xf32>
      tpu.vector_store %arg15[%c0_44, %c0_45], %70 {strides = array<i32>} : memref<128x128xf32, #tpu.memory_space<vmem>>, vector<128x128xf32>,
    } else {
    }
    %c0 = arith.constant 0 : index
    %c0_1 = arith.constant 0 : index
    %3 = vector.load %arg14[%c0, %c0_1] : memref<128x128xf32, #tpu.memory_space<vmem>>, vector<128x128xf32>
    %4 = arith.truncf %3 : vector<128x128xf32> to vector<128x128xbf16>
    %c0_2 = arith.constant 0 : index
    %c0_3 = arith.constant 0 : index
    %c0_4 = arith.constant 0 : index
    %5 = vector.load %arg10[%c0_2, %c0_3, %c0_4] : memref<1x128x128xbf16, #tpu.memory_space<vmem>>, vector<1x128x128xbf16>
    %6 = vector.shape_cast %5 : vector<1x128x128xbf16> to vector<128x128xbf16>
    %cst = arith.constant dense<0.000000e+00> : vector<128x128xf32>
    %7 = tpu.matmul %4, %6, %cst {dimension_numbers = #tpu.dot_dimension_numbers<[1], [0], [0], [1], [0, 0, 1, 1], [], []>} : vector<128x128xbf16>, vector<128x128xbf16>, vector<128x128xf32> -> vector<128x128xf32>
    %8 = arith.mulf %7, %7 : vector<128x128xf32>
    %9 = arith.mulf %7, %8 : vector<128x128xf32>
    %cst_5 = arith.constant 4.471500e-02 : f32
    %10 = vector.broadcast %cst_5 : f32 to vector<128x128xf32>
    %11 = arith.mulf %10, %9 : vector<128x128xf32>
    %12 = arith.addf %7, %11 : vector<128x128xf32>
    %cst_6 = arith.constant 0.797884583 : f32
    %13 = vector.broadcast %cst_6 : f32 to vector<128x128xf32>
    %14 = arith.mulf %13, %12 : vector<128x128xf32>
    %15 = math.tanh %14 : vector<128x128xf32>
    %cst_7 = arith.constant 1.000000e+00 : f32
    %16 = vector.broadcast %cst_7 : f32 to vector<128x128xf32>
    %17 = arith.addf %16, %15 : vector<128x128xf32>
    %cst_8 = arith.constant 5.000000e-01 : f32
    %18 = vector.broadcast %cst_8 : f32 to vector<128x128xf32>
    %19 = arith.mulf %18, %17 : vector<128x128xf32>
    %20 = arith.mulf %7, %19 : vector<128x128xf32>
    %21 = arith.truncf %20 : vector<128x128xf32> to vector<128x128xbf16>
    %c0_9 = arith.constant 0 : index
    %c0_10 = arith.constant 0 : index
    %c0_11 = arith.constant 0 : index
    %22 = vector.load %arg11[%c0_9, %c0_10, %c0_11] : memref<1x128x128xbf16, #tpu.memory_space<vmem>>, vector<1x128x128xbf16>
    %23 = vector.shape_cast %22 : vector<1x128x128xbf16> to vector<128x128xbf16>
    %cst_12 = arith.constant dense<0.000000e+00> : vector<128x128xf32>
    %24 = tpu.matmul %21, %23, %cst_12 {dimension_numbers = #tpu.dot_dimension_numbers<[1], [0], [0], [1], [0, 0, 1, 1], [], []>} : vector<128x128xbf16>, vector<128x128xbf16>, vector<128x128xf32> -> vector<128x128xf32>
    %25 = arith.addf %3, %24 : vector<128x128xf32>
    %c0_13 = arith.constant 0 : index
    %c0_14 = arith.constant 0 : index
    %26 = vector.load %arg14[%c0_13, %c0_14] : memref<128x128xf32, #tpu.memory_space<vmem>>, vector<128x128xf32>
    tpu.vector_store %arg14[%c0_13, %c0_14], %25 {strides = array<i32>} : memref<128x128xf32, #tpu.memory_space<vmem>>, vector<128x128xf32>,
    %c3_i32 = arith.constant 3 : i32
    %27 = arith.cmpi eq, %arg1, %c3_i32 : i32
    %28 = arith.extui %27 : i1 to i32
    %c0_i32_15 = arith.constant 0 : i32
    %29 = arith.cmpi ne, %28, %c0_i32_15 : i32
    scf.if %29 {
      %c0_16 = arith.constant 0 : index
      %c0_17 = arith.constant 0 : index
      %30 = vector.load %arg14[%c0_16, %c0_17] : memref<128x128xf32, #tpu.memory_space<vmem>>, vector<128x128xf32>
      %c0_18 = arith.constant 0 : index
      %c0_19 = arith.constant 0 : index
      %31 = vector.load %arg15[%c0_18, %c0_19] : memref<128x128xf32, #tpu.memory_space<vmem>>, vector<128x128xf32>
      %32 = arith.addf %30, %31 : vector<128x128xf32>
      %33 = arith.truncf %32 : vector<128x128xf32> to vector<128x128xbf16>
      %c0_20 = arith.constant 0 : index
      %c0_21 = arith.constant 0 : index
      %34 = vector.load %arg12[%c0_20, %c0_21] : memref<128x128xbf16, #tpu.memory_space<vmem>>, vector<128x128xbf16>
      %cst_22 = arith.constant dense<0.000000e+00> : vector<128x128xf32>
      %35 = tpu.matmul %33, %34, %cst_22 {dimension_numbers = #tpu.dot_dimension_numbers<[1], [0], [0], [1], [0, 0, 1, 1], [], []>} : vector<128x128xbf16>, vector<128x128xbf16>, vector<128x128xf32> -> vector<128x128xf32>
      %36 = tpu.iota {dimensions = array<i32: 1>} : vector<128x128xi32>
      %c2_i32 = arith.constant 2 : i32
      %37 = vector.broadcast %c2_i32 : i32 to vector<128x128xi32>
      %38 = arith.cmpi slt, %36, %37 : vector<128x128xi32>
      %cst_23 = arith.constant -1.000000e+30 : f32
      %39 = vector.broadcast %cst_23 : f32 to vector<128x128xf32>
      %40 = arith.select %38, %35, %39 : vector<128x128xi1>, vector<128x128xf32>
      %cst_24 = arith.constant dense<0xFF800000> : vector<128xf32>
      %41 = vector.multi_reduction <maximumf>, %40, %cst_24 [1] : vector<128x128xf32> to vector<128xf32>
      %cst_25 = arith.constant 0xFF800000 : f32
      %42 = vector.broadcast %cst_25 : f32 to vector<128xf32>
      %43 = arith.maximumf %42, %41 : vector<128xf32>
      %44 = vector.shape_cast %43 : vector<128xf32> to vector<128x1xf32>
      %45 = vector.broadcast %44 : vector<128x1xf32> to vector<128x128xf32>
      %46 = arith.subf %40, %45 : vector<128x128xf32>
      %47 = math.exp %46 : vector<128x128xf32>
      %cst_26 = arith.constant dense<0.000000e+00> : vector<128xf32>
      %48 = vector.multi_reduction <add>, %47, %cst_26 [1] : vector<128x128xf32> to vector<128xf32>
      %49 = vector.shape_cast %48 : vector<128xf32> to vector<128x1xf32>
      %50 = vector.broadcast %49 : vector<128x1xf32> to vector<128x128xf32>
      %51 = arith.divf %47, %50 : vector<128x128xf32>
      %c0_27 = arith.constant 0 : index
      %c0_28 = arith.constant 0 : index
      %52 = vector.load %arg13[%c0_27, %c0_28] : memref<128x128xf32, #tpu.memory_space<vmem>>, vector<128x128xf32>
      tpu.vector_store %arg13[%c0_27, %c0_28], %51 {strides = array<i32>} : memref<128x128xf32, #tpu.memory_space<vmem>>, vector<128x128xf32>,
    } else {
    }
    return
  }
  func.func @transform_0(%arg0: i32, %arg1: i32) -> (i32, i32) {
    %c0_i32 = arith.constant 0 : i32
    %c0_i32_0 = arith.constant 0 : i32
    return %arg0, %c0_i32 : i32, i32
  }
  func.func @transform_1(%arg0: i32, %arg1: i32) -> (i32, i32) {
    %c0_i32 = arith.constant 0 : i32
    %c0_i32_0 = arith.constant 0 : i32
    return %arg0, %c0_i32 : i32, i32
  }
  func.func @transform_2(%arg0: i32, %arg1: i32) -> (i32, i32) {
    %c0_i32 = arith.constant 0 : i32
    %c0_i32_0 = arith.constant 0 : i32
    %c0_i32_1 = arith.constant 0 : i32
    return %c0_i32, %c0_i32_0 : i32, i32
  }
  func.func @transform_3(%arg0: i32, %arg1: i32) -> (i32, i32) {
    %c0_i32 = arith.constant 0 : i32
    %c0_i32_0 = arith.constant 0 : i32
    %c0_i32_1 = arith.constant 0 : i32
    return %c0_i32, %c0_i32_0 : i32, i32
  }
  func.func @transform_4(%arg0: i32, %arg1: i32) -> (i32, i32) {
    %c0_i32 = arith.constant 0 : i32
    %c0_i32_0 = arith.constant 0 : i32
    %c0_i32_1 = arith.constant 0 : i32
    return %c0_i32, %c0_i32_0 : i32, i32
  }
  func.func @transform_5(%arg0: i32, %arg1: i32) -> (i32, i32) {
    %c0_i32 = arith.constant 0 : i32
    %c0_i32_0 = arith.constant 0 : i32
    %c0_i32_1 = arith.constant 0 : i32
    return %c0_i32, %c0_i32_0 : i32, i32
  }
  func.func @transform_6(%arg0: i32, %arg1: i32) -> (i32, i32) {
    %c0_i32 = arith.constant 0 : i32
    %c0_i32_0 = arith.constant 0 : i32
    %c0_i32_1 = arith.constant 0 : i32
    return %c0_i32, %c0_i32_0 : i32, i32
  }
  func.func @transform_7(%arg0: i32, %arg1: i32) -> (i32, i32) {
    %c0_i32 = arith.constant 0 : i32
    %c0_i32_0 = arith.constant 0 : i32
    %c0_i32_1 = arith.constant 0 : i32
    return %c0_i32, %c0_i32_0 : i32, i32
  }
  func.func @transform_8(%arg0: i32, %arg1: i32) -> (i32, i32, i32) {
    %c0_i32 = arith.constant 0 : i32
    %c0_i32_0 = arith.constant 0 : i32
    %c0_i32_1 = arith.constant 0 : i32
    return %arg1, %c0_i32, %c0_i32_0 : i32, i32, i32
  }
  func.func @transform_9(%arg0: i32, %arg1: i32) -> (i32, i32, i32) {
    %c0_i32 = arith.constant 0 : i32
    %c0_i32_0 = arith.constant 0 : i32
    %c0_i32_1 = arith.constant 0 : i32
    return %arg1, %c0_i32, %c0_i32_0 : i32, i32, i32
  }
  func.func @transform_10(%arg0: i32, %arg1: i32) -> (i32, i32) {
    %c0_i32 = arith.constant 0 : i32
    %c0_i32_0 = arith.constant 0 : i32
    %c0_i32_1 = arith.constant 0 : i32
    return %c0_i32, %c0_i32_0 : i32, i32
  }
  func.func @transform_11(%arg0: i32, %arg1: i32) -> (i32, i32) {
    %c0_i32 = arith.constant 0 : i32
    %c0_i32_0 = arith.constant 0 : i32
    return %arg0, %c0_i32 : i32, i32
  }
}

</mosaic_0001>

<llo_original>
// kernel: _forward_impl.1
$region0: #{_forward_impl.1}
  #allocation0 [shape = 'u32[]', space=smem, size = 0x4, offset = 0x4, fixed_abs, tag = 'smem constant byte address 0x4 - core index']
  #allocation1 [shape = 'u32[144,128]{1,0:T(1,128)}', space=vmem, size = 0x12000, scoped, tag = 'internal scratch']
  #allocation2 [shape = 'f32[128,128]{1,0:T(8,128)}', space=vmem, size = 0x10000, scoped, tag = 'scratch operand']
  #allocation3 [shape = 'f32[128,128]{1,0:T(8,128)}', space=vmem, size = 0x10000, scoped, tag = 'scratch operand']
  %s0 = inlined_call_operand.vmem [shape: bf16[128,128], index: 0, kind: input, shape index: {}]
  %s1 = inlined_call_operand.vmem [shape: f32[128,128], index: 1, kind: input, shape index: {}]
  %s2 = inlined_call_operand.vmem [shape: bf16[128,128], index: 2, kind: input, shape index: {}]
  %s3 = inlined_call_operand.vmem [shape: f32[1,128], index: 3, kind: input, shape index: {}]
  %s4 = inlined_call_operand.vmem [shape: f32[1,128], index: 4, kind: input, shape index: {}]
  %s5 = inlined_call_operand.vmem [shape: bf16[128,128], index: 5, kind: input, shape index: {}]
  %s6 = inlined_call_operand.vmem [shape: bf16[128,128], index: 6, kind: input, shape index: {}]
  %s7 = inlined_call_operand.vmem [shape: bf16[128,128], index: 7, kind: input, shape index: {}]
  %s8 = inlined_call_operand.vmem [shape: bf16[4,128,128], index: 8, kind: input, shape index: {}]
  %s9 = inlined_call_operand.vmem [shape: bf16[4,128,128], index: 9, kind: input, shape index: {}]
  %s10 = inlined_call_operand.vmem [shape: bf16[128,128], index: 10, kind: input, shape index: {}]
  %s11 = inlined_call_operand.vmem [shape: f32[128,128], index: 11, kind: output, shape index: {}]
  %s12 = sld [smem:[#allocation0]]
  $region85: #{_forward_impl.1} parent=0
    _
  %s14 = ssub.s32 1, %s12
  %s15 = scalar_select 0, %s14, %s12
  loop: start=0, step=1, limit=6
  $region2: #{_forward_impl.1} parent=0 // loop_pre_header
    _
  $region3: #{_forward_impl.1} parent=0 // loop_header
    %s17 = sphi 0, %s21
    %p18 = scmp.ge.s32.totalorder %s17, 6
    %s24 = sphi 0, %s36
    %s25 = sphi 0, %s32
    %s26 = sphi 0, %s24
    %s27 = sphi 0, %s25
    %s28 = sphi 0, %s26
    %s29 = sphi 0, %s27
    %s39 = sphi 0, %s41
    %s42 = sphi 0, %s39
    %s43 = sphi 0, %s42
    %s59 = sphi 0, %s43
    %s65 = sphi 0, %s67
    %s68 = sphi 0, %s65
    %s69 = sphi 0, %s68
    %s85 = sphi 0, %s69
    %s89 = sphi 0, %s89
    %s91 = sphi 0, %s89
    %s92 = sphi 0, %s91
    %s106 = sphi 0, %s92
    %s110 = sphi 0, %s110
    %s112 = sphi 0, %s110
    %s113 = sphi 0, %s112
    %s127 = sphi 0, %s113
    %s131 = sphi 0, %s131
    %s133 = sphi 0, %s131
    %s134 = sphi 0, %s133
    %s148 = sphi 0, %s134
    %s152 = sphi 0, %s152
    %s154 = sphi 0, %s152
    %s155 = sphi 0, %s154
    %s169 = sphi 0, %s155
    %s173 = sphi 0, %s173
    %s175 = sphi 0, %s173
    %s176 = sphi 0, %s175
    %s190 = sphi 0, %s176
    %s194 = sphi 0, %s194
    %s196 = sphi 0, %s194
    %s197 = sphi 0, %s196
    %s211 = sphi 0, %s197
    %s217 = sphi 0, %s219
    %s220 = sphi 0, %s217
    %s221 = sphi 0, %s220
    %s237 = sphi 0, %s221
    %s243 = sphi 0, %s245
    %s246 = sphi 0, %s243
    %s247 = sphi 0, %s246
    %s263 = sphi 0, %s247
    %s267 = sphi 0, %s267
    %s269 = sphi 0, %s267
    %s270 = sphi 0, %s269
    %s284 = sphi 0, %s270
    %s290 = sphi 0, %s292
    %s293 = sphi 0, %s290
    %s294 = sphi 0, %s293
    %s310 = sphi 0, %s294
  $region4: #{_forward_impl.1} parent=0 // loop_header_branch
    %20 = sbr.rel (%p18) target = $region8
  $region5: #{_forward_impl.1} parent=0 // loop_body
    %s22 = ssub.s32 %s17, 1
    %s23 = ssub.s32 %s17, 2
    %s30 = sadd.s32 1, %s25
    %p31 = scmp.ge.s32.totalorder %s30, 4
    %s32 = scalar_select %p31, 0, %s30
    %s33 = sadd.s32 1, %s24
    %s34 = scalar_select %p31, %s33, %s24
    %p35 = scmp.ge.s32.totalorder %s34, 1
    %s36 = scalar_select %p35, 0, %s34
    %s37 = ssub.s32 %s24, %s36
    %p38 = scmp.eq.s32.totalorder %s37, 0
    %s40 = sadd.s32 %s39, 1
    %s41 = scalar_select %p38, %s39, %s40
    %p44 = pneg %p38
    %p45 = scmp.eq.s32.totalorder %s17, 3
    %p46 = por %p44, %p45
    %p47 = scmp.ne.s32.totalorder %s39, %s42
    %p48 = scmp.eq.s32.totalorder %s17, 0
    %p49 = por %p47, %p48
    %p50 = scmp.ne.s32.totalorder %s39, %s42
    %p51 = scmp.eq.s32.totalorder %s22, 3
    %p52 = por %p50, %p51
    %p53 = scmp.ne.s32.totalorder %s42, %s43
    %p54 = scmp.eq.s32.totalorder %s22, 0
    %p55 = por %p53, %p54
    %p56 = scmp.ne.s32.totalorder %s42, %s43
    %p57 = scmp.eq.s32.totalorder %s23, 3
    %p58 = por %p56, %p57
    %p60 = scmp.ne.s32.totalorder %s43, %s59
    %p61 = scmp.eq.s32.totalorder %s23, 0
    %p62 = por %p60, %p61
    %s63 = ssub.s32 %s24, %s36
    %p64 = scmp.eq.s32.totalorder %s63, 0
    %s66 = sadd.s32 %s65, 1
    %s67 = scalar_select %p64, %s65, %s66
    %p70 = pneg %p64
    %p71 = scmp.eq.s32.totalorder %s17, 3
    %p72 = por %p70, %p71
    %p73 = scmp.ne.s32.totalorder %s65, %s68
    %p74 = scmp.eq.s32.totalorder %s17, 0
    %p75 = por %p73, %p74
    %p76 = scmp.ne.s32.totalorder %s65, %s68
    %p77 = scmp.eq.s32.totalorder %s22, 3
    %p78 = por %p76, %p77
    %p79 = scmp.ne.s32.totalorder %s68, %s69
    %p80 = scmp.eq.s32.totalorder %s22, 0
    %p81 = por %p79, %p80
    %p82 = scmp.ne.s32.totalorder %s68, %s69
    %p83 = scmp.eq.s32.totalorder %s23, 3
    %p84 = por %p82, %p83
    %p86 = scmp.ne.s32.totalorder %s69, %s85
    %p87 = scmp.eq.s32.totalorder %s23, 0
    %p88 = por %p86, %p87
    %s90 = sadd.s32 %s89, 1
    %p93 = scmp.eq.s32.totalorder %s17, 3
    %p94 = scmp.ne.s32.totalorder %s89, %s91
    %p95 = scmp.eq.s32.totalorder %s17, 0
    %p96 = por %p94, %p95
    %p97 = scmp.ne.s32.totalorder %s89, %s91
    %p98 = scmp.eq.s32.totalorder %s22, 3
    %p99 = por %p97, %p98
    %p100 = scmp.ne.s32.totalorder %s91, %s92
    %p101 = scmp.eq.s32.totalorder %s22, 0
    %p102 = por %p100, %p101
    %p103 = scmp.ne.s32.totalorder %s91, %s92
    %p104 = scmp.eq.s32.totalorder %s23, 3
    %p105 = por %p103, %p104
    %p107 = scmp.ne.s32.totalorder %s92, %s106
    %p108 = scmp.eq.s32.totalorder %s23, 0
    %p109 = por %p107, %p108
    %s111 = sadd.s32 %s110, 1
    %p114 = scmp.eq.s32.totalorder %s17, 3
    %p115 = scmp.ne.s32.totalorder %s110, %s112
    %p116 = scmp.eq.s32.totalorder %s17, 0
    %p117 = por %p115, %p116
    %p118 = scmp.ne.s32.totalorder %s110, %s112
    %p119 = scmp.eq.s32.totalorder %s22, 3
    %p120 = por %p118, %p119
    %p121 = scmp.ne.s32.totalorder %s112, %s113
    %p122 = scmp.eq.s32.totalorder %s22, 0
    %p123 = por %p121, %p122
    %p124 = scmp.ne.s32.totalorder %s112, %s113
    %p125 = scmp.eq.s32.totalorder %s23, 3
    %p126 = por %p124, %p125
    %p128 = scmp.ne.s32.totalorder %s113, %s127
    %p129 = scmp.eq.s32.totalorder %s23, 0
    %p130 = por %p128, %p129
    %s132 = sadd.s32 %s131, 1
    %p135 = scmp.eq.s32.totalorder %s17, 3
    %p136 = scmp.ne.s32.totalorder %s131, %s133
    %p137 = scmp.eq.s32.totalorder %s17, 0
    %p138 = por %p136, %p137
    %p139 = scmp.ne.s32.totalorder %s131, %s133
    %p140 = scmp.eq.s32.totalorder %s22, 3
    %p141 = por %p139, %p140
    %p142 = scmp.ne.s32.totalorder %s133, %s134
    %p143 = scmp.eq.s32.totalorder %s22, 0
    %p144 = por %p142, %p143
    %p145 = scmp.ne.s32.totalorder %s133, %s134
    %p146 = scmp.eq.s32.totalorder %s23, 3
    %p147 = por %p145, %p146
    %p149 = scmp.ne.s32.totalorder %s134, %s148
    %p150 = scmp.eq.s32.totalorder %s23, 0
    %p151 = por %p149, %p150
    %s153 = sadd.s32 %s152, 1
    %p156 = scmp.eq.s32.totalorder %s17, 3
    %p157 = scmp.ne.s32.totalorder %s152, %s154
    %p158 = scmp.eq.s32.totalorder %s17, 0
    %p159 = por %p157, %p158
    %p160 = scmp.ne.s32.totalorder %s152, %s154
    %p161 = scmp.eq.s32.totalorder %s22, 3
    %p162 = por %p160, %p161
    %p163 = scmp.ne.s32.totalorder %s154, %s155
    %p164 = scmp.eq.s32.totalorder %s22, 0
    %p165 = por %p163, %p164
    %p166 = scmp.ne.s32.totalorder %s154, %s155
    %p167 = scmp.eq.s32.totalorder %s23, 3
    %p168 = por %p166, %p167
    %p170 = scmp.ne.s32.totalorder %s155, %s169
    %p171 = scmp.eq.s32.totalorder %s23, 0
    %p172 = por %p170, %p171
    %s174 = sadd.s32 %s173, 1
    %p177 = scmp.eq.s32.totalorder %s17, 3
    %p178 = scmp.ne.s32.totalorder %s173, %s175
    %p179 = scmp.eq.s32.totalorder %s17, 0
    %p180 = por %p178, %p179
    %p181 = scmp.ne.s32.totalorder %s173, %s175
    %p182 = scmp.eq.s32.totalorder %s22, 3
    %p183 = por %p181, %p182
    %p184 = scmp.ne.s32.totalorder %s175, %s176
    %p185 = scmp.eq.s32.totalorder %s22, 0
    %p186 = por %p184, %p185
    %p187 = scmp.ne.s32.totalorder %s175, %s176
    %p188 = scmp.eq.s32.totalorder %s23, 3
    %p189 = por %p187, %p188
    %p191 = scmp.ne.s32.totalorder %s176, %s190
    %p192 = scmp.eq.s32.totalorder %s23, 0
    %p193 = por %p191, %p192
    %s195 = sadd.s32 %s194, 1
    %p198 = scmp.eq.s32.totalorder %s17, 3
    %p199 = scmp.ne.s32.totalorder %s194, %s196
    %p200 = scmp.eq.s32.totalorder %s17, 0
    %p201 = por %p199, %p200
    %p202 = scmp.ne.s32.totalorder %s194, %s196
    %p203 = scmp.eq.s32.totalorder %s22, 3
    %p204 = por %p202, %p203
    %p205 = scmp.ne.s32.totalorder %s196, %s197
    %p206 = scmp.eq.s32.totalorder %s22, 0
    %p207 = por %p205, %p206
    %p208 = scmp.ne.s32.totalorder %s196, %s197
    %p209 = scmp.eq.s32.totalorder %s23, 3
    %p210 = por %p208, %p209
    %p212 = scmp.ne.s32.totalorder %s197, %s211
    %p213 = scmp.eq.s32.totalorder %s23, 0
    %p214 = por %p212, %p213
    %s215 = ssub.s32 %s25, %s32
    %p216 = scmp.eq.s32.totalorder %s215, 0
    %s218 = sadd.s32 %s217, 1
    %s219 = scalar_select %p216, %s217, %s218
    %p222 = pneg %p216
    %p223 = scmp.eq.s32.totalorder %s17, 3
    %p224 = por %p222, %p223
    %p225 = scmp.ne.s32.totalorder %s217, %s220
    %p226 = scmp.eq.s32.totalorder %s17, 0
    %p227 = por %p225, %p226
    %p228 = scmp.ne.s32.totalorder %s217, %s220
    %p229 = scmp.eq.s32.totalorder %s22, 3
    %p230 = por %p228, %p229
    %p231 = scmp.ne.s32.totalorder %s220, %s221
    %p232 = scmp.eq.s32.totalorder %s22, 0
    %p233 = por %p231, %p232
    %p234 = scmp.ne.s32.totalorder %s220, %s221
    %p235 = scmp.eq.s32.totalorder %s23, 3
    %p236 = por %p234, %p235
    %p238 = scmp.ne.s32.totalorder %s221, %s237
    %p239 = scmp.eq.s32.totalorder %s23, 0
    %p240 = por %p238, %p239
    %s241 = ssub.s32 %s25, %s32
    %p242 = scmp.eq.s32.totalorder %s241, 0
    %s244 = sadd.s32 %s243, 1
    %s245 = scalar_select %p242, %s243, %s244
    %p248 = pneg %p242
    %p249 = scmp.eq.s32.totalorder %s17, 3
    %p250 = por %p248, %p249
    %p251 = scmp.ne.s32.totalorder %s243, %s246
    %p252 = scmp.eq.s32.totalorder %s17, 0
    %p253 = por %p251, %p252
    %p254 = scmp.ne.s32.totalorder %s243, %s246
    %p255 = scmp.eq.s32.totalorder %s22, 3
    %p256 = por %p254, %p255
    %p257 = scmp.ne.s32.totalorder %s246, %s247
    %p258 = scmp.eq.s32.totalorder %s22, 0
    %p259 = por %p257, %p258
    %p260 = scmp.ne.s32.totalorder %s246, %s247
    %p261 = scmp.eq.s32.totalorder %s23, 3
    %p262 = por %p260, %p261
    %p264 = scmp.ne.s32.totalorder %s247, %s263
    %p265 = scmp.eq.s32.totalorder %s23, 0
    %p266 = por %p264, %p265
    %s268 = sadd.s32 %s267, 1
    %p271 = scmp.eq.s32.totalorder %s17, 3
    %p272 = scmp.ne.s32.totalorder %s267, %s269
    %p273 = scmp.eq.s32.totalorder %s17, 0
    %p274 = por %p272, %p273
    %p275 = scmp.ne.s32.totalorder %s267, %s269
    %p276 = scmp.eq.s32.totalorder %s22, 3
    %p277 = por %p275, %p276
    %p278 = scmp.ne.s32.totalorder %s269, %s270
    %p279 = scmp.eq.s32.totalorder %s22, 0
    %p280 = por %p278, %p279
    %p281 = scmp.ne.s32.totalorder %s269, %s270
    %p282 = scmp.eq.s32.totalorder %s23, 3
    %p283 = por %p281, %p282
    %p285 = scmp.ne.s32.totalorder %s270, %s284
    %p286 = scmp.eq.s32.totalorder %s23, 0
    %p287 = por %p285, %p286
    %s288 = ssub.s32 %s24, %s36
    %p289 = scmp.eq.s32.totalorder %s288, 0
    %s291 = sadd.s32 %s290, 1
    %s292 = scalar_select %p289, %s290, %s291
    %p295 = pneg %p289
    %p296 = scmp.eq.s32.totalorder %s17, 3
    %p297 = por %p295, %p296
    %p298 = scmp.ne.s32.totalorder %s290, %s293
    %p299 = scmp.eq.s32.totalorder %s17, 0
    %p300 = por %p298, %p299
    %p301 = scmp.ne.s32.totalorder %s290, %s293
    %p302 = scmp.eq.s32.totalorder %s22, 3
    %p303 = por %p301, %p302
    %p304 = scmp.ne.s32.totalorder %s293, %s294
    %p305 = scmp.eq.s32.totalorder %s22, 0
    %p306 = por %p304, %p305
    %p307 = scmp.ne.s32.totalorder %s293, %s294
    %p308 = scmp.eq.s32.totalorder %s23, 3
    %p309 = por %p307, %p308
    %p311 = scmp.ne.s32.totalorder %s294, %s310
    %p312 = scmp.eq.s32.totalorder %s23, 0
    %p313 = por %p311, %p312
    %p314 = scmp.le.s32.totalorder 1, %s17
    %p315 = scmp.lt.s32.totalorder %s17, 5
    %p316 = pnand %p314, %p315
    %p317 = pneg %p316
    // Predicated region
    $region9: #{_forward_impl.1} parent=5 // pred_check
      _
    $region10: #{_forward_impl.1} parent=5 // pred_check_branch
      %319 = sbr.rel (%p316) target = $region12
    $region11: #{_forward_impl.1} parent=5 // pred_region
      %s320 = ssub.s32 %s17, 1
      // Predicated region
      $region13: #{_forward_impl.1} parent=11 // pred_check
        %p321 = pneg %p55
      $region14: #{_forward_impl.1} parent=11 // pred_check_branch
        %323 = sbr.rel (%p321) target = $region16
      $region15: #{_forward_impl.1} parent=11 // pred_region
        %s324 = smul.u32 16, %s26
        %p325 = scmp.lt.s32.totalorder %s324, 15
        %s326 = scalar_select %p325, %s324, 15
        %s327 = smul.addr %s326, 4
        %s328 = scalar_lea.vmem %s0, %s327
        %s329 = smul.u32 16, %s26
      $region16: #{_forward_impl.1} parent=11 // pred_fallthru
        _
      // Predicated region
      $region17: #{_forward_impl.1} parent=11 // pred_check
        %p330 = pneg %p81
      $region18: #{_forward_impl.1} parent=11 // pred_check_branch
        %332 = sbr.rel (%p330) target = $region20
      $region19: #{_forward_impl.1} parent=11 // pred_region
        %s333 = smul.u32 16, %s26
        %p334 = scmp.lt.s32.totalorder %s333, 15
        %s335 = scalar_select %p334, %s333, 15
        %s336 = smul.addr %s335, 8
        %s337 = scalar_lea.vmem %s1, %s336
        %s338 = smul.u32 16, %s26
      $region20: #{_forward_impl.1} parent=11 // pred_fallthru
        _
      // Predicated region
      $region21: #{_forward_impl.1} parent=11 // pred_check
        %p339 = pneg %p102
      $region22: #{_forward_impl.1} parent=11 // pred_check_branch
        %341 = sbr.rel (%p339) target = $region24
      $region23: #{_forward_impl.1} parent=11 // pred_region
        _
      $region24: #{_forward_impl.1} parent=11 // pred_fallthru
        _
      // Predicated region
      $region25: #{_forward_impl.1} parent=11 // pred_check
        %p342 = pneg %p123
      $region26: #{_forward_impl.1} parent=11 // pred_check_branch
        %344 = sbr.rel (%p342) target = $region28
      $region27: #{_forward_impl.1} parent=11 // pred_region
        _
      $region28: #{_forward_impl.1} parent=11 // pred_fallthru
        _
      // Predicated region
      $region29: #{_forward_impl.1} parent=11 // pred_check
        %p345 = pneg %p144
      $region30: #{_forward_impl.1} parent=11 // pred_check_branch
        %347 = sbr.rel (%p345) target = $region32
      $region31: #{_forward_impl.1} parent=11 // pred_region
        _
      $region32: #{_forward_impl.1} parent=11 // pred_fallthru
        _
      // Predicated region
      $region33: #{_forward_impl.1} parent=11 // pred_check
        %p348 = pneg %p165
      $region34: #{_forward_impl.1} parent=11 // pred_check_branch
        %350 = sbr.rel (%p348) target = $region36
      $region35: #{_forward_impl.1} parent=11 // pred_region
        _
      $region36: #{_forward_impl.1} parent=11 // pred_fallthru
        _
      // Predicated region
      $region37: #{_forward_impl.1} parent=11 // pred_check
        %p351 = pneg %p186
      $region38: #{_forward_impl.1} parent=11 // pred_check_branch
        %353 = sbr.rel (%p351) target = $region40
      $region39: #{_forward_impl.1} parent=11 // pred_region
        _
      $region40: #{_forward_impl.1} parent=11 // pred_fallthru
        _
      // Predicated region
      $region41: #{_forward_impl.1} parent=11 // pred_check
        %p354 = pneg %p207
      $region42: #{_forward_impl.1} parent=11 // pred_check_branch
        %356 = sbr.rel (%p354) target = $region44
      $region43: #{_forward_impl.1} parent=11 // pred_region
        _
      $region44: #{_forward_impl.1} parent=11 // pred_fallthru
        _
      // Predicated region
      $region45: #{_forward_impl.1} parent=11 // pred_check
        %p357 = pneg %p280
      $region46: #{_forward_impl.1} parent=11 // pred_check_branch
        %359 = sbr.rel (%p357) target = $region48
      $region47: #{_forward_impl.1} parent=11 // pred_region
        _
      $region48: #{_forward_impl.1} parent=11 // pred_fallthru
        _
    $region12: #{_forward_impl.1} parent=5 // pred_fallthru
      _
    %p360 = scmp.lt.s32.totalorder %s17, 4
    // Predicated region
    $region49: #{_forward_impl.1} parent=5 // pred_check
      %p361 = pneg %p360
    $region50: #{_forward_impl.1} parent=5 // pred_check_branch
      %363 = sbr.rel (%p361) target = $region52
    $region51: #{_forward_impl.1} parent=5 // pred_region
      // Predicated region
      $region53: #{_forward_impl.1} parent=51 // pred_check
        %p364 = pneg %p227
      $region54: #{_forward_impl.1} parent=51 // pred_check_branch
        %366 = sbr.rel (%p364) target = $region56
      $region55: #{_forward_impl.1} parent=51 // pred_region
        %p367 = scmp.lt.s32.totalorder %s25, 3
        %s368 = scalar_select %p367, %s25, 3
        %s369 = smul.addr %s368, 16
        %s370 = smul.addr %s369, 4
        %s371 = scalar_lea.vmem %s8, %s370
      $region56: #{_forward_impl.1} parent=51 // pred_fallthru
        _
      // Predicated region
      $region57: #{_forward_impl.1} parent=51 // pred_check
        %p372 = pneg %p253
      $region58: #{_forward_impl.1} parent=51 // pred_check_branch
        %374 = sbr.rel (%p372) target = $region60
      $region59: #{_forward_impl.1} parent=51 // pred_region
        %p375 = scmp.lt.s32.totalorder %s25, 3
        %s376 = scalar_select %p375, %s25, 3
        %s377 = smul.addr %s376, 16
        %s378 = smul.addr %s377, 4
        %s379 = scalar_lea.vmem %s9, %s378
      $region60: #{_forward_impl.1} parent=51 // pred_fallthru
        _
    $region52: #{_forward_impl.1} parent=5 // pred_fallthru
      _
    %p380 = scmp.le.s32.totalorder 1, %s17
    %p381 = scmp.lt.s32.totalorder %s17, 5
    %p382 = pnand %p380, %p381
    %p383 = pneg %p382
    // Predicated region
    $region61: #{_forward_impl.1} parent=5 // pred_check
      _
    $region62: #{_forward_impl.1} parent=5 // pred_check_branch
      %385 = sbr.rel (%p382) target = $region64
    $region63: #{_forward_impl.1} parent=5 // pred_region
      %s386 = ssub.s32 %s17, 1
      %s387 = smul.u32 16, %s26
      %p388 = scmp.lt.s32.totalorder %s387, 15
      %s389 = scalar_select %p388, %s387, 15
      %s390 = smul.addr %s389, 4
      %s391 = scalar_lea.vmem %s0, %s390
      %p392 = pneg %p55
      %p393 = pneg %p52
      %s394 = smul.u32 16, %s26
      %p395 = scmp.lt.s32.totalorder %s394, 15
      %s396 = scalar_select %p395, %s394, 15
      %s397 = smul.addr %s396, 8
      %s398 = scalar_lea.vmem %s1, %s397
      %p399 = pneg %p81
      %p400 = pneg %p78
      %p401 = pneg %p102
      %p402 = pneg %p99
      %p403 = pneg %p123
      %p404 = pneg %p120
      %p405 = pneg %p144
      %p406 = pneg %p141
      %p407 = pneg %p165
      %p408 = pneg %p162
      %p409 = pneg %p186
      %p410 = pneg %p183
      %p411 = pneg %p207
      %p412 = pneg %p204
      %p413 = scmp.lt.s32.totalorder %s27, 3
      %s414 = scalar_select %p413, %s27, 3
      %s415 = smul.addr %s414, 16
      %s416 = smul.addr %s415, 4
      %s417 = scalar_lea.vmem %s8, %s416
      %p418 = pneg %p233
      %p419 = pneg %p230
      %p420 = scmp.lt.s32.totalorder %s27, 3
      %s421 = scalar_select %p420, %s27, 3
      %s422 = smul.addr %s421, 16
      %s423 = smul.addr %s422, 4
      %s424 = scalar_lea.vmem %s9, %s423
      %p425 = pneg %p259
      %p426 = pneg %p256
      %p427 = pneg %p280
      %p428 = pneg %p277
      %p429 = pneg %p306
      %p430 = pneg %p303
      %s431 = smul.u32 16, %s26
      %p432 = scmp.lt.s32.totalorder %s431, 15
      %s433 = scalar_select %p432, %s431, 15
      %s434 = smul.addr %s433, 8
      %s435 = scalar_lea.vmem %s11, %s434
      %s436 = smul.u32 16, %s26
      %p437 = scmp.lt.s32.totalorder %s436, 15
      %s438 = scalar_select %p437, %s436, 15
      %s439 = smul.addr %s438, 4
      %s440 = scalar_lea.vmem %s0, %s439
      %s441 = smul.u32 16, %s26
      %s442 = smul.u32 16, %s26
      %p443 = scmp.lt.s32.totalorder %s442, 15
      %s444 = scalar_select %p443, %s442, 15
      %s445 = smul.addr %s444, 8
      %s446 = scalar_lea.vmem %s1, %s445
      %s447 = smul.u32 16, %s26
      %p448 = scmp.lt.s32.totalorder %s27, 3
      %s449 = scalar_select %p448, %s27, 3
      %s450 = smul.addr %s449, 16
      %s451 = smul.addr %s450, 4
      %s452 = scalar_lea.vmem %s8, %s451
      %p453 = scmp.lt.s32.totalorder %s27, 3
      %s454 = scalar_select %p453, %s27, 3
      %s455 = smul.addr %s454, 16
      %s456 = smul.addr %s455, 4
      %s457 = scalar_lea.vmem %s9, %s456
      %s458 = smul.u32 16, %s26
      %p459 = scmp.lt.s32.totalorder %s458, 15
      %s460 = scalar_select %p459, %s458, 15
      %s461 = smul.addr %s460, 8
      %s462 = scalar_lea.vmem %s11, %s461
      %s463 = smul.u32 16, %s26
      %p465 = scmp.eq.s32.totalorder %s27, 0
      // Predicated region
      $region65: #{_forward_impl.1} parent=63 // pred_check
        %p466 = pneg %p465
      $region66: #{_forward_impl.1} parent=63 // pred_check_branch
        %468 = sbr.rel (%p466) target = $region68
      $region67: #{_forward_impl.1} parent=63 // pred_region
        %v469 = vld [vmem:[%s440] sm:$0xf]
        %v470 = vld [vmem:[%s440 + $0x4] sm:$0xf]
        %v471 = vld [vmem:[%s440 + $0x8] sm:$0xf]
        %v472 = vld [vmem:[%s440 + $0xc] sm:$0xf]
        %v473 = vld [vmem:[%s440 + $0x10] sm:$0xf]
        %v474 = vld [vmem:[%s440 + $0x14] sm:$0xf]
        %v475 = vld [vmem:[%s440 + $0x18] sm:$0xf]
        %v476 = vld [vmem:[%s440 + $0x1c] sm:$0xf]
        %v477 = vld [vmem:[%s440 + $0x20] sm:$0xf]
        %v478 = vld [vmem:[%s440 + $0x24] sm:$0xf]
        %v479 = vld [vmem:[%s440 + $0x28] sm:$0xf]
        %v480 = vld [vmem:[%s440 + $0x2c] sm:$0xf]
        %v481 = vld [vmem:[%s440 + $0x30] sm:$0xf]
        %v482 = vld [vmem:[%s440 + $0x34] sm:$0xf]
        %v483 = vld [vmem:[%s440 + $0x38] sm:$0xf]
        %v484 = vld [vmem:[%s440 + $0x3c] sm:$0xf]
        %v485 = vld [vmem:[%s2] sm:$0xf]
        %v486 = vld [vmem:[%s2 + $0x4] sm:$0xf]
        %v487 = vld [vmem:[%s2 + $0x8] sm:$0xf]
        %v488 = vld [vmem:[%s2 + $0xc] sm:$0xf]
        %v489 = vld [vmem:[%s2 + $0x10] sm:$0xf]
        %v490 = vld [vmem:[%s2 + $0x14] sm:$0xf]
        %v491 = vld [vmem:[%s2 + $0x18] sm:$0xf]
        %v492 = vld [vmem:[%s2 + $0x1c] sm:$0xf]
        %v493 = vld [vmem:[%s2 + $0x20] sm:$0xf]
        %v494 = vld [vmem:[%s2 + $0x24] sm:$0xf]
        %v495 = vld [vmem:[%s2 + $0x28] sm:$0xf]
        %v496 = vld [vmem:[%s2 + $0x2c] sm:$0xf]
        %v497 = vld [vmem:[%s2 + $0x30] sm:$0xf]
        %v498 = vld [vmem:[%s2 + $0x34] sm:$0xf]
        %v499 = vld [vmem:[%s2 + $0x38] sm:$0xf]
        %v500 = vld [vmem:[%s2 + $0x3c] sm:$0xf]
        %v517 = vunpack.c.l.b16 %v469
        %v518 = vunpack.c.l.b16 %v470
        %v519 = vunpack.c.l.b16 %v471
        %v520 = vunpack.c.l.b16 %v472
        %v521 = vunpack.c.l.b16 %v473
        %v522 = vunpack.c.l.b16 %v474
        %v523 = vunpack.c.l.b16 %v475
        %v524 = vunpack.c.l.b16 %v476
        %v525 = vunpack.c.l.b16 %v477
        %v526 = vunpack.c.l.b16 %v478
        %v527 = vunpack.c.l.b16 %v479
        %v528 = vunpack.c.l.b16 %v480
        %v529 = vunpack.c.l.b16 %v481
        %v530 = vunpack.c.l.b16 %v482
        %v531 = vunpack.c.l.b16 %v483
        %v532 = vunpack.c.l.b16 %v484
        %v533 = vpack.c.b16 %v518, %v517
        %v534 = vpack.c.b16 %v520, %v519
        %v535 = vpack.c.b16 %v522, %v521
        %v536 = vpack.c.b16 %v524, %v523
        %v537 = vpack.c.b16 %v526, %v525
        %v538 = vpack.c.b16 %v528, %v527
        %v539 = vpack.c.b16 %v530, %v529
        %v540 = vpack.c.b16 %v532, %v531
        %v565 = vunpack.c.l.b16 %v485
        %v566 = vunpack.c.l.b16 %v486
        %v567 = vunpack.c.l.b16 %v487
        %v568 = vunpack.c.l.b16 %v488
        %v569 = vunpack.c.l.b16 %v489
        %v570 = vunpack.c.l.b16 %v490
        %v571 = vunpack.c.l.b16 %v491
        %v572 = vunpack.c.l.b16 %v492
        %v573 = vunpack.c.l.b16 %v493
        %v574 = vunpack.c.l.b16 %v494
        %v575 = vunpack.c.l.b16 %v495
        %v576 = vunpack.c.l.b16 %v496
        %v577 = vunpack.c.l.b16 %v497
        %v578 = vunpack.c.l.b16 %v498
        %v579 = vunpack.c.l.b16 %v499
        %v580 = vunpack.c.l.b16 %v500
        %v581 = vpack.c.b16 %v566, %v565
        %v582 = vpack.c.b16 %v568, %v567
        %v583 = vpack.c.b16 %v570, %v569
        %v584 = vpack.c.b16 %v572, %v571
        %v585 = vpack.c.b16 %v574, %v573
        %v586 = vpack.c.b16 %v576, %v575
        %v587 = vpack.c.b16 %v578, %v577
        %v588 = vpack.c.b16 %v580, %v579
        %597 = vmatprep.subr.bf16.mxu0 0
        %598 = vmatpush1.bf16.msra.mxu0 %v581
        %599 = vmatprep.subr.bf16.mxu0 0
        %600 = vmatpush1.bf16.msra.mxu0 %v582
        %601 = vmatprep.subr.bf16.mxu0 0
        %602 = vmatpush1.bf16.msra.mxu0 %v583
        %603 = vmatprep.subr.bf16.mxu0 0
        %604 = vmatpush1.bf16.msra.mxu0 %v584
        %605 = vmatprep.subr.bf16.mxu0 0
        %606 = vmatpush1.bf16.msra.mxu0 %v585
        %607 = vmatprep.subr.bf16.mxu0 0
        %608 = vmatpush1.bf16.msra.mxu0 %v586
        %609 = vmatprep.subr.bf16.mxu0 0
        %610 = vmatpush1.bf16.msra.mxu0 %v587
        %611 = vmatprep.subr.bf16.mxu0 0
        %612 = vmatpush1.bf16.msra.mxu0 %v588
        %613 = vmatprep.subr.bf16.mxu0 0
        %614 = vmatpush1.bf16.msra.mxu0 0
        %615 = vmatprep.subr.bf16.mxu0 0
        %616 = vmatpush1.bf16.msra.mxu0 0
        %617 = vmatprep.subr.bf16.mxu0 0
        %618 = vmatpush1.bf16.msra.mxu0 0
        %619 = vmatprep.subr.bf16.mxu0 0
        %620 = vmatpush1.bf16.msra.mxu0 0
        %621 = vmatprep.subr.bf16.mxu0 0
        %622 = vmatpush1.bf16.msra.mxu0 0
        %623 = vmatprep.subr.bf16.mxu0 0
        %624 = vmatpush1.bf16.msra.mxu0 0
        %625 = vmatprep.subr.bf16.mxu0 0
        %626 = vmatpush1.bf16.msra.mxu0 0
        %627 = vmatprep.subr.bf16.mxu0 0
        %628 = vmatpush1.bf16.msra.mxu0 0
        %629 = vmatprep.mubr.bf16.mxu0 0
        %630 = vmatmul.mubr.bf16.gmra.mrb[0].mxu0 %v533
        %v631 = vpop.f32.mrb[0].mxu0
        %v632 = vadd.f32 0.0, %v631
        %v633 = vpop.f32.mrb[0].mxu0
        %v634 = vpop.f32.mrb[0].mxu0
        %v635 = vadd.f32 0.0, %v634
        %v636 = vpop.f32.mrb[0].mxu0
        %637 = vmatprep.mubr.bf16.mxu0 0
        %638 = vmatmul.mubr.bf16.gmra.mrb[0].mxu0 %v534
        %v639 = vpop.f32.mrb[0].mxu0
        %v640 = vadd.f32 0.0, %v639
        %v641 = vpop.f32.mrb[0].mxu0
        %v642 = vpop.f32.mrb[0].mxu0
        %v643 = vadd.f32 0.0, %v642
        %v644 = vpop.f32.mrb[0].mxu0
        %645 = vmatprep.mubr.bf16.mxu0 0
        %646 = vmatmul.mubr.bf16.gmra.mrb[0].mxu0 %v535
        %v647 = vpop.f32.mrb[0].mxu0
        %v648 = vadd.f32 0.0, %v647
        %v649 = vpop.f32.mrb[0].mxu0
        %v650 = vpop.f32.mrb[0].mxu0
        %v651 = vadd.f32 0.0, %v650
        %v652 = vpop.f32.mrb[0].mxu0
        %653 = vmatprep.mubr.bf16.mxu0 0
        %654 = vmatmul.mubr.bf16.gmra.mrb[0].mxu0 %v536
        %v655 = vpop.f32.mrb[0].mxu0
        %v656 = vadd.f32 0.0, %v655
        %v657 = vpop.f32.mrb[0].mxu0
        %v658 = vpop.f32.mrb[0].mxu0
        %v659 = vadd.f32 0.0, %v658
        %v660 = vpop.f32.mrb[0].mxu0
        %661 = vmatprep.mubr.bf16.mxu0 0
        %662 = vmatmul.mubr.bf16.gmra.mrb[0].mxu0 %v537
        %v663 = vpop.f32.mrb[0].mxu0
        %v664 = vadd.f32 0.0, %v663
        %v665 = vpop.f32.mrb[0].mxu0
        %v666 = vpop.f32.mrb[0].mxu0
        %v667 = vadd.f32 0.0, %v666
        %v668 = vpop.f32.mrb[0].mxu0
        %669 = vmatprep.mubr.bf16.mxu0 0
        %670 = vmatmul.mubr.bf16.gmra.mrb[0].mxu0 %v538
        %v671 = vpop.f32.mrb[0].mxu0
        %v672 = vadd.f32 0.0, %v671
        %v673 = vpop.f32.mrb[0].mxu0
        %v674 = vpop.f32.mrb[0].mxu0
        %v675 = vadd.f32 0.0, %v674
        %v676 = vpop.f32.mrb[0].mxu0
        %677 = vmatprep.mubr.bf16.mxu0 0
        %678 = vmatmul.mubr.bf16.gmra.mrb[0].mxu0 %v539
        %v679 = vpop.f32.mrb[0].mxu0
        %v680 = vadd.f32 0.0, %v679
        %v681 = vpop.f32.mrb[0].mxu0
        %v682 = vpop.f32.mrb[0].mxu0
        %v683 = vadd.f32 0.0, %v682
        %v684 = vpop.f32.mrb[0].mxu0
        %685 = vmatprep.mubr.bf16.mxu0 0
        %686 = vmatmul.mubr.bf16.gmra.mrb[0].mxu0 %v540
        %v687 = vpop.f32.mrb[0].mxu0
        %v688 = vadd.f32 0.0, %v687
        %v689 = vpop.f32.mrb[0].mxu0
        %v690 = vpop.f32.mrb[0].mxu0
        %v691 = vadd.f32 0.0, %v690
        %v692 = vpop.f32.mrb[0].mxu0
        %693 = vdwg.mxu0
        %v694 = vld [vmem:[%s446] sm:$0xff]
        %v695 = vld [vmem:[%s446 + $0x8] sm:$0xff]
        %v696 = vld [vmem:[%s446 + $0x10] sm:$0xff]
        %v697 = vld [vmem:[%s446 + $0x18] sm:$0xff]
        %v698 = vld [vmem:[%s446 + $0x20] sm:$0xff]
        %v699 = vld [vmem:[%s446 + $0x28] sm:$0xff]
        %v700 = vld [vmem:[%s446 + $0x30] sm:$0xff]
        %v701 = vld [vmem:[%s446 + $0x38] sm:$0xff]
        %v702 = vld [vmem:[%s446 + $0x40] sm:$0xff]
        %v703 = vld [vmem:[%s446 + $0x48] sm:$0xff]
        %v704 = vld [vmem:[%s446 + $0x50] sm:$0xff]
        %v705 = vld [vmem:[%s446 + $0x58] sm:$0xff]
        %v706 = vld [vmem:[%s446 + $0x60] sm:$0xff]
        %v707 = vld [vmem:[%s446 + $0x68] sm:$0xff]
        %v708 = vld [vmem:[%s446 + $0x70] sm:$0xff]
        %v709 = vld [vmem:[%s446 + $0x78] sm:$0xff]
        %v710 = vlaneseq
        %v711 = vand.u32 %v710, 127
        %vm712 = vcmp.lt.s32.totalorder %v711, 4
        %713 = vadd.xlane.f32.xlu0 %v694
        %v714 = vpop.xlane.xlu0 %713
        %715 = vadd.xlane.f32.xlu0 %v695
        %v716 = vpop.xlane.xlu0 %715
        %717 = vadd.xlane.f32.xlu0 %v696
        %v718 = vpop.xlane.xlu0 %717
        %719 = vadd.xlane.f32.xlu0 %v697
        %v720 = vpop.xlane.xlu0 %719
        %721 = vadd.xlane.f32.xlu0 %v698
        %v722 = vpop.xlane.xlu0 %721
        %723 = vadd.xlane.f32.xlu0 %v699
        %v724 = vpop.xlane.xlu0 %723
        %725 = vadd.xlane.f32.xlu0 %v700
        %v726 = vpop.xlane.xlu0 %725
        %727 = vadd.xlane.f32.xlu0 %v701
        %v728 = vpop.xlane.xlu0 %727
        %729 = vadd.xlane.f32.xlu0 %v702
        %v730 = vpop.xlane.xlu0 %729
        %731 = vadd.xlane.f32.xlu0 %v703
        %v732 = vpop.xlane.xlu0 %731
        %733 = vadd.xlane.f32.xlu0 %v704
        %v734 = vpop.xlane.xlu0 %733
        %735 = vadd.xlane.f32.xlu0 %v705
        %v736 = vpop.xlane.xlu0 %735
        %737 = vadd.xlane.f32.xlu0 %v706
        %v738 = vpop.xlane.xlu0 %737
        %739 = vadd.xlane.f32.xlu0 %v707
        %v740 = vpop.xlane.xlu0 %739
        %741 = vadd.xlane.f32.xlu0 %v708
        %v742 = vpop.xlane.xlu0 %741
        %743 = vadd.xlane.f32.xlu0 %v709
        %v744 = vpop.xlane.xlu0 %743
        %v745 = vmul.f32 %v714, 0.25
        %v746 = vmul.f32 %v716, 0.25
        %v747 = vmul.f32 %v718, 0.25
        %v748 = vmul.f32 %v720, 0.25
        %v749 = vmul.f32 %v722, 0.25
        %v750 = vmul.f32 %v724, 0.25
        %v751 = vmul.f32 %v726, 0.25
        %v752 = vmul.f32 %v728, 0.25
        %v753 = vmul.f32 %v730, 0.25
        %v754 = vmul.f32 %v732, 0.25
        %v755 = vmul.f32 %v734, 0.25
        %v756 = vmul.f32 %v736, 0.25
        %v757 = vmul.f32 %v738, 0.25
        %v758 = vmul.f32 %v740, 0.25
        %v759 = vmul.f32 %v742, 0.25
        %v760 = vmul.f32 %v744, 0.25
        %v761 = vsub.f32 %v694, %v745
        %v762 = vsub.f32 %v695, %v746
        %v763 = vsub.f32 %v696, %v747
        %v764 = vsub.f32 %v697, %v748
        %v765 = vsub.f32 %v698, %v749
        %v766 = vsub.f32 %v699, %v750
        %v767 = vsub.f32 %v700, %v751
        %v768 = vsub.f32 %v701, %v752
        %v769 = vsub.f32 %v702, %v753
        %v770 = vsub.f32 %v703, %v754
        %v771 = vsub.f32 %v704, %v755
        %v772 = vsub.f32 %v705, %v756
        %v773 = vsub.f32 %v706, %v757
        %v774 = vsub.f32 %v707, %v758
        %v775 = vsub.f32 %v708, %v759
        %v776 = vsub.f32 %v709, %v760
        %v777 = vsel %vm712, %v761, 0.0
        %v778 = vsel %vm712, %v762, 0.0
        %v779 = vsel %vm712, %v763, 0.0
        %v780 = vsel %vm712, %v764, 0.0
        %v781 = vsel %vm712, %v765, 0.0
        %v782 = vsel %vm712, %v766, 0.0
        %v783 = vsel %vm712, %v767, 0.0
        %v784 = vsel %vm712, %v768, 0.0
        %v785 = vsel %vm712, %v769, 0.0
        %v786 = vsel %vm712, %v770, 0.0
        %v787 = vsel %vm712, %v771, 0.0
        %v788 = vsel %vm712, %v772, 0.0
        %v789 = vsel %vm712, %v773, 0.0
        %v790 = vsel %vm712, %v774, 0.0
        %v791 = vsel %vm712, %v775, 0.0
        %v792 = vsel %vm712, %v776, 0.0
        %v793 = vmul.f32 %v777, %v777
        %v794 = vmul.f32 %v778, %v778
        %v795 = vmul.f32 %v779, %v779
        %v796 = vmul.f32 %v780, %v780
        %v797 = vmul.f32 %v781, %v781
        %v798 = vmul.f32 %v782, %v782
        %v799 = vmul.f32 %v783, %v783
        %v800 = vmul.f32 %v784, %v784
        %v801 = vmul.f32 %v785, %v785
        %v802 = vmul.f32 %v786, %v786
        %v803 = vmul.f32 %v787, %v787
        %v804 = vmul.f32 %v788, %v788
        %v805 = vmul.f32 %v789, %v789
        %v806 = vmul.f32 %v790, %v790
        %v807 = vmul.f32 %v791, %v791
        %v808 = vmul.f32 %v792, %v792
        %809 = vadd.xlane.f32.xlu0 %v793
        %v810 = vpop.xlane.xlu0 %809
        %811 = vadd.xlane.f32.xlu0 %v794
        %v812 = vpop.xlane.xlu0 %811
        %813 = vadd.xlane.f32.xlu0 %v795
        %v814 = vpop.xlane.xlu0 %813
        %815 = vadd.xlane.f32.xlu0 %v796
        %v816 = vpop.xlane.xlu0 %815
        %817 = vadd.xlane.f32.xlu0 %v797
        %v818 = vpop.xlane.xlu0 %817
        %819 = vadd.xlane.f32.xlu0 %v798
        %v820 = vpop.xlane.xlu0 %819
        %821 = vadd.xlane.f32.xlu0 %v799
        %v822 = vpop.xlane.xlu0 %821
        %823 = vadd.xlane.f32.xlu0 %v800
        %v824 = vpop.xlane.xlu0 %823
        %825 = vadd.xlane.f32.xlu0 %v801
        %v826 = vpop.xlane.xlu0 %825
        %827 = vadd.xlane.f32.xlu0 %v802
        %v828 = vpop.xlane.xlu0 %827
        %829 = vadd.xlane.f32.xlu0 %v803
        %v830 = vpop.xlane.xlu0 %829
        %831 = vadd.xlane.f32.xlu0 %v804
        %v832 = vpop.xlane.xlu0 %831
        %833 = vadd.xlane.f32.xlu0 %v805
        %v834 = vpop.xlane.xlu0 %833
        %835 = vadd.xlane.f32.xlu0 %v806
        %v836 = vpop.xlane.xlu0 %835
        %837 = vadd.xlane.f32.xlu0 %v807
        %v838 = vpop.xlane.xlu0 %837
        %839 = vadd.xlane.f32.xlu0 %v808
        %v840 = vpop.xlane.xlu0 %839
        %v841 = vmul.f32 %v810, 0.25
        %v842 = vmul.f32 %v812, 0.25
        %v843 = vmul.f32 %v814, 0.25
        %v844 = vmul.f32 %v816, 0.25
        %v845 = vmul.f32 %v818, 0.25
        %v846 = vmul.f32 %v820, 0.25
        %v847 = vmul.f32 %v822, 0.25
        %v848 = vmul.f32 %v824, 0.25
        %v849 = vmul.f32 %v826, 0.25
        %v850 = vmul.f32 %v828, 0.25
        %v851 = vmul.f32 %v830, 0.25
        %v852 = vmul.f32 %v832, 0.25
        %v853 = vmul.f32 %v834, 0.25
        %v854 = vmul.f32 %v836, 0.25
        %v855 = vmul.f32 %v838, 0.25
        %v856 = vmul.f32 %v840, 0.25
        %v857 = vadd.f32 %v841, 1e-05
        %v858 = vadd.f32 %v842, 1e-05
        %v859 = vadd.f32 %v843, 1e-05
        %v860 = vadd.f32 %v844, 1e-05
        %v861 = vadd.f32 %v845, 1e-05
        %v862 = vadd.f32 %v846, 1e-05
        %v863 = vadd.f32 %v847, 1e-05
        %v864 = vadd.f32 %v848, 1e-05
        %v865 = vadd.f32 %v849, 1e-05
        %v866 = vadd.f32 %v850, 1e-05
        %v867 = vadd.f32 %v851, 1e-05
        %v868 = vadd.f32 %v852, 1e-05
        %v869 = vadd.f32 %v853, 1e-05
        %v870 = vadd.f32 %v854, 1e-05
        %v871 = vadd.f32 %v855, 1e-05
        %v872 = vadd.f32 %v856, 1e-05
        %v873 = vrsqrt.pop %v857
        %v874 = vrsqrt.pop %v858
        %v875 = vrsqrt.pop %v859
        %v876 = vrsqrt.pop %v860
        %v877 = vrsqrt.pop %v861
        %v878 = vrsqrt.pop %v862
        %v879 = vrsqrt.pop %v863
        %v880 = vrsqrt.pop %v864
        %v881 = vrsqrt.pop %v865
        %v882 = vrsqrt.pop %v866
        %v883 = vrsqrt.pop %v867
        %v884 = vrsqrt.pop %v868
        %v885 = vrsqrt.pop %v869
        %v886 = vrsqrt.pop %v870
        %v887 = vrsqrt.pop %v871
        %v888 = vrsqrt.pop %v872
        %v889 = vmul.f32 %v777, %v873
        %v890 = vmul.f32 %v778, %v874
        %v891 = vmul.f32 %v779, %v875
        %v892 = vmul.f32 %v780, %v876
        %v893 = vmul.f32 %v781, %v877
        %v894 = vmul.f32 %v782, %v878
        %v895 = vmul.f32 %v783, %v879
        %v896 = vmul.f32 %v784, %v880
        %v897 = vmul.f32 %v785, %v881
        %v898 = vmul.f32 %v786, %v882
        %v899 = vmul.f32 %v787, %v883
        %v900 = vmul.f32 %v788, %v884
        %v901 = vmul.f32 %v789, %v885
        %v902 = vmul.f32 %v790, %v886
        %v903 = vmul.f32 %v791, %v887
        %v904 = vmul.f32 %v792, %v888
        %v905 = vld [vmem:[%s3] sm:$0x1]
        %v907 = vlaneseq
        %v908 = vshrl.u32 %v907, 7
        %v909 = vsub.s32 0, %v908
        %v910 = vrot.slane %v905, %v909
        %v912 = vmul.f32 %v889, %v910
        %v913 = vmul.f32 %v890, %v910
        %v914 = vmul.f32 %v891, %v910
        %v915 = vmul.f32 %v892, %v910
        %v916 = vmul.f32 %v893, %v910
        %v917 = vmul.f32 %v894, %v910
        %v918 = vmul.f32 %v895, %v910
        %v919 = vmul.f32 %v896, %v910
        %v920 = vmul.f32 %v897, %v910
        %v921 = vmul.f32 %v898, %v910
        %v922 = vmul.f32 %v899, %v910
        %v923 = vmul.f32 %v900, %v910
        %v924 = vmul.f32 %v901, %v910
        %v925 = vmul.f32 %v902, %v910
        %v926 = vmul.f32 %v903, %v910
        %v927 = vmul.f32 %v904, %v910
        %v928 = vld [vmem:[%s4] sm:$0x1]
        %v930 = vlaneseq
        %v931 = vshrl.u32 %v930, 7
        %v932 = vsub.s32 0, %v931
        %v933 = vrot.slane %v928, %v932
        %v935 = vadd.f32 %v912, %v933
        %v936 = vadd.f32 %v913, %v933
        %v937 = vadd.f32 %v914, %v933
        %v938 = vadd.f32 %v915, %v933
        %v939 = vadd.f32 %v916, %v933
        %v940 = vadd.f32 %v917, %v933
        %v941 = vadd.f32 %v918, %v933
        %v942 = vadd.f32 %v919, %v933
        %v943 = vadd.f32 %v920, %v933
        %v944 = vadd.f32 %v921, %v933
        %v945 = vadd.f32 %v922, %v933
        %v946 = vadd.f32 %v923, %v933
        %v947 = vadd.f32 %v924, %v933
        %v948 = vadd.f32 %v925, %v933
        %v949 = vadd.f32 %v926, %v933
        %v950 = vadd.f32 %v927, %v933
        %v951 = vpack.c.bf16 %v936, %v935
        %v952 = vpack.c.bf16 %v938, %v937
        %v953 = vpack.c.bf16 %v940, %v939
        %v954 = vpack.c.bf16 %v942, %v941
        %v955 = vpack.c.bf16 %v944, %v943
        %v956 = vpack.c.bf16 %v946, %v945
        %v957 = vpack.c.bf16 %v948, %v947
        %v958 = vpack.c.bf16 %v950, %v949
        %v959 = vld [vmem:[%s5] sm:$0xf]
        %v960 = vld [vmem:[%s5 + $0x4] sm:$0xf]
        %v961 = vld [vmem:[%s5 + $0x8] sm:$0xf]
        %v962 = vld [vmem:[%s5 + $0xc] sm:$0xf]
        %v963 = vld [vmem:[%s5 + $0x10] sm:$0xf]
        %v964 = vld [vmem:[%s5 + $0x14] sm:$0xf]
        %v965 = vld [vmem:[%s5 + $0x18] sm:$0xf]
        %v966 = vld [vmem:[%s5 + $0x1c] sm:$0xf]
        %v967 = vld [vmem:[%s5 + $0x20] sm:$0xf]
        %v968 = vld [vmem:[%s5 + $0x24] sm:$0xf]
        %v969 = vld [vmem:[%s5 + $0x28] sm:$0xf]
        %v970 = vld [vmem:[%s5 + $0x2c] sm:$0xf]
        %v971 = vld [vmem:[%s5 + $0x30] sm:$0xf]
        %v972 = vld [vmem:[%s5 + $0x34] sm:$0xf]
        %v973 = vld [vmem:[%s5 + $0x38] sm:$0xf]
        %v974 = vld [vmem:[%s5 + $0x3c] sm:$0xf]
        %v991 = vunpack.c.l.b16 %v959
        %v992 = vunpack.c.l.b16 %v960
        %v993 = vunpack.c.l.b16 %v961
        %v994 = vunpack.c.l.b16 %v962
        %v995 = vunpack.c.l.b16 %v963
        %v996 = vunpack.c.l.b16 %v964
        %v997 = vunpack.c.l.b16 %v965
        %v998 = vunpack.c.l.b16 %v966
        %v999 = vunpack.c.l.b16 %v967
        %v1000 = vunpack.c.l.b16 %v968
        %v1001 = vunpack.c.l.b16 %v969
        %v1002 = vunpack.c.l.b16 %v970
        %v1003 = vunpack.c.l.b16 %v971
        %v1004 = vunpack.c.l.b16 %v972
        %v1005 = vunpack.c.l.b16 %v973
        %v1006 = vunpack.c.l.b16 %v974
        %v1007 = vpack.c.b16 %v992, %v991
        %v1008 = vpack.c.b16 %v994, %v993
        %v1009 = vpack.c.b16 %v996, %v995
        %v1010 = vpack.c.b16 %v998, %v997
        %v1011 = vpack.c.b16 %v1000, %v999
        %v1012 = vpack.c.b16 %v1002, %v1001
        %v1013 = vpack.c.b16 %v1004, %v1003
        %v1014 = vpack.c.b16 %v1006, %v1005
        %1023 = vmatprep.subr.bf16.mxu0 0
        %1024 = vmatpush1.bf16.msra.mxu0 %v1007
        %1025 = vmatprep.subr.bf16.mxu0 0
        %1026 = vmatpush1.bf16.msra.mxu0 %v1008
        %1027 = vmatprep.subr.bf16.mxu0 0
        %1028 = vmatpush1.bf16.msra.mxu0 %v1009
        %1029 = vmatprep.subr.bf16.mxu0 0
        %1030 = vmatpush1.bf16.msra.mxu0 %v1010
        %1031 = vmatprep.subr.bf16.mxu0 0
        %1032 = vmatpush1.bf16.msra.mxu0 %v1011
        %1033 = vmatprep.subr.bf16.mxu0 0
        %1034 = vmatpush1.bf16.msra.mxu0 %v1012
        %1035 = vmatprep.subr.bf16.mxu0 0
        %1036 = vmatpush1.bf16.msra.mxu0 %v1013
        %1037 = vmatprep.subr.bf16.mxu0 0
        %1038 = vmatpush1.bf16.msra.mxu0 %v1014
        %1039 = vmatprep.subr.bf16.mxu0 0
        %1040 = vmatpush1.bf16.msra.mxu0 0
        %1041 = vmatprep.subr.bf16.mxu0 0
        %1042 = vmatpush1.bf16.msra.mxu0 0
        %1043 = vmatprep.subr.bf16.mxu0 0
        %1044 = vmatpush1.bf16.msra.mxu0 0
        %1045 = vmatprep.subr.bf16.mxu0 0
        %1046 = vmatpush1.bf16.msra.mxu0 0
        %1047 = vmatprep.subr.bf16.mxu0 0
        %1048 = vmatpush1.bf16.msra.mxu0 0
        %1049 = vmatprep.subr.bf16.mxu0 0
        %1050 = vmatpush1.bf16.msra.mxu0 0
        %1051 = vmatprep.subr.bf16.mxu0 0
        %1052 = vmatpush1.bf16.msra.mxu0 0
        %1053 = vmatprep.subr.bf16.mxu0 0
        %1054 = vmatpush1.bf16.msra.mxu0 0
        %1055 = vmatprep.mubr.bf16.mxu0 0
        %1056 = vmatmul.mubr.bf16.gmra.mrb[0].mxu0 %v951
        %v1057 = vpop.f32.mrb[0].mxu0
        %v1058 = vadd.f32 0.0, %v1057
        %v1059 = vpop.f32.mrb[0].mxu0
        %v1060 = vpop.f32.mrb[0].mxu0
        %v1061 = vadd.f32 0.0, %v1060
        %v1062 = vpop.f32.mrb[0].mxu0
        %1063 = vmatprep.mubr.bf16.mxu0 0
        %1064 = vmatmul.mubr.bf16.gmra.mrb[0].mxu0 %v952
        %v1065 = vpop.f32.mrb[0].mxu0
        %v1066 = vadd.f32 0.0, %v1065
        %v1067 = vpop.f32.mrb[0].mxu0
        %v1068 = vpop.f32.mrb[0].mxu0
        %v1069 = vadd.f32 0.0, %v1068
        %v1070 = vpop.f32.mrb[0].mxu0
        %1071 = vmatprep.mubr.bf16.mxu0 0
        %1072 = vmatmul.mubr.bf16.gmra.mrb[0].mxu0 %v953
        %v1073 = vpop.f32.mrb[0].mxu0
        %v1074 = vadd.f32 0.0, %v1073
        %v1075 = vpop.f32.mrb[0].mxu0
        %v1076 = vpop.f32.mrb[0].mxu0
        %v1077 = vadd.f32 0.0, %v1076
        %v1078 = vpop.f32.mrb[0].mxu0
        %1079 = vmatprep.mubr.bf16.mxu0 0
        %1080 = vmatmul.mubr.bf16.gmra.mrb[0].mxu0 %v954
        %v1081 = vpop.f32.mrb[0].mxu0
        %v1082 = vadd.f32 0.0, %v1081
        %v1083 = vpop.f32.mrb[0].mxu0
        %v1084 = vpop.f32.mrb[0].mxu0
        %v1085 = vadd.f32 0.0, %v1084
        %v1086 = vpop.f32.mrb[0].mxu0
        %1087 = vmatprep.mubr.bf16.mxu0 0
        %1088 = vmatmul.mubr.bf16.gmra.mrb[0].mxu0 %v955
        %v1089 = vpop.f32.mrb[0].mxu0
        %v1090 = vadd.f32 0.0, %v1089
        %v1091 = vpop.f32.mrb[0].mxu0
        %v1092 = vpop.f32.mrb[0].mxu0
        %v1093 = vadd.f32 0.0, %v1092
        %v1094 = vpop.f32.mrb[0].mxu0
        %1095 = vmatprep.mubr.bf16.mxu0 0
        %1096 = vmatmul.mubr.bf16.gmra.mrb[0].mxu0 %v956
        %v1097 = vpop.f32.mrb[0].mxu0
        %v1098 = vadd.f32 0.0, %v1097
        %v1099 = vpop.f32.mrb[0].mxu0
        %v1100 = vpop.f32.mrb[0].mxu0
        %v1101 = vadd.f32 0.0, %v1100
        %v1102 = vpop.f32.mrb[0].mxu0
        %1103 = vmatprep.mubr.bf16.mxu0 0
        %1104 = vmatmul.mubr.bf16.gmra.mrb[0].mxu0 %v957
        %v1105 = vpop.f32.mrb[0].mxu0
        %v1106 = vadd.f32 0.0, %v1105
        %v1107 = vpop.f32.mrb[0].mxu0
        %v1108 = vpop.f32.mrb[0].mxu0
        %v1109 = vadd.f32 0.0, %v1108
        %v1110 = vpop.f32.mrb[0].mxu0
        %1111 = vmatprep.mubr.bf16.mxu0 0
        %1112 = vmatmul.mubr.bf16.gmra.mrb[0].mxu0 %v958
        %v1113 = vpop.f32.mrb[0].mxu0
        %v1114 = vadd.f32 0.0, %v1113
        %v1115 = vpop.f32.mrb[0].mxu0
        %v1116 = vpop.f32.mrb[0].mxu0
        %v1117 = vadd.f32 0.0, %v1116
        %v1118 = vpop.f32.mrb[0].mxu0
        %1119 = vdwg.mxu0
        %v1120 = vpack.c.bf16 %v635, %v632
        %v1121 = vpack.c.bf16 %v643, %v640
        %v1122 = vpack.c.bf16 %v651, %v648
        %v1123 = vpack.c.bf16 %v659, %v656
        %v1124 = vpack.c.bf16 %v667, %v664
        %v1125 = vpack.c.bf16 %v675, %v672
        %v1126 = vpack.c.bf16 %v683, %v680
        %v1127 = vpack.c.bf16 %v691, %v688
        %v1128 = vld [vmem:[%s6] sm:$0xf]
        %v1129 = vld [vmem:[%s6 + $0x4] sm:$0xf]
        %v1130 = vld [vmem:[%s6 + $0x8] sm:$0xf]
        %v1131 = vld [vmem:[%s6 + $0xc] sm:$0xf]
        %v1132 = vld [vmem:[%s6 + $0x10] sm:$0xf]
        %v1133 = vld [vmem:[%s6 + $0x14] sm:$0xf]
        %v1134 = vld [vmem:[%s6 + $0x18] sm:$0xf]
        %v1135 = vld [vmem:[%s6 + $0x1c] sm:$0xf]
        %v1136 = vld [vmem:[%s6 + $0x20] sm:$0xf]
        %v1137 = vld [vmem:[%s6 + $0x24] sm:$0xf]
        %v1138 = vld [vmem:[%s6 + $0x28] sm:$0xf]
        %v1139 = vld [vmem:[%s6 + $0x2c] sm:$0xf]
        %v1140 = vld [vmem:[%s6 + $0x30] sm:$0xf]
        %v1141 = vld [vmem:[%s6 + $0x34] sm:$0xf]
        %v1142 = vld [vmem:[%s6 + $0x38] sm:$0xf]
        %v1143 = vld [vmem:[%s6 + $0x3c] sm:$0xf]
        %v1144 = vpack.c.bf16 %v1061, %v1058
        %v1145 = vpack.c.bf16 %v1069, %v1066
        %v1146 = vpack.c.bf16 %v1077, %v1074
        %v1147 = vpack.c.bf16 %v1085, %v1082
        %v1148 = vpack.c.bf16 %v1093, %v1090
        %v1149 = vpack.c.bf16 %v1101, %v1098
        %v1150 = vpack.c.bf16 %v1109, %v1106
        %v1151 = vpack.c.bf16 %v1117, %v1114
        %v1152 = vld [vmem:[%s7] sm:$0xf]
        %v1153 = vld [vmem:[%s7 + $0x4] sm:$0xf]
        %v1154 = vld [vmem:[%s7 + $0x8] sm:$0xf]
        %v1155 = vld [vmem:[%s7 + $0xc] sm:$0xf]
        %v1156 = vld [vmem:[%s7 + $0x10] sm:$0xf]
        %v1157 = vld [vmem:[%s7 + $0x14] sm:$0xf]
        %v1158 = vld [vmem:[%s7 + $0x18] sm:$0xf]
        %v1159 = vld [vmem:[%s7 + $0x1c] sm:$0xf]
        %v1160 = vld [vmem:[%s7 + $0x20] sm:$0xf]
        %v1161 = vld [vmem:[%s7 + $0x24] sm:$0xf]
        %v1162 = vld [vmem:[%s7 + $0x28] sm:$0xf]
        %v1163 = vld [vmem:[%s7 + $0x2c] sm:$0xf]
        %v1164 = vld [vmem:[%s7 + $0x30] sm:$0xf]
        %v1165 = vld [vmem:[%s7 + $0x34] sm:$0xf]
        %v1166 = vld [vmem:[%s7 + $0x38] sm:$0xf]
        %v1167 = vld [vmem:[%s7 + $0x3c] sm:$0xf]
        %v1184 = vunpack.c.l.b16 %v1152
        %v1185 = vunpack.c.l.b16 %v1153
        %v1186 = vunpack.c.l.b16 %v1154
        %v1187 = vunpack.c.l.b16 %v1155
        %v1188 = vunpack.c.l.b16 %v1156
        %v1189 = vunpack.c.l.b16 %v1157
        %v1190 = vunpack.c.l.b16 %v1158
        %v1191 = vunpack.c.l.b16 %v1159
        %v1192 = vunpack.c.l.b16 %v1160
        %v1193 = vunpack.c.l.b16 %v1161
        %v1194 = vunpack.c.l.b16 %v1162
        %v1195 = vunpack.c.l.b16 %v1163
        %v1196 = vunpack.c.l.b16 %v1164
        %v1197 = vunpack.c.l.b16 %v1165
        %v1198 = vunpack.c.l.b16 %v1166
        %v1199 = vunpack.c.l.b16 %v1167
        %v1200 = vpack.c.b16 %v1185, %v1184
        %v1201 = vpack.c.b16 %v1187, %v1186
        %v1202 = vpack.c.b16 %v1189, %v1188
        %v1203 = vpack.c.b16 %v1191, %v1190
        %v1204 = vpack.c.b16 %v1193, %v1192
        %v1205 = vpack.c.b16 %v1195, %v1194
        %v1206 = vpack.c.b16 %v1197, %v1196
        %v1207 = vpack.c.b16 %v1199, %v1198
        %1216 = vmatprep.subr.bf16.mxu0 0
        %1217 = vmatpush1.bf16.msra.mxu0 %v1200
        %1218 = vmatprep.subr.bf16.mxu0 0
        %1219 = vmatpush1.bf16.msra.mxu0 %v1201
        %1220 = vmatprep.subr.bf16.mxu0 0
        %1221 = vmatpush1.bf16.msra.mxu0 %v1202
        %1222 = vmatprep.subr.bf16.mxu0 0
        %1223 = vmatpush1.bf16.msra.mxu0 %v1203
        %1224 = vmatprep.subr.bf16.mxu0 0
        %1225 = vmatpush1.bf16.msra.mxu0 %v1204
        %1226 = vmatprep.subr.bf16.mxu0 0
        %1227 = vmatpush1.bf16.msra.mxu0 %v1205
        %1228 = vmatprep.subr.bf16.mxu0 0
        %1229 = vmatpush1.bf16.msra.mxu0 %v1206
        %1230 = vmatprep.subr.bf16.mxu0 0
        %1231 = vmatpush1.bf16.msra.mxu0 %v1207
        %1232 = vmatprep.subr.bf16.mxu0 0
        %1233 = vmatpush1.bf16.msra.mxu0 0
        %1234 = vmatprep.subr.bf16.mxu0 0
        %1235 = vmatpush1.bf16.msra.mxu0 0
        %1236 = vmatprep.subr.bf16.mxu0 0
        %1237 = vmatpush1.bf16.msra.mxu0 0
        %1238 = vmatprep.subr.bf16.mxu0 0
        %1239 = vmatpush1.bf16.msra.mxu0 0
        %1240 = vmatprep.subr.bf16.mxu0 0
        %1241 = vmatpush1.bf16.msra.mxu0 0
        %1242 = vmatprep.subr.bf16.mxu0 0
        %1243 = vmatpush1.bf16.msra.mxu0 0
        %1244 = vmatprep.subr.bf16.mxu0 0
        %1245 = vmatpush1.bf16.msra.mxu0 0
        %1246 = vmatprep.subr.bf16.mxu0 0
        %1247 = vmatpush1.bf16.msra.mxu0 0
        %1248 = vmatprep.mubr.bf16.mxu0 0
        %1249 = vmatmul.mubr.bf16.gmra.mrb[0].mxu0 %v1144
        %v1250 = vpop.f32.mrb[0].mxu0
        %v1251 = vadd.f32 0.0, %v1250
        %v1252 = vpop.f32.mrb[0].mxu0
        %v1253 = vpop.f32.mrb[0].mxu0
        %v1254 = vadd.f32 0.0, %v1253
        %v1255 = vpop.f32.mrb[0].mxu0
        %1256 = vmatprep.mubr.bf16.mxu0 0
        %1257 = vmatmul.mubr.bf16.gmra.mrb[0].mxu0 %v1145
        %v1258 = vpop.f32.mrb[0].mxu0
        %v1259 = vadd.f32 0.0, %v1258
        %v1260 = vpop.f32.mrb[0].mxu0
        %v1261 = vpop.f32.mrb[0].mxu0
        %v1262 = vadd.f32 0.0, %v1261
        %v1263 = vpop.f32.mrb[0].mxu0
        %1264 = vmatprep.mubr.bf16.mxu0 0
        %1265 = vmatmul.mubr.bf16.gmra.mrb[0].mxu0 %v1146
        %v1266 = vpop.f32.mrb[0].mxu0
        %v1267 = vadd.f32 0.0, %v1266
        %v1268 = vpop.f32.mrb[0].mxu0
        %v1269 = vpop.f32.mrb[0].mxu0
        %v1270 = vadd.f32 0.0, %v1269
        %v1271 = vpop.f32.mrb[0].mxu0
        %1272 = vmatprep.mubr.bf16.mxu0 0
        %1273 = vmatmul.mubr.bf16.gmra.mrb[0].mxu0 %v1147
        %v1274 = vpop.f32.mrb[0].mxu0
        %v1275 = vadd.f32 0.0, %v1274
        %v1276 = vpop.f32.mrb[0].mxu0
        %v1277 = vpop.f32.mrb[0].mxu0
        %v1278 = vadd.f32 0.0, %v1277
        %v1279 = vpop.f32.mrb[0].mxu0
        %1280 = vmatprep.mubr.bf16.mxu0 0
        %1281 = vmatmul.mubr.bf16.gmra.mrb[0].mxu0 %v1148
        %v1282 = vpop.f32.mrb[0].mxu0
        %v1283 = vadd.f32 0.0, %v1282
        %v1284 = vpop.f32.mrb[0].mxu0
        %v1285 = vpop.f32.mrb[0].mxu0
        %v1286 = vadd.f32 0.0, %v1285
        %v1287 = vpop.f32.mrb[0].mxu0
        %1288 = vmatprep.mubr.bf16.mxu0 0
        %1289 = vmatmul.mubr.bf16.gmra.mrb[0].mxu0 %v1149
        %v1290 = vpop.f32.mrb[0].mxu0
        %v1291 = vadd.f32 0.0, %v1290
        %v1292 = vpop.f32.mrb[0].mxu0
        %v1293 = vpop.f32.mrb[0].mxu0
        %v1294 = vadd.f32 0.0, %v1293
        %v1295 = vpop.f32.mrb[0].mxu0
        %1296 = vmatprep.mubr.bf16.mxu0 0
        %1297 = vmatmul.mubr.bf16.gmra.mrb[0].mxu0 %v1150
        %v1298 = vpop.f32.mrb[0].mxu0
        %v1299 = vadd.f32 0.0, %v1298
        %v1300 = vpop.f32.mrb[0].mxu0
        %v1301 = vpop.f32.mrb[0].mxu0
        %v1302 = vadd.f32 0.0, %v1301
        %v1303 = vpop.f32.mrb[0].mxu0
        %1304 = vmatprep.mubr.bf16.mxu0 0
        %1305 = vmatmul.mubr.bf16.gmra.mrb[0].mxu0 %v1151
        %v1306 = vpop.f32.mrb[0].mxu0
        %v1307 = vadd.f32 0.0, %v1306
        %v1308 = vpop.f32.mrb[0].mxu0
        %v1309 = vpop.f32.mrb[0].mxu0
        %v1310 = vadd.f32 0.0, %v1309
        %v1311 = vpop.f32.mrb[0].mxu0
        %1312 = vdwg.mxu0
        %v1329 = vunpack.c.l.b16 %v1128
        %v1330 = vunpack.c.l.b16 %v1129
        %v1331 = vunpack.c.l.b16 %v1130
        %v1332 = vunpack.c.l.b16 %v1131
        %v1333 = vunpack.c.l.b16 %v1132
        %v1334 = vunpack.c.l.b16 %v1133
        %v1335 = vunpack.c.l.b16 %v1134
        %v1336 = vunpack.c.l.b16 %v1135
        %v1337 = vunpack.c.l.b16 %v1136
        %v1338 = vunpack.c.l.b16 %v1137
        %v1339 = vunpack.c.l.b16 %v1138
        %v1340 = vunpack.c.l.b16 %v1139
        %v1341 = vunpack.c.l.b16 %v1140
        %v1342 = vunpack.c.l.b16 %v1141
        %v1343 = vunpack.c.l.b16 %v1142
        %v1344 = vunpack.c.l.b16 %v1143
        %v1345 = vpack.c.b16 %v1330, %v1329
        %v1346 = vpack.c.b16 %v1332, %v1331
        %v1347 = vpack.c.b16 %v1334, %v1333
        %v1348 = vpack.c.b16 %v1336, %v1335
        %v1349 = vpack.c.b16 %v1338, %v1337
        %v1350 = vpack.c.b16 %v1340, %v1339
        %v1351 = vpack.c.b16 %v1342, %v1341
        %v1352 = vpack.c.b16 %v1344, %v1343
        %1361 = vmatprep.subr.bf16.mxu0 0
        %1362 = vmatpush1.bf16.msra.mxu0 %v1345
        %1363 = vmatprep.subr.bf16.mxu0 0
        %1364 = vmatpush1.bf16.msra.mxu0 %v1346
        %1365 = vmatprep.subr.bf16.mxu0 0
        %1366 = vmatpush1.bf16.msra.mxu0 %v1347
        %1367 = vmatprep.subr.bf16.mxu0 0
        %1368 = vmatpush1.bf16.msra.mxu0 %v1348
        %1369 = vmatprep.subr.bf16.mxu0 0
        %1370 = vmatpush1.bf16.msra.mxu0 %v1349
        %1371 = vmatprep.subr.bf16.mxu0 0
        %1372 = vmatpush1.bf16.msra.mxu0 %v1350
        %1373 = vmatprep.subr.bf16.mxu0 0
        %1374 = vmatpush1.bf16.msra.mxu0 %v1351
        %1375 = vmatprep.subr.bf16.mxu0 0
        %1376 = vmatpush1.bf16.msra.mxu0 %v1352
        %1377 = vmatprep.subr.bf16.mxu0 0
        %1378 = vmatpush1.bf16.msra.mxu0 0
        %1379 = vmatprep.subr.bf16.mxu0 0
        %1380 = vmatpush1.bf16.msra.mxu0 0
        %1381 = vmatprep.subr.bf16.mxu0 0
        %1382 = vmatpush1.bf16.msra.mxu0 0
        %1383 = vmatprep.subr.bf16.mxu0 0
        %1384 = vmatpush1.bf16.msra.mxu0 0
        %1385 = vmatprep.subr.bf16.mxu0 0
        %1386 = vmatpush1.bf16.msra.mxu0 0
        %1387 = vmatprep.subr.bf16.mxu0 0
        %1388 = vmatpush1.bf16.msra.mxu0 0
        %1389 = vmatprep.subr.bf16.mxu0 0
        %1390 = vmatpush1.bf16.msra.mxu0 0
        %1391 = vmatprep.subr.bf16.mxu0 0
        %1392 = vmatpush1.bf16.msra.mxu0 0
        %1393 = vmatprep.mubr.bf16.mxu0 0
        %1394 = vmatmul.mubr.bf16.gmra.mrb[0].mxu0 %v1120
        %v1395 = vpop.f32.mrb[0].mxu0
        %v1396 = vadd.f32 %v1251, %v1395
        %v1397 = vpop.f32.mrb[0].mxu0
        %v1398 = vpop.f32.mrb[0].mxu0
        %v1399 = vadd.f32 %v1254, %v1398
        %v1400 = vpop.f32.mrb[0].mxu0
        %1401 = vmatprep.mubr.bf16.mxu0 0
        %1402 = vmatmul.mubr.bf16.gmra.mrb[0].mxu0 %v1121
        %v1403 = vpop.f32.mrb[0].mxu0
        %v1404 = vadd.f32 %v1259, %v1403
        %v1405 = vpop.f32.mrb[0].mxu0
        %v1406 = vpop.f32.mrb[0].mxu0
        %v1407 = vadd.f32 %v1262, %v1406
        %v1408 = vpop.f32.mrb[0].mxu0
        %1409 = vmatprep.mubr.bf16.mxu0 0
        %1410 = vmatmul.mubr.bf16.gmra.mrb[0].mxu0 %v1122
        %v1411 = vpop.f32.mrb[0].mxu0
        %v1412 = vadd.f32 %v1267, %v1411
        %v1413 = vpop.f32.mrb[0].mxu0
        %v1414 = vpop.f32.mrb[0].mxu0
        %v1415 = vadd.f32 %v1270, %v1414
        %v1416 = vpop.f32.mrb[0].mxu0
        %1417 = vmatprep.mubr.bf16.mxu0 0
        %1418 = vmatmul.mubr.bf16.gmra.mrb[0].mxu0 %v1123
        %v1419 = vpop.f32.mrb[0].mxu0
        %v1420 = vadd.f32 %v1275, %v1419
        %v1421 = vpop.f32.mrb[0].mxu0
        %v1422 = vpop.f32.mrb[0].mxu0
        %v1423 = vadd.f32 %v1278, %v1422
        %v1424 = vpop.f32.mrb[0].mxu0
        %1425 = vmatprep.mubr.bf16.mxu0 0
        %1426 = vmatmul.mubr.bf16.gmra.mrb[0].mxu0 %v1124
        %v1427 = vpop.f32.mrb[0].mxu0
        %v1428 = vadd.f32 %v1283, %v1427
        %v1429 = vpop.f32.mrb[0].mxu0
        %v1430 = vpop.f32.mrb[0].mxu0
        %v1431 = vadd.f32 %v1286, %v1430
        %v1432 = vpop.f32.mrb[0].mxu0
        %1433 = vmatprep.mubr.bf16.mxu0 0
        %1434 = vmatmul.mubr.bf16.gmra.mrb[0].mxu0 %v1125
        %v1435 = vpop.f32.mrb[0].mxu0
        %v1436 = vadd.f32 %v1291, %v1435
        %v1437 = vpop.f32.mrb[0].mxu0
        %v1438 = vpop.f32.mrb[0].mxu0
        %v1439 = vadd.f32 %v1294, %v1438
        %v1440 = vpop.f32.mrb[0].mxu0
        %1441 = vmatprep.mubr.bf16.mxu0 0
        %1442 = vmatmul.mubr.bf16.gmra.mrb[0].mxu0 %v1126
        %v1443 = vpop.f32.mrb[0].mxu0
        %v1444 = vadd.f32 %v1299, %v1443
        %v1445 = vpop.f32.mrb[0].mxu0
        %v1446 = vpop.f32.mrb[0].mxu0
        %v1447 = vadd.f32 %v1302, %v1446
        %v1448 = vpop.f32.mrb[0].mxu0
        %1449 = vmatprep.mubr.bf16.mxu0 0
        %1450 = vmatmul.mubr.bf16.gmra.mrb[0].mxu0 %v1127
        %v1451 = vpop.f32.mrb[0].mxu0
        %v1452 = vadd.f32 %v1307, %v1451
        %v1453 = vpop.f32.mrb[0].mxu0
        %v1454 = vpop.f32.mrb[0].mxu0
        %v1455 = vadd.f32 %v1310, %v1454
        %v1456 = vpop.f32.mrb[0].mxu0
        %1457 = vdwg.mxu0
        %1458 = vst [vmem:[#allocation2] sm:$0xff] %v1396
        %1459 = vst [vmem:[#allocation2 + $0x8] sm:$0xff] %v1399
        %1460 = vst [vmem:[#allocation2 + $0x10] sm:$0xff] %v1404
        %1461 = vst [vmem:[#allocation2 + $0x18] sm:$0xff] %v1407
        %1462 = vst [vmem:[#allocation2 + $0x20] sm:$0xff] %v1412
        %1463 = vst [vmem:[#allocation2 + $0x28] sm:$0xff] %v1415
        %1464 = vst [vmem:[#allocation2 + $0x30] sm:$0xff] %v1420
        %1465 = vst [vmem:[#allocation2 + $0x38] sm:$0xff] %v1423
        %1466 = vst [vmem:[#allocation2 + $0x40] sm:$0xff] %v1428
        %1467 = vst [vmem:[#allocation2 + $0x48] sm:$0xff] %v1431
        %1468 = vst [vmem:[#allocation2 + $0x50] sm:$0xff] %v1436
        %1469 = vst [vmem:[#allocation2 + $0x58] sm:$0xff] %v1439
        %1470 = vst [vmem:[#allocation2 + $0x60] sm:$0xff] %v1444
        %1471 = vst [vmem:[#allocation2 + $0x68] sm:$0xff] %v1447
        %1472 = vst [vmem:[#allocation2 + $0x70] sm:$0xff] %v1452
        %1473 = vst [vmem:[#allocation2 + $0x78] sm:$0xff] %v1455
        %1474 = vst [vmem:[#allocation3] sm:$0xff] %v1396
        %1475 = vst [vmem:[#allocation3 + $0x8] sm:$0xff] %v1399
        %1476 = vst [vmem:[#allocation3 + $0x10] sm:$0xff] %v1404
        %1477 = vst [vmem:[#allocation3 + $0x18] sm:$0xff] %v1407
        %1478 = vst [vmem:[#allocation3 + $0x20] sm:$0xff] %v1412
        %1479 = vst [vmem:[#allocation3 + $0x28] sm:$0xff] %v1415
        %1480 = vst [vmem:[#allocation3 + $0x30] sm:$0xff] %v1420
        %1481 = vst [vmem:[#allocation3 + $0x38] sm:$0xff] %v1423
        %1482 = vst [vmem:[#allocation3 + $0x40] sm:$0xff] %v1428
        %1483 = vst [vmem:[#allocation3 + $0x48] sm:$0xff] %v1431
        %1484 = vst [vmem:[#allocation3 + $0x50] sm:$0xff] %v1436
        %1485 = vst [vmem:[#allocation3 + $0x58] sm:$0xff] %v1439
        %1486 = vst [vmem:[#allocation3 + $0x60] sm:$0xff] %v1444
        %1487 = vst [vmem:[#allocation3 + $0x68] sm:$0xff] %v1447
        %1488 = vst [vmem:[#allocation3 + $0x70] sm:$0xff] %v1452
        %1489 = vst [vmem:[#allocation3 + $0x78] sm:$0xff] %v1455
      $region68: #{_forward_impl.1} parent=63 // pred_fallthru
        _
      %v1490 = vld [vmem:[#allocation2] sm:$0xff]
      %v1491 = vld [vmem:[#allocation2 + $0x8] sm:$0xff]
      %v1492 = vld [vmem:[#allocation2 + $0x10] sm:$0xff]
      %v1493 = vld [vmem:[#allocation2 + $0x18] sm:$0xff]
      %v1494 = vld [vmem:[#allocation2 + $0x20] sm:$0xff]
      %v1495 = vld [vmem:[#allocation2 + $0x28] sm:$0xff]
      %v1496 = vld [vmem:[#allocation2 + $0x30] sm:$0xff]
      %v1497 = vld [vmem:[#allocation2 + $0x38] sm:$0xff]
      %v1498 = vld [vmem:[#allocation2 + $0x40] sm:$0xff]
      %v1499 = vld [vmem:[#allocation2 + $0x48] sm:$0xff]
      %v1500 = vld [vmem:[#allocation2 + $0x50] sm:$0xff]
      %v1501 = vld [vmem:[#allocation2 + $0x58] sm:$0xff]
      %v1502 = vld [vmem:[#allocation2 + $0x60] sm:$0xff]
      %v1503 = vld [vmem:[#allocation2 + $0x68] sm:$0xff]
      %v1504 = vld [vmem:[#allocation2 + $0x70] sm:$0xff]
      %v1505 = vld [vmem:[#allocation2 + $0x78] sm:$0xff]
      %v1506 = vpack.c.bf16 %v1491, %v1490
      %v1507 = vpack.c.bf16 %v1493, %v1492
      %v1508 = vpack.c.bf16 %v1495, %v1494
      %v1509 = vpack.c.bf16 %v1497, %v1496
      %v1510 = vpack.c.bf16 %v1499, %v1498
      %v1511 = vpack.c.bf16 %v1501, %v1500
      %v1512 = vpack.c.bf16 %v1503, %v1502
      %v1513 = vpack.c.bf16 %v1505, %v1504
      %v1514 = vld [vmem:[%s452] sm:$0xf]
      %v1515 = vld [vmem:[%s452 + $0x4] sm:$0xf]
      %v1516 = vld [vmem:[%s452 + $0x8] sm:$0xf]
      %v1517 = vld [vmem:[%s452 + $0xc] sm:$0xf]
      %v1518 = vld [vmem:[%s452 + $0x10] sm:$0xf]
      %v1519 = vld [vmem:[%s452 + $0x14] sm:$0xf]
      %v1520 = vld [vmem:[%s452 + $0x18] sm:$0xf]
      %v1521 = vld [vmem:[%s452 + $0x1c] sm:$0xf]
      %v1522 = vld [vmem:[%s452 + $0x20] sm:$0xf]
      %v1523 = vld [vmem:[%s452 + $0x24] sm:$0xf]
      %v1524 = vld [vmem:[%s452 + $0x28] sm:$0xf]
      %v1525 = vld [vmem:[%s452 + $0x2c] sm:$0xf]
      %v1526 = vld [vmem:[%s452 + $0x30] sm:$0xf]
      %v1527 = vld [vmem:[%s452 + $0x34] sm:$0xf]
      %v1528 = vld [vmem:[%s452 + $0x38] sm:$0xf]
      %v1529 = vld [vmem:[%s452 + $0x3c] sm:$0xf]
      %v1546 = vunpack.c.l.b16 %v1514
      %v1547 = vunpack.c.l.b16 %v1515
      %v1548 = vunpack.c.l.b16 %v1516
      %v1549 = vunpack.c.l.b16 %v1517
      %v1550 = vunpack.c.l.b16 %v1518
      %v1551 = vunpack.c.l.b16 %v1519
      %v1552 = vunpack.c.l.b16 %v1520
      %v1553 = vunpack.c.l.b16 %v1521
      %v1554 = vunpack.c.l.b16 %v1522
      %v1555 = vunpack.c.l.b16 %v1523
      %v1556 = vunpack.c.l.b16 %v1524
      %v1557 = vunpack.c.l.b16 %v1525
      %v1558 = vunpack.c.l.b16 %v1526
      %v1559 = vunpack.c.l.b16 %v1527
      %v1560 = vunpack.c.l.b16 %v1528
      %v1561 = vunpack.c.l.b16 %v1529
      %v1562 = vpack.c.b16 %v1547, %v1546
      %v1563 = vpack.c.b16 %v1549, %v1548
      %v1564 = vpack.c.b16 %v1551, %v1550
      %v1565 = vpack.c.b16 %v1553, %v1552
      %v1566 = vpack.c.b16 %v1555, %v1554
      %v1567 = vpack.c.b16 %v1557, %v1556
      %v1568 = vpack.c.b16 %v1559, %v1558
      %v1569 = vpack.c.b16 %v1561, %v1560
      %1578 = vmatprep.subr.bf16.mxu0 0
      %1579 = vmatpush1.bf16.msra.mxu0 %v1562
      %1580 = vmatprep.subr.bf16.mxu0 0
      %1581 = vmatpush1.bf16.msra.mxu0 %v1563
      %1582 = vmatprep.subr.bf16.mxu0 0
      %1583 = vmatpush1.bf16.msra.mxu0 %v1564
      %1584 = vmatprep.subr.bf16.mxu0 0
      %1585 = vmatpush1.bf16.msra.mxu0 %v1565
      %1586 = vmatprep.subr.bf16.mxu0 0
      %1587 = vmatpush1.bf16.msra.mxu0 %v1566
      %1588 = vmatprep.subr.bf16.mxu0 0
      %1589 = vmatpush1.bf16.msra.mxu0 %v1567
      %1590 = vmatprep.subr.bf16.mxu0 0
      %1591 = vmatpush1.bf16.msra.mxu0 %v1568
      %1592 = vmatprep.subr.bf16.mxu0 0
      %1593 = vmatpush1.bf16.msra.mxu0 %v1569
      %1594 = vmatprep.subr.bf16.mxu0 0
      %1595 = vmatpush1.bf16.msra.mxu0 0
      %1596 = vmatprep.subr.bf16.mxu0 0
      %1597 = vmatpush1.bf16.msra.mxu0 0
      %1598 = vmatprep.subr.bf16.mxu0 0
      %1599 = vmatpush1.bf16.msra.mxu0 0
      %1600 = vmatprep.subr.bf16.mxu0 0
      %1601 = vmatpush1.bf16.msra.mxu0 0
      %1602 = vmatprep.subr.bf16.mxu0 0
      %1603 = vmatpush1.bf16.msra.mxu0 0
      %1604 = vmatprep.subr.bf16.mxu0 0
      %1605 = vmatpush1.bf16.msra.mxu0 0
      %1606 = vmatprep.subr.bf16.mxu0 0
      %1607 = vmatpush1.bf16.msra.mxu0 0
      %1608 = vmatprep.subr.bf16.mxu0 0
      %1609 = vmatpush1.bf16.msra.mxu0 0
      %1610 = vmatprep.mubr.bf16.mxu0 0
      %1611 = vmatmul.mubr.bf16.gmra.mrb[0].mxu0 %v1506
      %v1612 = vpop.f32.mrb[0].mxu0
      %v1613 = vadd.f32 0.0, %v1612
      %v1614 = vpop.f32.mrb[0].mxu0
      %v1615 = vpop.f32.mrb[0].mxu0
      %v1616 = vadd.f32 0.0, %v1615
      %v1617 = vpop.f32.mrb[0].mxu0
      %1618 = vmatprep.mubr.bf16.mxu0 0
      %1619 = vmatmul.mubr.bf16.gmra.mrb[0].mxu0 %v1507
      %v1620 = vpop.f32.mrb[0].mxu0
      %v1621 = vadd.f32 0.0, %v1620
      %v1622 = vpop.f32.mrb[0].mxu0
      %v1623 = vpop.f32.mrb[0].mxu0
      %v1624 = vadd.f32 0.0, %v1623
      %v1625 = vpop.f32.mrb[0].mxu0
      %1626 = vmatprep.mubr.bf16.mxu0 0
      %1627 = vmatmul.mubr.bf16.gmra.mrb[0].mxu0 %v1508
      %v1628 = vpop.f32.mrb[0].mxu0
      %v1629 = vadd.f32 0.0, %v1628
      %v1630 = vpop.f32.mrb[0].mxu0
      %v1631 = vpop.f32.mrb[0].mxu0
      %v1632 = vadd.f32 0.0, %v1631
      %v1633 = vpop.f32.mrb[0].mxu0
      %1634 = vmatprep.mubr.bf16.mxu0 0
      %1635 = vmatmul.mubr.bf16.gmra.mrb[0].mxu0 %v1509
      %v1636 = vpop.f32.mrb[0].mxu0
      %v1637 = vadd.f32 0.0, %v1636
      %v1638 = vpop.f32.mrb[0].mxu0
      %v1639 = vpop.f32.mrb[0].mxu0
      %v1640 = vadd.f32 0.0, %v1639
      %v1641 = vpop.f32.mrb[0].mxu0
      %1642 = vmatprep.mubr.bf16.mxu0 0
      %1643 = vmatmul.mubr.bf16.gmra.mrb[0].mxu0 %v1510
      %v1644 = vpop.f32.mrb[0].mxu0
      %v1645 = vadd.f32 0.0, %v1644
      %v1646 = vpop.f32.mrb[0].mxu0
      %v1647 = vpop.f32.mrb[0].mxu0
      %v1648 = vadd.f32 0.0, %v1647
      %v1649 = vpop.f32.mrb[0].mxu0
      %1650 = vmatprep.mubr.bf16.mxu0 0
      %1651 = vmatmul.mubr.bf16.gmra.mrb[0].mxu0 %v1511
      %v1652 = vpop.f32.mrb[0].mxu0
      %v1653 = vadd.f32 0.0, %v1652
      %v1654 = vpop.f32.mrb[0].mxu0
      %v1655 = vpop.f32.mrb[0].mxu0
      %v1656 = vadd.f32 0.0, %v1655
      %v1657 = vpop.f32.mrb[0].mxu0
      %1658 = vmatprep.mubr.bf16.mxu0 0
      %1659 = vmatmul.mubr.bf16.gmra.mrb[0].mxu0 %v1512
      %v1660 = vpop.f32.mrb[0].mxu0
      %v1661 = vadd.f32 0.0, %v1660
      %v1662 = vpop.f32.mrb[0].mxu0
      %v1663 = vpop.f32.mrb[0].mxu0
      %v1664 = vadd.f32 0.0, %v1663
      %v1665 = vpop.f32.mrb[0].mxu0
      %1666 = vmatprep.mubr.bf16.mxu0 0
      %1667 = vmatmul.mubr.bf16.gmra.mrb[0].mxu0 %v1513
      %v1668 = vpop.f32.mrb[0].mxu0
      %v1669 = vadd.f32 0.0, %v1668
      %v1670 = vpop.f32.mrb[0].mxu0
      %v1671 = vpop.f32.mrb[0].mxu0
      %v1672 = vadd.f32 0.0, %v1671
      %v1673 = vpop.f32.mrb[0].mxu0
      %1674 = vdwg.mxu0
      %v1675 = vmul.f32 %v1613, %v1613
      %v1676 = vmul.f32 %v1616, %v1616
      %v1677 = vmul.f32 %v1621, %v1621
      %v1678 = vmul.f32 %v1624, %v1624
      %v1679 = vmul.f32 %v1629, %v1629
      %v1680 = vmul.f32 %v1632, %v1632
      %v1681 = vmul.f32 %v1637, %v1637
      %v1682 = vmul.f32 %v1640, %v1640
      %v1683 = vmul.f32 %v1645, %v1645
      %v1684 = vmul.f32 %v1648, %v1648
      %v1685 = vmul.f32 %v1653, %v1653
      %v1686 = vmul.f32 %v1656, %v1656
      %v1687 = vmul.f32 %v1661, %v1661
      %v1688 = vmul.f32 %v1664, %v1664
      %v1689 = vmul.f32 %v1669, %v1669
      %v1690 = vmul.f32 %v1672, %v1672
      %v1691 = vmul.f32 %v1613, %v1675
      %v1692 = vmul.f32 %v1616, %v1676
      %v1693 = vmul.f32 %v1621, %v1677
      %v1694 = vmul.f32 %v1624, %v1678
      %v1695 = vmul.f32 %v1629, %v1679
      %v1696 = vmul.f32 %v1632, %v1680
      %v1697 = vmul.f32 %v1637, %v1681
      %v1698 = vmul.f32 %v1640, %v1682
      %v1699 = vmul.f32 %v1645, %v1683
      %v1700 = vmul.f32 %v1648, %v1684
      %v1701 = vmul.f32 %v1653, %v1685
      %v1702 = vmul.f32 %v1656, %v1686
      %v1703 = vmul.f32 %v1661, %v1687
      %v1704 = vmul.f32 %v1664, %v1688
      %v1705 = vmul.f32 %v1669, %v1689
      %v1706 = vmul.f32 %v1672, %v1690
      %v1707 = vmul.f32 %v1691, 0.044715
      %v1708 = vmul.f32 %v1692, 0.044715
      %v1709 = vmul.f32 %v1693, 0.044715
      %v1710 = vmul.f32 %v1694, 0.044715
      %v1711 = vmul.f32 %v1695, 0.044715
      %v1712 = vmul.f32 %v1696, 0.044715
      %v1713 = vmul.f32 %v1697, 0.044715
      %v1714 = vmul.f32 %v1698, 0.044715
      %v1715 = vmul.f32 %v1699, 0.044715
      %v1716 = vmul.f32 %v1700, 0.044715
      %v1717 = vmul.f32 %v1701, 0.044715
      %v1718 = vmul.f32 %v1702, 0.044715
      %v1719 = vmul.f32 %v1703, 0.044715
      %v1720 = vmul.f32 %v1704, 0.044715
      %v1721 = vmul.f32 %v1705, 0.044715
      %v1722 = vmul.f32 %v1706, 0.044715
      %v1723 = vadd.f32 %v1613, %v1707
      %v1724 = vadd.f32 %v1616, %v1708
      %v1725 = vadd.f32 %v1621, %v1709
      %v1726 = vadd.f32 %v1624, %v1710
      %v1727 = vadd.f32 %v1629, %v1711
      %v1728 = vadd.f32 %v1632, %v1712
      %v1729 = vadd.f32 %v1637, %v1713
      %v1730 = vadd.f32 %v1640, %v1714
      %v1731 = vadd.f32 %v1645, %v1715
      %v1732 = vadd.f32 %v1648, %v1716
      %v1733 = vadd.f32 %v1653, %v1717
      %v1734 = vadd.f32 %v1656, %v1718
      %v1735 = vadd.f32 %v1661, %v1719
      %v1736 = vadd.f32 %v1664, %v1720
      %v1737 = vadd.f32 %v1669, %v1721
      %v1738 = vadd.f32 %v1672, %v1722
      %v1739 = vmul.f32 %v1723, 0.7978846
      %v1740 = vmul.f32 %v1724, 0.7978846
      %v1741 = vmul.f32 %v1725, 0.7978846
      %v1742 = vmul.f32 %v1726, 0.7978846
      %v1743 = vmul.f32 %v1727, 0.7978846
      %v1744 = vmul.f32 %v1728, 0.7978846
      %v1745 = vmul.f32 %v1729, 0.7978846
      %v1746 = vmul.f32 %v1730, 0.7978846
      %v1747 = vmul.f32 %v1731, 0.7978846
      %v1748 = vmul.f32 %v1732, 0.7978846
      %v1749 = vmul.f32 %v1733, 0.7978846
      %v1750 = vmul.f32 %v1734, 0.7978846
      %v1751 = vmul.f32 %v1735, 0.7978846
      %v1752 = vmul.f32 %v1736, 0.7978846
      %v1753 = vmul.f32 %v1737, 0.7978846
      %v1754 = vmul.f32 %v1738, 0.7978846
      %v1755 = vtanh.pop %v1739
      %v1756 = vtanh.pop %v1740
      %v1757 = vtanh.pop %v1741
      %v1758 = vtanh.pop %v1742
      %v1759 = vtanh.pop %v1743
      %v1760 = vtanh.pop %v1744
      %v1761 = vtanh.pop %v1745
      %v1762 = vtanh.pop %v1746
      %v1763 = vtanh.pop %v1747
      %v1764 = vtanh.pop %v1748
      %v1765 = vtanh.pop %v1749
      %v1766 = vtanh.pop %v1750
      %v1767 = vtanh.pop %v1751
      %v1768 = vtanh.pop %v1752
      %v1769 = vtanh.pop %v1753
      %v1770 = vtanh.pop %v1754
      %v1771 = vadd.f32 %v1755, 1.0
      %v1772 = vadd.f32 %v1756, 1.0
      %v1773 = vadd.f32 %v1757, 1.0
      %v1774 = vadd.f32 %v1758, 1.0
      %v1775 = vadd.f32 %v1759, 1.0
      %v1776 = vadd.f32 %v1760, 1.0
      %v1777 = vadd.f32 %v1761, 1.0
      %v1778 = vadd.f32 %v1762, 1.0
      %v1779 = vadd.f32 %v1763, 1.0
      %v1780 = vadd.f32 %v1764, 1.0
      %v1781 = vadd.f32 %v1765, 1.0
      %v1782 = vadd.f32 %v1766, 1.0
      %v1783 = vadd.f32 %v1767, 1.0
      %v1784 = vadd.f32 %v1768, 1.0
      %v1785 = vadd.f32 %v1769, 1.0
      %v1786 = vadd.f32 %v1770, 1.0
      %v1787 = vmul.f32 %v1771, 0.5
      %v1788 = vmul.f32 %v1772, 0.5
      %v1789 = vmul.f32 %v1773, 0.5
      %v1790 = vmul.f32 %v1774, 0.5
      %v1791 = vmul.f32 %v1775, 0.5
      %v1792 = vmul.f32 %v1776, 0.5
      %v1793 = vmul.f32 %v1777, 0.5
      %v1794 = vmul.f32 %v1778, 0.5
      %v1795 = vmul.f32 %v1779, 0.5
      %v1796 = vmul.f32 %v1780, 0.5
      %v1797 = vmul.f32 %v1781, 0.5
      %v1798 = vmul.f32 %v1782, 0.5
      %v1799 = vmul.f32 %v1783, 0.5
      %v1800 = vmul.f32 %v1784, 0.5
      %v1801 = vmul.f32 %v1785, 0.5
      %v1802 = vmul.f32 %v1786, 0.5
      %v1803 = vmul.f32 %v1613, %v1787
      %v1804 = vmul.f32 %v1616, %v1788
      %v1805 = vmul.f32 %v1621, %v1789
      %v1806 = vmul.f32 %v1624, %v1790
      %v1807 = vmul.f32 %v1629, %v1791
      %v1808 = vmul.f32 %v1632, %v1792
      %v1809 = vmul.f32 %v1637, %v1793
      %v1810 = vmul.f32 %v1640, %v1794
      %v1811 = vmul.f32 %v1645, %v1795
      %v1812 = vmul.f32 %v1648, %v1796
      %v1813 = vmul.f32 %v1653, %v1797
      %v1814 = vmul.f32 %v1656, %v1798
      %v1815 = vmul.f32 %v1661, %v1799
      %v1816 = vmul.f32 %v1664, %v1800
      %v1817 = vmul.f32 %v1669, %v1801
      %v1818 = vmul.f32 %v1672, %v1802
      %v1819 = vpack.c.bf16 %v1804, %v1803
      %v1820 = vpack.c.bf16 %v1806, %v1805
      %v1821 = vpack.c.bf16 %v1808, %v1807
      %v1822 = vpack.c.bf16 %v1810, %v1809
      %v1823 = vpack.c.bf16 %v1812, %v1811
      %v1824 = vpack.c.bf16 %v1814, %v1813
      %v1825 = vpack.c.bf16 %v1816, %v1815
      %v1826 = vpack.c.bf16 %v1818, %v1817
      %v1827 = vld [vmem:[%s457] sm:$0xf]
      %v1828 = vld [vmem:[%s457 + $0x4] sm:$0xf]
      %v1829 = vld [vmem:[%s457 + $0x8] sm:$0xf]
      %v1830 = vld [vmem:[%s457 + $0xc] sm:$0xf]
      %v1831 = vld [vmem:[%s457 + $0x10] sm:$0xf]
      %v1832 = vld [vmem:[%s457 + $0x14] sm:$0xf]
      %v1833 = vld [vmem:[%s457 + $0x18] sm:$0xf]
      %v1834 = vld [vmem:[%s457 + $0x1c] sm:$0xf]
      %v1835 = vld [vmem:[%s457 + $0x20] sm:$0xf]
      %v1836 = vld [vmem:[%s457 + $0x24] sm:$0xf]
      %v1837 = vld [vmem:[%s457 + $0x28] sm:$0xf]
      %v1838 = vld [vmem:[%s457 + $0x2c] sm:$0xf]
      %v1839 = vld [vmem:[%s457 + $0x30] sm:$0xf]
      %v1840 = vld [vmem:[%s457 + $0x34] sm:$0xf]
      %v1841 = vld [vmem:[%s457 + $0x38] sm:$0xf]
      %v1842 = vld [vmem:[%s457 + $0x3c] sm:$0xf]
      %v1859 = vunpack.c.l.b16 %v1827
      %v1860 = vunpack.c.l.b16 %v1828
      %v1861 = vunpack.c.l.b16 %v1829
      %v1862 = vunpack.c.l.b16 %v1830
      %v1863 = vunpack.c.l.b16 %v1831
      %v1864 = vunpack.c.l.b16 %v1832
      %v1865 = vunpack.c.l.b16 %v1833
      %v1866 = vunpack.c.l.b16 %v1834
      %v1867 = vunpack.c.l.b16 %v1835
      %v1868 = vunpack.c.l.b16 %v1836
      %v1869 = vunpack.c.l.b16 %v1837
      %v1870 = vunpack.c.l.b16 %v1838
      %v1871 = vunpack.c.l.b16 %v1839
      %v1872 = vunpack.c.l.b16 %v1840
      %v1873 = vunpack.c.l.b16 %v1841
      %v1874 = vunpack.c.l.b16 %v1842
      %v1875 = vpack.c.b16 %v1860, %v1859
      %v1876 = vpack.c.b16 %v1862, %v1861
      %v1877 = vpack.c.b16 %v1864, %v1863
      %v1878 = vpack.c.b16 %v1866, %v1865
      %v1879 = vpack.c.b16 %v1868, %v1867
      %v1880 = vpack.c.b16 %v1870, %v1869
      %v1881 = vpack.c.b16 %v1872, %v1871
      %v1882 = vpack.c.b16 %v1874, %v1873
      %1891 = vmatprep.subr.bf16.mxu0 0
      %1892 = vmatpush1.bf16.msra.mxu0 %v1875
      %1893 = vmatprep.subr.bf16.mxu0 0
      %1894 = vmatpush1.bf16.msra.mxu0 %v1876
      %1895 = vmatprep.subr.bf16.mxu0 0
      %1896 = vmatpush1.bf16.msra.mxu0 %v1877
      %1897 = vmatprep.subr.bf16.mxu0 0
      %1898 = vmatpush1.bf16.msra.mxu0 %v1878
      %1899 = vmatprep.subr.bf16.mxu0 0
      %1900 = vmatpush1.bf16.msra.mxu0 %v1879
      %1901 = vmatprep.subr.bf16.mxu0 0
      %1902 = vmatpush1.bf16.msra.mxu0 %v1880
      %1903 = vmatprep.subr.bf16.mxu0 0
      %1904 = vmatpush1.bf16.msra.mxu0 %v1881
      %1905 = vmatprep.subr.bf16.mxu0 0
      %1906 = vmatpush1.bf16.msra.mxu0 %v1882
      %1907 = vmatprep.subr.bf16.mxu0 0
      %1908 = vmatpush1.bf16.msra.mxu0 0
      %1909 = vmatprep.subr.bf16.mxu0 0
      %1910 = vmatpush1.bf16.msra.mxu0 0
      %1911 = vmatprep.subr.bf16.mxu0 0
      %1912 = vmatpush1.bf16.msra.mxu0 0
      %1913 = vmatprep.subr.bf16.mxu0 0
      %1914 = vmatpush1.bf16.msra.mxu0 0
      %1915 = vmatprep.subr.bf16.mxu0 0
      %1916 = vmatpush1.bf16.msra.mxu0 0
      %1917 = vmatprep.subr.bf16.mxu0 0
      %1918 = vmatpush1.bf16.msra.mxu0 0
      %1919 = vmatprep.subr.bf16.mxu0 0
      %1920 = vmatpush1.bf16.msra.mxu0 0
      %1921 = vmatprep.subr.bf16.mxu0 0
      %1922 = vmatpush1.bf16.msra.mxu0 0
      %1923 = vmatprep.mubr.bf16.mxu0 0
      %1924 = vmatmul.mubr.bf16.gmra.mrb[0].mxu0 %v1819
      %v1925 = vpop.f32.mrb[0].mxu0
      %v1926 = vadd.f32 0.0, %v1925
      %v1927 = vpop.f32.mrb[0].mxu0
      %v1928 = vpop.f32.mrb[0].mxu0
      %v1929 = vadd.f32 0.0, %v1928
      %v1930 = vpop.f32.mrb[0].mxu0
      %1931 = vmatprep.mubr.bf16.mxu0 0
      %1932 = vmatmul.mubr.bf16.gmra.mrb[0].mxu0 %v1820
      %v1933 = vpop.f32.mrb[0].mxu0
      %v1934 = vadd.f32 0.0, %v1933
      %v1935 = vpop.f32.mrb[0].mxu0
      %v1936 = vpop.f32.mrb[0].mxu0
      %v1937 = vadd.f32 0.0, %v1936
      %v1938 = vpop.f32.mrb[0].mxu0
      %1939 = vmatprep.mubr.bf16.mxu0 0
      %1940 = vmatmul.mubr.bf16.gmra.mrb[0].mxu0 %v1821
      %v1941 = vpop.f32.mrb[0].mxu0
      %v1942 = vadd.f32 0.0, %v1941
      %v1943 = vpop.f32.mrb[0].mxu0
      %v1944 = vpop.f32.mrb[0].mxu0
      %v1945 = vadd.f32 0.0, %v1944
      %v1946 = vpop.f32.mrb[0].mxu0
      %1947 = vmatprep.mubr.bf16.mxu0 0
      %1948 = vmatmul.mubr.bf16.gmra.mrb[0].mxu0 %v1822
      %v1949 = vpop.f32.mrb[0].mxu0
      %v1950 = vadd.f32 0.0, %v1949
      %v1951 = vpop.f32.mrb[0].mxu0
      %v1952 = vpop.f32.mrb[0].mxu0
      %v1953 = vadd.f32 0.0, %v1952
      %v1954 = vpop.f32.mrb[0].mxu0
      %1955 = vmatprep.mubr.bf16.mxu0 0
      %1956 = vmatmul.mubr.bf16.gmra.mrb[0].mxu0 %v1823
      %v1957 = vpop.f32.mrb[0].mxu0
      %v1958 = vadd.f32 0.0, %v1957
      %v1959 = vpop.f32.mrb[0].mxu0
      %v1960 = vpop.f32.mrb[0].mxu0
      %v1961 = vadd.f32 0.0, %v1960
      %v1962 = vpop.f32.mrb[0].mxu0
      %1963 = vmatprep.mubr.bf16.mxu0 0
      %1964 = vmatmul.mubr.bf16.gmra.mrb[0].mxu0 %v1824
      %v1965 = vpop.f32.mrb[0].mxu0
      %v1966 = vadd.f32 0.0, %v1965
      %v1967 = vpop.f32.mrb[0].mxu0
      %v1968 = vpop.f32.mrb[0].mxu0
      %v1969 = vadd.f32 0.0, %v1968
      %v1970 = vpop.f32.mrb[0].mxu0
      %1971 = vmatprep.mubr.bf16.mxu0 0
      %1972 = vmatmul.mubr.bf16.gmra.mrb[0].mxu0 %v1825
      %v1973 = vpop.f32.mrb[0].mxu0
      %v1974 = vadd.f32 0.0, %v1973
      %v1975 = vpop.f32.mrb[0].mxu0
      %v1976 = vpop.f32.mrb[0].mxu0
      %v1977 = vadd.f32 0.0, %v1976
      %v1978 = vpop.f32.mrb[0].mxu0
      %1979 = vmatprep.mubr.bf16.mxu0 0
      %1980 = vmatmul.mubr.bf16.gmra.mrb[0].mxu0 %v1826
      %v1981 = vpop.f32.mrb[0].mxu0
      %v1982 = vadd.f32 0.0, %v1981
      %v1983 = vpop.f32.mrb[0].mxu0
      %v1984 = vpop.f32.mrb[0].mxu0
      %v1985 = vadd.f32 0.0, %v1984
      %v1986 = vpop.f32.mrb[0].mxu0
      %1987 = vdwg.mxu0
      %v1988 = vadd.f32 %v1490, %v1926
      %v1989 = vadd.f32 %v1491, %v1929
      %v1990 = vadd.f32 %v1492, %v1934
      %v1991 = vadd.f32 %v1493, %v1937
      %v1992 = vadd.f32 %v1494, %v1942
      %v1993 = vadd.f32 %v1495, %v1945
      %v1994 = vadd.f32 %v1496, %v1950
      %v1995 = vadd.f32 %v1497, %v1953
      %v1996 = vadd.f32 %v1498, %v1958
      %v1997 = vadd.f32 %v1499, %v1961
      %v1998 = vadd.f32 %v1500, %v1966
      %v1999 = vadd.f32 %v1501, %v1969
      %v2000 = vadd.f32 %v1502, %v1974
      %v2001 = vadd.f32 %v1503, %v1977
      %v2002 = vadd.f32 %v1504, %v1982
      %v2003 = vadd.f32 %v1505, %v1985
      %2004 = vst [vmem:[#allocation2] sm:$0xff] %v1988
      %2005 = vst [vmem:[#allocation2 + $0x8] sm:$0xff] %v1989
      %2006 = vst [vmem:[#allocation2 + $0x10] sm:$0xff] %v1990
      %2007 = vst [vmem:[#allocation2 + $0x18] sm:$0xff] %v1991
      %2008 = vst [vmem:[#allocation2 + $0x20] sm:$0xff] %v1992
      %2009 = vst [vmem:[#allocation2 + $0x28] sm:$0xff] %v1993
      %2010 = vst [vmem:[#allocation2 + $0x30] sm:$0xff] %v1994
      %2011 = vst [vmem:[#allocation2 + $0x38] sm:$0xff] %v1995
      %2012 = vst [vmem:[#allocation2 + $0x40] sm:$0xff] %v1996
      %2013 = vst [vmem:[#allocation2 + $0x48] sm:$0xff] %v1997
      %2014 = vst [vmem:[#allocation2 + $0x50] sm:$0xff] %v1998
      %2015 = vst [vmem:[#allocation2 + $0x58] sm:$0xff] %v1999
      %2016 = vst [vmem:[#allocation2 + $0x60] sm:$0xff] %v2000
      %2017 = vst [vmem:[#allocation2 + $0x68] sm:$0xff] %v2001
      %2018 = vst [vmem:[#allocation2 + $0x70] sm:$0xff] %v2002
      %2019 = vst [vmem:[#allocation2 + $0x78] sm:$0xff] %v2003
      %p2020 = scmp.eq.s32.totalorder %s27, 3
      // Predicated region
      $region69: #{_forward_impl.1} parent=63 // pred_check
        %p2021 = pneg %p2020
      $region70: #{_forward_impl.1} parent=63 // pred_check_branch
        %2023 = sbr.rel (%p2021) target = $region72
      $region71: #{_forward_impl.1} parent=63 // pred_region
        %v2024 = vld [vmem:[#allocation2] sm:$0xff]
        %v2025 = vld [vmem:[#allocation2 + $0x8] sm:$0xff]
        %v2026 = vld [vmem:[#allocation2 + $0x10] sm:$0xff]
        %v2027 = vld [vmem:[#allocation2 + $0x18] sm:$0xff]
        %v2028 = vld [vmem:[#allocation2 + $0x20] sm:$0xff]
        %v2029 = vld [vmem:[#allocation2 + $0x28] sm:$0xff]
        %v2030 = vld [vmem:[#allocation2 + $0x30] sm:$0xff]
        %v2031 = vld [vmem:[#allocation2 + $0x38] sm:$0xff]
        %v2032 = vld [vmem:[#allocation2 + $0x40] sm:$0xff]
        %v2033 = vld [vmem:[#allocation2 + $0x48] sm:$0xff]
        %v2034 = vld [vmem:[#allocation2 + $0x50] sm:$0xff]
        %v2035 = vld [vmem:[#allocation2 + $0x58] sm:$0xff]
        %v2036 = vld [vmem:[#allocation2 + $0x60] sm:$0xff]
        %v2037 = vld [vmem:[#allocation2 + $0x68] sm:$0xff]
        %v2038 = vld [vmem:[#allocation2 + $0x70] sm:$0xff]
        %v2039 = vld [vmem:[#allocation2 + $0x78] sm:$0xff]
        %v2040 = vld [vmem:[#allocation3] sm:$0xff]
        %v2041 = vld [vmem:[#allocation3 + $0x8] sm:$0xff]
        %v2042 = vld [vmem:[#allocation3 + $0x10] sm:$0xff]
        %v2043 = vld [vmem:[#allocation3 + $0x18] sm:$0xff]
        %v2044 = vld [vmem:[#allocation3 + $0x20] sm:$0xff]
        %v2045 = vld [vmem:[#allocation3 + $0x28] sm:$0xff]
        %v2046 = vld [vmem:[#allocation3 + $0x30] sm:$0xff]
        %v2047 = vld [vmem:[#allocation3 + $0x38] sm:$0xff]
        %v2048 = vld [vmem:[#allocation3 + $0x40] sm:$0xff]
        %v2049 = vld [vmem:[#allocation3 + $0x48] sm:$0xff]
        %v2050 = vld [vmem:[#allocation3 + $0x50] sm:$0xff]
        %v2051 = vld [vmem:[#allocation3 + $0x58] sm:$0xff]
        %v2052 = vld [vmem:[#allocation3 + $0x60] sm:$0xff]
        %v2053 = vld [vmem:[#allocation3 + $0x68] sm:$0xff]
        %v2054 = vld [vmem:[#allocation3 + $0x70] sm:$0xff]
        %v2055 = vld [vmem:[#allocation3 + $0x78] sm:$0xff]
        %v2056 = vadd.f32 %v2024, %v2040
        %v2057 = vadd.f32 %v2025, %v2041
        %v2058 = vadd.f32 %v2026, %v2042
        %v2059 = vadd.f32 %v2027, %v2043
        %v2060 = vadd.f32 %v2028, %v2044
        %v2061 = vadd.f32 %v2029, %v2045
        %v2062 = vadd.f32 %v2030, %v2046
        %v2063 = vadd.f32 %v2031, %v2047
        %v2064 = vadd.f32 %v2032, %v2048
        %v2065 = vadd.f32 %v2033, %v2049
        %v2066 = vadd.f32 %v2034, %v2050
        %v2067 = vadd.f32 %v2035, %v2051
        %v2068 = vadd.f32 %v2036, %v2052
        %v2069 = vadd.f32 %v2037, %v2053
        %v2070 = vadd.f32 %v2038, %v2054
        %v2071 = vadd.f32 %v2039, %v2055
        %v2072 = vpack.c.bf16 %v2057, %v2056
        %v2073 = vpack.c.bf16 %v2059, %v2058
        %v2074 = vpack.c.bf16 %v2061, %v2060
        %v2075 = vpack.c.bf16 %v2063, %v2062
        %v2076 = vpack.c.bf16 %v2065, %v2064
        %v2077 = vpack.c.bf16 %v2067, %v2066
        %v2078 = vpack.c.bf16 %v2069, %v2068
        %v2079 = vpack.c.bf16 %v2071, %v2070
        %v2080 = vld [vmem:[%s10] sm:$0xf]
        %v2081 = vld [vmem:[%s10 + $0x4] sm:$0xf]
        %v2082 = vld [vmem:[%s10 + $0x8] sm:$0xf]
        %v2083 = vld [vmem:[%s10 + $0xc] sm:$0xf]
        %v2084 = vld [vmem:[%s10 + $0x10] sm:$0xf]
        %v2085 = vld [vmem:[%s10 + $0x14] sm:$0xf]
        %v2086 = vld [vmem:[%s10 + $0x18] sm:$0xf]
        %v2087 = vld [vmem:[%s10 + $0x1c] sm:$0xf]
        %v2088 = vld [vmem:[%s10 + $0x20] sm:$0xf]
        %v2089 = vld [vmem:[%s10 + $0x24] sm:$0xf]
        %v2090 = vld [vmem:[%s10 + $0x28] sm:$0xf]
        %v2091 = vld [vmem:[%s10 + $0x2c] sm:$0xf]
        %v2092 = vld [vmem:[%s10 + $0x30] sm:$0xf]
        %v2093 = vld [vmem:[%s10 + $0x34] sm:$0xf]
        %v2094 = vld [vmem:[%s10 + $0x38] sm:$0xf]
        %v2095 = vld [vmem:[%s10 + $0x3c] sm:$0xf]
        %v2112 = vunpack.c.l.b16 %v2080
        %v2113 = vunpack.c.l.b16 %v2081
        %v2114 = vunpack.c.l.b16 %v2082
        %v2115 = vunpack.c.l.b16 %v2083
        %v2116 = vunpack.c.l.b16 %v2084
        %v2117 = vunpack.c.l.b16 %v2085
        %v2118 = vunpack.c.l.b16 %v2086
        %v2119 = vunpack.c.l.b16 %v2087
        %v2120 = vunpack.c.l.b16 %v2088
        %v2121 = vunpack.c.l.b16 %v2089
        %v2122 = vunpack.c.l.b16 %v2090
        %v2123 = vunpack.c.l.b16 %v2091
        %v2124 = vunpack.c.l.b16 %v2092
        %v2125 = vunpack.c.l.b16 %v2093
        %v2126 = vunpack.c.l.b16 %v2094
        %v2127 = vunpack.c.l.b16 %v2095
        %v2128 = vpack.c.b16 %v2113, %v2112
        %v2129 = vpack.c.b16 %v2115, %v2114
        %v2130 = vpack.c.b16 %v2117, %v2116
        %v2131 = vpack.c.b16 %v2119, %v2118
        %v2132 = vpack.c.b16 %v2121, %v2120
        %v2133 = vpack.c.b16 %v2123, %v2122
        %v2134 = vpack.c.b16 %v2125, %v2124
        %v2135 = vpack.c.b16 %v2127, %v2126
        %2144 = vmatprep.subr.bf16.mxu0 0
        %2145 = vmatpush1.bf16.msra.mxu0 %v2128
        %2146 = vmatprep.subr.bf16.mxu0 0
        %2147 = vmatpush1.bf16.msra.mxu0 %v2129
        %2148 = vmatprep.subr.bf16.mxu0 0
        %2149 = vmatpush1.bf16.msra.mxu0 %v2130
        %2150 = vmatprep.subr.bf16.mxu0 0
        %2151 = vmatpush1.bf16.msra.mxu0 %v2131
        %2152 = vmatprep.subr.bf16.mxu0 0
        %2153 = vmatpush1.bf16.msra.mxu0 %v2132
        %2154 = vmatprep.subr.bf16.mxu0 0
        %2155 = vmatpush1.bf16.msra.mxu0 %v2133
        %2156 = vmatprep.subr.bf16.mxu0 0
        %2157 = vmatpush1.bf16.msra.mxu0 %v2134
        %2158 = vmatprep.subr.bf16.mxu0 0
        %2159 = vmatpush1.bf16.msra.mxu0 %v2135
        %2160 = vmatprep.subr.bf16.mxu0 0
        %2161 = vmatpush1.bf16.msra.mxu0 0
        %2162 = vmatprep.subr.bf16.mxu0 0
        %2163 = vmatpush1.bf16.msra.mxu0 0
        %2164 = vmatprep.subr.bf16.mxu0 0
        %2165 = vmatpush1.bf16.msra.mxu0 0
        %2166 = vmatprep.subr.bf16.mxu0 0
        %2167 = vmatpush1.bf16.msra.mxu0 0
        %2168 = vmatprep.subr.bf16.mxu0 0
        %2169 = vmatpush1.bf16.msra.mxu0 0
        %2170 = vmatprep.subr.bf16.mxu0 0
        %2171 = vmatpush1.bf16.msra.mxu0 0
        %2172 = vmatprep.subr.bf16.mxu0 0
        %2173 = vmatpush1.bf16.msra.mxu0 0
        %2174 = vmatprep.subr.bf16.mxu0 0
        %2175 = vmatpush1.bf16.msra.mxu0 0
        %2176 = vmatprep.mubr.bf16.mxu0 0
        %2177 = vmatmul.mubr.bf16.gmra.mrb[0].mxu0 %v2072
        %v2178 = vpop.f32.mrb[0].mxu0
        %v2179 = vadd.f32 0.0, %v2178
        %v2180 = vpop.f32.mrb[0].mxu0
        %v2181 = vpop.f32.mrb[0].mxu0
        %v2182 = vadd.f32 0.0, %v2181
        %v2183 = vpop.f32.mrb[0].mxu0
        %2184 = vmatprep.mubr.bf16.mxu0 0
        %2185 = vmatmul.mubr.bf16.gmra.mrb[0].mxu0 %v2073
        %v2186 = vpop.f32.mrb[0].mxu0
        %v2187 = vadd.f32 0.0, %v2186
        %v2188 = vpop.f32.mrb[0].mxu0
        %v2189 = vpop.f32.mrb[0].mxu0
        %v2190 = vadd.f32 0.0, %v2189
        %v2191 = vpop.f32.mrb[0].mxu0
        %2192 = vmatprep.mubr.bf16.mxu0 0
        %2193 = vmatmul.mubr.bf16.gmra.mrb[0].mxu0 %v2074
        %v2194 = vpop.f32.mrb[0].mxu0
        %v2195 = vadd.f32 0.0, %v2194
        %v2196 = vpop.f32.mrb[0].mxu0
        %v2197 = vpop.f32.mrb[0].mxu0
        %v2198 = vadd.f32 0.0, %v2197
        %v2199 = vpop.f32.mrb[0].mxu0
        %2200 = vmatprep.mubr.bf16.mxu0 0
        %2201 = vmatmul.mubr.bf16.gmra.mrb[0].mxu0 %v2075
        %v2202 = vpop.f32.mrb[0].mxu0
        %v2203 = vadd.f32 0.0, %v2202
        %v2204 = vpop.f32.mrb[0].mxu0
        %v2205 = vpop.f32.mrb[0].mxu0
        %v2206 = vadd.f32 0.0, %v2205
        %v2207 = vpop.f32.mrb[0].mxu0
        %2208 = vmatprep.mubr.bf16.mxu0 0
        %2209 = vmatmul.mubr.bf16.gmra.mrb[0].mxu0 %v2076
        %v2210 = vpop.f32.mrb[0].mxu0
        %v2211 = vadd.f32 0.0, %v2210
        %v2212 = vpop.f32.mrb[0].mxu0
        %v2213 = vpop.f32.mrb[0].mxu0
        %v2214 = vadd.f32 0.0, %v2213
        %v2215 = vpop.f32.mrb[0].mxu0
        %2216 = vmatprep.mubr.bf16.mxu0 0
        %2217 = vmatmul.mubr.bf16.gmra.mrb[0].mxu0 %v2077
        %v2218 = vpop.f32.mrb[0].mxu0
        %v2219 = vadd.f32 0.0, %v2218
        %v2220 = vpop.f32.mrb[0].mxu0
        %v2221 = vpop.f32.mrb[0].mxu0
        %v2222 = vadd.f32 0.0, %v2221
        %v2223 = vpop.f32.mrb[0].mxu0
        %2224 = vmatprep.mubr.bf16.mxu0 0
        %2225 = vmatmul.mubr.bf16.gmra.mrb[0].mxu0 %v2078
        %v2226 = vpop.f32.mrb[0].mxu0
        %v2227 = vadd.f32 0.0, %v2226
        %v2228 = vpop.f32.mrb[0].mxu0
        %v2229 = vpop.f32.mrb[0].mxu0
        %v2230 = vadd.f32 0.0, %v2229
        %v2231 = vpop.f32.mrb[0].mxu0
        %2232 = vmatprep.mubr.bf16.mxu0 0
        %2233 = vmatmul.mubr.bf16.gmra.mrb[0].mxu0 %v2079
        %v2234 = vpop.f32.mrb[0].mxu0
        %v2235 = vadd.f32 0.0, %v2234
        %v2236 = vpop.f32.mrb[0].mxu0
        %v2237 = vpop.f32.mrb[0].mxu0
        %v2238 = vadd.f32 0.0, %v2237
        %v2239 = vpop.f32.mrb[0].mxu0
        %2240 = vdwg.mxu0
        %v2241 = vlaneseq
        %v2242 = vand.u32 %v2241, 127
        %vm2243 = vcmp.lt.s32.totalorder %v2242, 2
        %v2244 = vsel %vm2243, %v2179, -1e+30
        %v2245 = vsel %vm2243, %v2182, -1e+30
        %v2246 = vsel %vm2243, %v2187, -1e+30
        %v2247 = vsel %vm2243, %v2190, -1e+30
        %v2248 = vsel %vm2243, %v2195, -1e+30
        %v2249 = vsel %vm2243, %v2198, -1e+30
        %v2250 = vsel %vm2243, %v2203, -1e+30
        %v2251 = vsel %vm2243, %v2206, -1e+30
        %v2252 = vsel %vm2243, %v2211, -1e+30
        %v2253 = vsel %vm2243, %v2214, -1e+30
        %v2254 = vsel %vm2243, %v2219, -1e+30
        %v2255 = vsel %vm2243, %v2222, -1e+30
        %v2256 = vsel %vm2243, %v2227, -1e+30
        %v2257 = vsel %vm2243, %v2230, -1e+30
        %v2258 = vsel %vm2243, %v2235, -1e+30
        %v2259 = vsel %vm2243, %v2238, -1e+30
        %2260 = vmax.xlane.f32.xlu0 %v2244
        %v2261 = vpop.xlane.xlu0 %2260
        %2262 = vmax.xlane.f32.xlu0 %v2245
        %v2263 = vpop.xlane.xlu0 %2262
        %2264 = vmax.xlane.f32.xlu0 %v2246
        %v2265 = vpop.xlane.xlu0 %2264
        %2266 = vmax.xlane.f32.xlu0 %v2247
        %v2267 = vpop.xlane.xlu0 %2266
        %2268 = vmax.xlane.f32.xlu0 %v2248
        %v2269 = vpop.xlane.xlu0 %2268
        %2270 = vmax.xlane.f32.xlu0 %v2249
        %v2271 = vpop.xlane.xlu0 %2270
        %2272 = vmax.xlane.f32.xlu0 %v2250
        %v2273 = vpop.xlane.xlu0 %2272
        %2274 = vmax.xlane.f32.xlu0 %v2251
        %v2275 = vpop.xlane.xlu0 %2274
        %2276 = vmax.xlane.f32.xlu0 %v2252
        %v2277 = vpop.xlane.xlu0 %2276
        %2278 = vmax.xlane.f32.xlu0 %v2253
        %v2279 = vpop.xlane.xlu0 %2278
        %2280 = vmax.xlane.f32.xlu0 %v2254
        %v2281 = vpop.xlane.xlu0 %2280
        %2282 = vmax.xlane.f32.xlu0 %v2255
        %v2283 = vpop.xlane.xlu0 %2282
        %2284 = vmax.xlane.f32.xlu0 %v2256
        %v2285 = vpop.xlane.xlu0 %2284
        %2286 = vmax.xlane.f32.xlu0 %v2257
        %v2287 = vpop.xlane.xlu0 %2286
        %2288 = vmax.xlane.f32.xlu0 %v2258
        %v2289 = vpop.xlane.xlu0 %2288
        %2290 = vmax.xlane.f32.xlu0 %v2259
        %v2291 = vpop.xlane.xlu0 %2290
        %v2292 = vsub.f32 %v2244, %v2261
        %v2293 = vsub.f32 %v2245, %v2263
        %v2294 = vsub.f32 %v2246, %v2265
        %v2295 = vsub.f32 %v2247, %v2267
        %v2296 = vsub.f32 %v2248, %v2269
        %v2297 = vsub.f32 %v2249, %v2271
        %v2298 = vsub.f32 %v2250, %v2273
        %v2299 = vsub.f32 %v2251, %v2275
        %v2300 = vsub.f32 %v2252, %v2277
        %v2301 = vsub.f32 %v2253, %v2279
        %v2302 = vsub.f32 %v2254, %v2281
        %v2303 = vsub.f32 %v2255, %v2283
        %v2304 = vsub.f32 %v2256, %v2285
        %v2305 = vsub.f32 %v2257, %v2287
        %v2306 = vsub.f32 %v2258, %v2289
        %v2307 = vsub.f32 %v2259, %v2291
        %v2308 = vmul.f32 %v2292, 1.442695
        %v2309 = vpow.pop %v2308
        %v2310 = vmul.f32 %v2293, 1.442695
        %v2311 = vpow.pop %v2310
        %v2312 = vmul.f32 %v2294, 1.442695
        %v2313 = vpow.pop %v2312
        %v2314 = vmul.f32 %v2295, 1.442695
        %v2315 = vpow.pop %v2314
        %v2316 = vmul.f32 %v2296, 1.442695
        %v2317 = vpow.pop %v2316
        %v2318 = vmul.f32 %v2297, 1.442695
        %v2319 = vpow.pop %v2318
        %v2320 = vmul.f32 %v2298, 1.442695
        %v2321 = vpow.pop %v2320
        %v2322 = vmul.f32 %v2299, 1.442695
        %v2323 = vpow.pop %v2322
        %v2324 = vmul.f32 %v2300, 1.442695
        %v2325 = vpow.pop %v2324
        %v2326 = vmul.f32 %v2301, 1.442695
        %v2327 = vpow.pop %v2326
        %v2328 = vmul.f32 %v2302, 1.442695
        %v2329 = vpow.pop %v2328
        %v2330 = vmul.f32 %v2303, 1.442695
        %v2331 = vpow.pop %v2330
        %v2332 = vmul.f32 %v2304, 1.442695
        %v2333 = vpow.pop %v2332
        %v2334 = vmul.f32 %v2305, 1.442695
        %v2335 = vpow.pop %v2334
        %v2336 = vmul.f32 %v2306, 1.442695
        %v2337 = vpow.pop %v2336
        %v2338 = vmul.f32 %v2307, 1.442695
        %v2339 = vpow.pop %v2338
        %2340 = vadd.xlane.f32.xlu0 %v2309
        %v2341 = vpop.xlane.xlu0 %2340
        %2342 = vadd.xlane.f32.xlu0 %v2311
        %v2343 = vpop.xlane.xlu0 %2342
        %2344 = vadd.xlane.f32.xlu0 %v2313
        %v2345 = vpop.xlane.xlu0 %2344
        %2346 = vadd.xlane.f32.xlu0 %v2315
        %v2347 = vpop.xlane.xlu0 %2346
        %2348 = vadd.xlane.f32.xlu0 %v2317
        %v2349 = vpop.xlane.xlu0 %2348
        %2350 = vadd.xlane.f32.xlu0 %v2319
        %v2351 = vpop.xlane.xlu0 %2350
        %2352 = vadd.xlane.f32.xlu0 %v2321
        %v2353 = vpop.xlane.xlu0 %2352
        %2354 = vadd.xlane.f32.xlu0 %v2323
        %v2355 = vpop.xlane.xlu0 %2354
        %2356 = vadd.xlane.f32.xlu0 %v2325
        %v2357 = vpop.xlane.xlu0 %2356
        %2358 = vadd.xlane.f32.xlu0 %v2327
        %v2359 = vpop.xlane.xlu0 %2358
        %2360 = vadd.xlane.f32.xlu0 %v2329
        %v2361 = vpop.xlane.xlu0 %2360
        %2362 = vadd.xlane.f32.xlu0 %v2331
        %v2363 = vpop.xlane.xlu0 %2362
        %2364 = vadd.xlane.f32.xlu0 %v2333
        %v2365 = vpop.xlane.xlu0 %2364
        %2366 = vadd.xlane.f32.xlu0 %v2335
        %v2367 = vpop.xlane.xlu0 %2366
        %2368 = vadd.xlane.f32.xlu0 %v2337
        %v2369 = vpop.xlane.xlu0 %2368
        %2370 = vadd.xlane.f32.xlu0 %v2339
        %v2371 = vpop.xlane.xlu0 %2370
        %v2372 = vrcp.pop %v2341
        %v2373 = vmul.f32 %v2309, %v2372
        %v2374 = vrcp.pop %v2343
        %v2375 = vmul.f32 %v2311, %v2374
        %v2376 = vrcp.pop %v2345
        %v2377 = vmul.f32 %v2313, %v2376
        %v2378 = vrcp.pop %v2347
        %v2379 = vmul.f32 %v2315, %v2378
        %v2380 = vrcp.pop %v2349
        %v2381 = vmul.f32 %v2317, %v2380
        %v2382 = vrcp.pop %v2351
        %v2383 = vmul.f32 %v2319, %v2382
        %v2384 = vrcp.pop %v2353
        %v2385 = vmul.f32 %v2321, %v2384
        %v2386 = vrcp.pop %v2355
        %v2387 = vmul.f32 %v2323, %v2386
        %v2388 = vrcp.pop %v2357
        %v2389 = vmul.f32 %v2325, %v2388
        %v2390 = vrcp.pop %v2359
        %v2391 = vmul.f32 %v2327, %v2390
        %v2392 = vrcp.pop %v2361
        %v2393 = vmul.f32 %v2329, %v2392
        %v2394 = vrcp.pop %v2363
        %v2395 = vmul.f32 %v2331, %v2394
        %v2396 = vrcp.pop %v2365
        %v2397 = vmul.f32 %v2333, %v2396
        %v2398 = vrcp.pop %v2367
        %v2399 = vmul.f32 %v2335, %v2398
        %v2400 = vrcp.pop %v2369
        %v2401 = vmul.f32 %v2337, %v2400
        %v2402 = vrcp.pop %v2371
        %v2403 = vmul.f32 %v2339, %v2402
        %2404 = vst [vmem:[%s462] sm:$0xff] %v2373
        %2405 = vst [vmem:[%s462 + $0x8] sm:$0xff] %v2375
        %2406 = vst [vmem:[%s462 + $0x10] sm:$0xff] %v2377
        %2407 = vst [vmem:[%s462 + $0x18] sm:$0xff] %v2379
        %2408 = vst [vmem:[%s462 + $0x20] sm:$0xff] %v2381
        %2409 = vst [vmem:[%s462 + $0x28] sm:$0xff] %v2383
        %2410 = vst [vmem:[%s462 + $0x30] sm:$0xff] %v2385
        %2411 = vst [vmem:[%s462 + $0x38] sm:$0xff] %v2387
        %2412 = vst [vmem:[%s462 + $0x40] sm:$0xff] %v2389
        %2413 = vst [vmem:[%s462 + $0x48] sm:$0xff] %v2391
        %2414 = vst [vmem:[%s462 + $0x50] sm:$0xff] %v2393
        %2415 = vst [vmem:[%s462 + $0x58] sm:$0xff] %v2395
        %2416 = vst [vmem:[%s462 + $0x60] sm:$0xff] %v2397
        %2417 = vst [vmem:[%s462 + $0x68] sm:$0xff] %v2399
        %2418 = vst [vmem:[%s462 + $0x70] sm:$0xff] %v2401
        %2419 = vst [vmem:[%s462 + $0x78] sm:$0xff] %v2403
      $region72: #{_forward_impl.1} parent=63 // pred_fallthru
        _
      %s2420 = smul.u32 16, %s26
      %p2421 = scmp.lt.s32.totalorder %s2420, 15
      %s2422 = scalar_select %p2421, %s2420, 15
      %s2423 = smul.addr %s2422, 8
      %s2424 = scalar_lea.vmem %s11, %s2423
      // Predicated region
      $region73: #{_forward_impl.1} parent=63 // pred_check
        %p2425 = pneg %p303
      $region74: #{_forward_impl.1} parent=63 // pred_check_branch
        %2427 = sbr.rel (%p2425) target = $region76
      $region75: #{_forward_impl.1} parent=63 // pred_region
        %s2428 = smul.u32 16, %s26
      $region76: #{_forward_impl.1} parent=63 // pred_fallthru
        _
      // Predicated region
      $region77: #{_forward_impl.1} parent=63 // pred_check
        %p2429 = pneg %p303
      $region78: #{_forward_impl.1} parent=63 // pred_check_branch
        %2431 = sbr.rel (%p2429) target = $region80
      $region79: #{_forward_impl.1} parent=63 // pred_region
        %s2432 = smul.u32 16, %s26
        %p2433 = scmp.lt.s32.totalorder %s2432, 15
        %s2434 = scalar_select %p2433, %s2432, 15
        %s2435 = smul.addr %s2434, 8
        %s2436 = scalar_lea.vmem %s11, %s2435
      $region80: #{_forward_impl.1} parent=63 // pred_fallthru
        _
    $region64: #{_forward_impl.1} parent=5 // pred_fallthru
      _
    %p2437 = scmp.le.s32.totalorder 2, %s17
    // Predicated region
    $region81: #{_forward_impl.1} parent=5 // pred_check
      %p2438 = pneg %p2437
    $region82: #{_forward_impl.1} parent=5 // pred_check_branch
      %2440 = sbr.rel (%p2438) target = $region84
    $region83: #{_forward_impl.1} parent=5 // pred_region
      %s2441 = ssub.s32 %s17, 2
    $region84: #{_forward_impl.1} parent=5 // pred_fallthru
      _
  $region6: #{_forward_impl.1} parent=0 // loop_footer
    %s21 = sadd.s32 1, %s17
  $region7: #{_forward_impl.1} parent=0 // loop_footer_branch
    %16 = sbr.rel target = $region3
  $region8: #{_forward_impl.1} parent=0 // loop_exit
    _

// kernel: _forward_impl.1
$region0: #{_forward_impl.1}
  #allocation0 [shape = 'u32[]', space=smem, size = 0x4, offset = 0x4, fixed_abs, tag = 'smem constant byte address 0x4 - core index']
  #allocation1 [shape = 'u32[144,128]{1,0:T(1,128)}', space=vmem, size = 0x12000, scoped, tag = 'internal scratch']
  #allocation2 [shape = 'f32[128,128]{1,0:T(8,128)}', space=vmem, size = 0x10000, scoped, tag = 'scratch operand']
  #allocation3 [shape = 'f32[128,128]{1,0:T(8,128)}', space=vmem, size = 0x10000, scoped, tag = 'scratch operand']
  %s0 = inlined_call_operand.vmem [shape: bf16[128,128], index: 0, kind: input, shape index: {}]
  %s1 = inlined_call_operand.vmem [shape: f32[128,128], index: 1, kind: input, shape index: {}]
  %s2 = inlined_call_operand.vmem [shape: bf16[128,128], index: 2, kind: input, shape index: {}]
  %s3 = inlined_call_operand.vmem [shape: f32[1,128], index: 3, kind: input, shape index: {}]
  %s4 = inlined_call_operand.vmem [shape: f32[1,128], index: 4, kind: input, shape index: {}]
  %s5 = inlined_call_operand.vmem [shape: bf16[128,128], index: 5, kind: input, shape index: {}]
  %s6 = inlined_call_operand.vmem [shape: bf16[128,128], index: 6, kind: input, shape index: {}]
  %s7 = inlined_call_operand.vmem [shape: bf16[128,128], index: 7, kind: input, shape index: {}]
  %s8 = inlined_call_operand.vmem [shape: bf16[4,128,128], index: 8, kind: input, shape index: {}]
  %s9 = inlined_call_operand.vmem [shape: bf16[4,128,128], index: 9, kind: input, shape index: {}]
  %s10 = inlined_call_operand.vmem [shape: bf16[128,128], index: 10, kind: input, shape index: {}]
  %s11 = inlined_call_operand.vmem [shape: f32[128,128], index: 11, kind: output, shape index: {}]
  %s12 = sld [smem:[#allocation0]]
  $region85: #{_forward_impl.1} parent=0
    _
  %s14 = ssub.s32 1, %s12
  %s15 = scalar_select 0, %s14, %s12
  loop: start=0, step=1, limit=6
  $region2: #{_forward_impl.1} parent=0 // loop_pre_header
    _
  $region3: #{_forward_impl.1} parent=0 // loop_header
    %s17 = sphi 0, %s21
    %p18 = scmp.ge.s32.totalorder %s17, 6
    %s24 = sphi 0, %s36
    %s25 = sphi 0, %s32
    %s26 = sphi 0, %s24
    %s27 = sphi 0, %s25
    %s28 = sphi 0, %s26
    %s29 = sphi 0, %s27
    %s39 = sphi 0, %s41
    %s42 = sphi 0, %s39
    %s43 = sphi 0, %s42
    %s59 = sphi 0, %s43
    %s65 = sphi 0, %s67
    %s68 = sphi 0, %s65
    %s69 = sphi 0, %s68
    %s85 = sphi 0, %s69
    %s89 = sphi 0, %s89
    %s91 = sphi 0, %s89
    %s92 = sphi 0, %s91
    %s106 = sphi 0, %s92
    %s110 = sphi 0, %s110
    %s112 = sphi 0, %s110
    %s113 = sphi 0, %s112
    %s127 = sphi 0, %s113
    %s131 = sphi 0, %s131
    %s133 = sphi 0, %s131
    %s134 = sphi 0, %s133
    %s148 = sphi 0, %s134
    %s152 = sphi 0, %s152
    %s154 = sphi 0, %s152
    %s155 = sphi 0, %s154
    %s169 = sphi 0, %s155
    %s173 = sphi 0, %s173
    %s175 = sphi 0, %s173
    %s176 = sphi 0, %s175
    %s190 = sphi 0, %s176
    %s194 = sphi 0, %s194
    %s196 = sphi 0, %s194
    %s197 = sphi 0, %s196
    %s211 = sphi 0, %s197
    %s217 = sphi 0, %s219
    %s220 = sphi 0, %s217
    %s221 = sphi 0, %s220
    %s237 = sphi 0, %s221
    %s243 = sphi 0, %s245
    %s246 = sphi 0, %s243
    %s247 = sphi 0, %s246
    %s263 = sphi 0, %s247
    %s267 = sphi 0, %s267
    %s269 = sphi 0, %s267
    %s270 = sphi 0, %s269
    %s284 = sphi 0, %s270
    %s290 = sphi 0, %s292
    %s293 = sphi 0, %s290
    %s294 = sphi 0, %s293
    %s310 = sphi 0, %s294
  $region4: #{_forward_impl.1} parent=0 // loop_header_branch
    %20 = sbr.rel (%p18) target = $region8
  $region5: #{_forward_impl.1} parent=0 // loop_body
    %s22 = ssub.s32 %s17, 1
    %s23 = ssub.s32 %s17, 2
    %s30 = sadd.s32 1, %s25
    %p31 = scmp.ge.s32.totalorder %s30, 4
    %s32 = scalar_select %p31, 0, %s30
    %s33 = sadd.s32 1, %s24
    %s34 = scalar_select %p31, %s33, %s24
    %p35 = scmp.ge.s32.totalorder %s34, 1
    %s36 = scalar_select %p35, 0, %s34
    %s37 = ssub.s32 %s24, %s36
    %p38 = scmp.eq.s32.totalorder %s37, 0
    %s40 = sadd.s32 %s39, 1
    %s41 = scalar_select %p38, %s39, %s40
    %p44 = pneg %p38
    %p45 = scmp.eq.s32.totalorder %s17, 3
    %p46 = por %p44, %p45
    %p47 = scmp.ne.s32.totalorder %s39, %s42
    %p48 = scmp.eq.s32.totalorder %s17, 0
    %p49 = por %p47, %p48
    %p50 = scmp.ne.s32.totalorder %s39, %s42
    %p51 = scmp.eq.s32.totalorder %s22, 3
    %p52 = por %p50, %p51
    %p53 = scmp.ne.s32.totalorder %s42, %s43
    %p54 = scmp.eq.s32.totalorder %s22, 0
    %p55 = por %p53, %p54
    %p56 = scmp.ne.s32.totalorder %s42, %s43
    %p57 = scmp.eq.s32.totalorder %s23, 3
    %p58 = por %p56, %p57
    %p60 = scmp.ne.s32.totalorder %s43, %s59
    %p61 = scmp.eq.s32.totalorder %s23, 0
    %p62 = por %p60, %p61
    %s63 = ssub.s32 %s24, %s36
    %p64 = scmp.eq.s32.totalorder %s63, 0
    %s66 = sadd.s32 %s65, 1
    %s67 = scalar_select %p64, %s65, %s66
    %p70 = pneg %p64
    %p71 = scmp.eq.s32.totalorder %s17, 3
    %p72 = por %p70, %p71
    %p73 = scmp.ne.s32.totalorder %s65, %s68
    %p74 = scmp.eq.s32.totalorder %s17, 0
    %p75 = por %p73, %p74
    %p76 = scmp.ne.s32.totalorder %s65, %s68
    %p77 = scmp.eq.s32.totalorder %s22, 3
    %p78 = por %p76, %p77
    %p79 = scmp.ne.s32.totalorder %s68, %s69
    %p80 = scmp.eq.s32.totalorder %s22, 0
    %p81 = por %p79, %p80
    %p82 = scmp.ne.s32.totalorder %s68, %s69
    %p83 = scmp.eq.s32.totalorder %s23, 3
    %p84 = por %p82, %p83
    %p86 = scmp.ne.s32.totalorder %s69, %s85
    %p87 = scmp.eq.s32.totalorder %s23, 0
    %p88 = por %p86, %p87
    %s90 = sadd.s32 %s89, 1
    %p93 = scmp.eq.s32.totalorder %s17, 3
    %p94 = scmp.ne.s32.totalorder %s89, %s91
    %p95 = scmp.eq.s32.totalorder %s17, 0
    %p96 = por %p94, %p95
    %p97 = scmp.ne.s32.totalorder %s89, %s91
    %p98 = scmp.eq.s32.totalorder %s22, 3
    %p99 = por %p97, %p98
    %p100 = scmp.ne.s32.totalorder %s91, %s92
    %p101 = scmp.eq.s32.totalorder %s22, 0
    %p102 = por %p100, %p101
    %p103 = scmp.ne.s32.totalorder %s91, %s92
    %p104 = scmp.eq.s32.totalorder %s23, 3
    %p105 = por %p103, %p104
    %p107 = scmp.ne.s32.totalorder %s92, %s106
    %p108 = scmp.eq.s32.totalorder %s23, 0
    %p109 = por %p107, %p108
    %s111 = sadd.s32 %s110, 1
    %p114 = scmp.eq.s32.totalorder %s17, 3
    %p115 = scmp.ne.s32.totalorder %s110, %s112
    %p116 = scmp.eq.s32.totalorder %s17, 0
    %p117 = por %p115, %p116
    %p118 = scmp.ne.s32.totalorder %s110, %s112
    %p119 = scmp.eq.s32.totalorder %s22, 3
    %p120 = por %p118, %p119
    %p121 = scmp.ne.s32.totalorder %s112, %s113
    %p122 = scmp.eq.s32.totalorder %s22, 0
    %p123 = por %p121, %p122
    %p124 = scmp.ne.s32.totalorder %s112, %s113
    %p125 = scmp.eq.s32.totalorder %s23, 3
    %p126 = por %p124, %p125
    %p128 = scmp.ne.s32.totalorder %s113, %s127
    %p129 = scmp.eq.s32.totalorder %s23, 0
    %p130 = por %p128, %p129
    %s132 = sadd.s32 %s131, 1
    %p135 = scmp.eq.s32.totalorder %s17, 3
    %p136 = scmp.ne.s32.totalorder %s131, %s133
    %p137 = scmp.eq.s32.totalorder %s17, 0
    %p138 = por %p136, %p137
    %p139 = scmp.ne.s32.totalorder %s131, %s133
    %p140 = scmp.eq.s32.totalorder %s22, 3
    %p141 = por %p139, %p140
    %p142 = scmp.ne.s32.totalorder %s133, %s134
    %p143 = scmp.eq.s32.totalorder %s22, 0
    %p144 = por %p142, %p143
    %p145 = scmp.ne.s32.totalorder %s133, %s134
    %p146 = scmp.eq.s32.totalorder %s23, 3
    %p147 = por %p145, %p146
    %p149 = scmp.ne.s32.totalorder %s134, %s148
    %p150 = scmp.eq.s32.totalorder %s23, 0
    %p151 = por %p149, %p150
    %s153 = sadd.s32 %s152, 1
    %p156 = scmp.eq.s32.totalorder %s17, 3
    %p157 = scmp.ne.s32.totalorder %s152, %s154
    %p158 = scmp.eq.s32.totalorder %s17, 0
    %p159 = por %p157, %p158
    %p160 = scmp.ne.s32.totalorder %s152, %s154
    %p161 = scmp.eq.s32.totalorder %s22, 3
    %p162 = por %p160, %p161
    %p163 = scmp.ne.s32.totalorder %s154, %s155
    %p164 = scmp.eq.s32.totalorder %s22, 0
    %p165 = por %p163, %p164
    %p166 = scmp.ne.s32.totalorder %s154, %s155
    %p167 = scmp.eq.s32.totalorder %s23, 3
    %p168 = por %p166, %p167
    %p170 = scmp.ne.s32.totalorder %s155, %s169
    %p171 = scmp.eq.s32.totalorder %s23, 0
    %p172 = por %p170, %p171
    %s174 = sadd.s32 %s173, 1
    %p177 = scmp.eq.s32.totalorder %s17, 3
    %p178 = scmp.ne.s32.totalorder %s173, %s175
    %p179 = scmp.eq.s32.totalorder %s17, 0
    %p180 = por %p178, %p179
    %p181 = scmp.ne.s32.totalorder %s173, %s175
    %p182 = scmp.eq.s32.totalorder %s22, 3
    %p183 = por %p181, %p182
    %p184 = scmp.ne.s32.totalorder %s175, %s176
    %p185 = scmp.eq.s32.totalorder %s22, 0
    %p186 = por %p184, %p185
    %p187 = scmp.ne.s32.totalorder %s175, %s176
    %p188 = scmp.eq.s32.totalorder %s23, 3
    %p189 = por %p187, %p188
    %p191 = scmp.ne.s32.totalorder %s176, %s190
    %p192 = scmp.eq.s32.totalorder %s23, 0
    %p193 = por %p191, %p192
    %s195 = sadd.s32 %s194, 1
    %p198 = scmp.eq.s32.totalorder %s17, 3
    %p199 = scmp.ne.s32.totalorder %s194, %s196
    %p200 = scmp.eq.s32.totalorder %s17, 0
    %p201 = por %p199, %p200
    %p202 = scmp.ne.s32.totalorder %s194, %s196
    %p203 = scmp.eq.s32.totalorder %s22, 3
    %p204 = por %p202, %p203
    %p205 = scmp.ne.s32.totalorder %s196, %s197
    %p206 = scmp.eq.s32.totalorder %s22, 0
    %p207 = por %p205, %p206
    %p208 = scmp.ne.s32.totalorder %s196, %s197
    %p209 = scmp.eq.s32.totalorder %s23, 3
    %p210 = por %p208, %p209
    %p212 = scmp.ne.s32.totalorder %s197, %s211
    %p213 = scmp.eq.s32.totalorder %s23, 0
    %p214 = por %p212, %p213
    %s215 = ssub.s32 %s25, %s32
    %p216 = scmp.eq.s32.totalorder %s215, 0
    %s218 = sadd.s32 %s217, 1
    %s219 = scalar_select %p216, %s217, %s218
    %p222 = pneg %p216
    %p223 = scmp.eq.s32.totalorder %s17, 3
    %p224 = por %p222, %p223
    %p225 = scmp.ne.s32.totalorder %s217, %s220
    %p226 = scmp.eq.s32.totalorder %s17, 0
    %p227 = por %p225, %p226
    %p228 = scmp.ne.s32.totalorder %s217, %s220
    %p229 = scmp.eq.s32.totalorder %s22, 3
    %p230 = por %p228, %p229
    %p231 = scmp.ne.s32.totalorder %s220, %s221
    %p232 = scmp.eq.s32.totalorder %s22, 0
    %p233 = por %p231, %p232
    %p234 = scmp.ne.s32.totalorder %s220, %s221
    %p235 = scmp.eq.s32.totalorder %s23, 3
    %p236 = por %p234, %p235
    %p238 = scmp.ne.s32.totalorder %s221, %s237
    %p239 = scmp.eq.s32.totalorder %s23, 0
    %p240 = por %p238, %p239
    %s241 = ssub.s32 %s25, %s32
    %p242 = scmp.eq.s32.totalorder %s241, 0
    %s244 = sadd.s32 %s243, 1
    %s245 = scalar_select %p242, %s243, %s244
    %p248 = pneg %p242
    %p249 = scmp.eq.s32.totalorder %s17, 3
    %p250 = por %p248, %p249
    %p251 = scmp.ne.s32.totalorder %s243, %s246
    %p252 = scmp.eq.s32.totalorder %s17, 0
    %p253 = por %p251, %p252
    %p254 = scmp.ne.s32.totalorder %s243, %s246
    %p255 = scmp.eq.s32.totalorder %s22, 3
    %p256 = por %p254, %p255
    %p257 = scmp.ne.s32.totalorder %s246, %s247
    %p258 = scmp.eq.s32.totalorder %s22, 0
    %p259 = por %p257, %p258
    %p260 = scmp.ne.s32.totalorder %s246, %s247
    %p261 = scmp.eq.s32.totalorder %s23, 3
    %p262 = por %p260, %p261
    %p264 = scmp.ne.s32.totalorder %s247, %s263
    %p265 = scmp.eq.s32.totalorder %s23, 0
    %p266 = por %p264, %p265
    %s268 = sadd.s32 %s267, 1
    %p271 = scmp.eq.s32.totalorder %s17, 3
    %p272 = scmp.ne.s32.totalorder %s267, %s269
    %p273 = scmp.eq.s32.totalorder %s17, 0
    %p274 = por %p272, %p273
    %p275 = scmp.ne.s32.totalorder %s267, %s269
    %p276 = scmp.eq.s32.totalorder %s22, 3
    %p277 = por %p275, %p276
    %p278 = scmp.ne.s32.totalorder %s269, %s270
    %p279 = scmp.eq.s32.totalorder %s22, 0
    %p280 = por %p278, %p279
    %p281 = scmp.ne.s32.totalorder %s269, %s270
    %p282 = scmp.eq.s32.totalorder %s23, 3
    %p283 = por %p281, %p282
    %p285 = scmp.ne.s32.totalorder %s270, %s284
    %p286 = scmp.eq.s32.totalorder %s23, 0
    %p287 = por %p285, %p286
    %s288 = ssub.s32 %s24, %s36
    %p289 = scmp.eq.s32.totalorder %s288, 0
    %s291 = sadd.s32 %s290, 1
    %s292 = scalar_select %p289, %s290, %s291
    %p295 = pneg %p289
    %p296 = scmp.eq.s32.totalorder %s17, 3
    %p297 = por %p295, %p296
    %p298 = scmp.ne.s32.totalorder %s290, %s293
    %p299 = scmp.eq.s32.totalorder %s17, 0
    %p300 = por %p298, %p299
    %p301 = scmp.ne.s32.totalorder %s290, %s293
    %p302 = scmp.eq.s32.totalorder %s22, 3
    %p303 = por %p301, %p302
    %p304 = scmp.ne.s32.totalorder %s293, %s294
    %p305 = scmp.eq.s32.totalorder %s22, 0
    %p306 = por %p304, %p305
    %p307 = scmp.ne.s32.totalorder %s293, %s294
    %p308 = scmp.eq.s32.totalorder %s23, 3
    %p309 = por %p307, %p308
    %p311 = scmp.ne.s32.totalorder %s294, %s310
    %p312 = scmp.eq.s32.totalorder %s23, 0
    %p313 = por %p311, %p312
    %p314 = scmp.le.s32.totalorder 1, %s17
    %p315 = scmp.lt.s32.totalorder %s17, 5
    %p316 = pnand %p314, %p315
    %p317 = pneg %p316
    // Predicated region
    $region9: #{_forward_impl.1} parent=5 // pred_check
      _
    $region10: #{_forward_impl.1} parent=5 // pred_check_branch
      %319 = sbr.rel (%p316) target = $region12
    $region11: #{_forward_impl.1} parent=5 // pred_region
      %s320 = ssub.s32 %s17, 1
      // Predicated region
      $region13: #{_forward_impl.1} parent=11 // pred_check
        %p321 = pneg %p55
      $region14: #{_forward_impl.1} parent=11 // pred_check_branch
        %323 = sbr.rel (%p321) target = $region16
      $region15: #{_forward_impl.1} parent=11 // pred_region
        %s324 = smul.u32 16, %s26
        %p325 = scmp.lt.s32.totalorder %s324, 15
        %s326 = scalar_select %p325, %s324, 15
        %s327 = smul.addr %s326, 4
        %s328 = scalar_lea.vmem %s0, %s327
        %s329 = smul.u32 16, %s26
      $region16: #{_forward_impl.1} parent=11 // pred_fallthru
        _
      // Predicated region
      $region17: #{_forward_impl.1} parent=11 // pred_check
        %p330 = pneg %p81
      $region18: #{_forward_impl.1} parent=11 // pred_check_branch
        %332 = sbr.rel (%p330) target = $region20
      $region19: #{_forward_impl.1} parent=11 // pred_region
        %s333 = smul.u32 16, %s26
        %p334 = scmp.lt.s32.totalorder %s333, 15
        %s335 = scalar_select %p334, %s333, 15
        %s336 = smul.addr %s335, 8
        %s337 = scalar_lea.vmem %s1, %s336
        %s338 = smul.u32 16, %s26
      $region20: #{_forward_impl.1} parent=11 // pred_fallthru
        _
      // Predicated region
      $region21: #{_forward_impl.1} parent=11 // pred_check
        %p339 = pneg %p102
      $region22: #{_forward_impl.1} parent=11 // pred_check_branch
        %341 = sbr.rel (%p339) target = $region24
      $region23: #{_forward_impl.1} parent=11 // pred_region
        _
      $region24: #{_forward_impl.1} parent=11 // pred_fallthru
        _
      // Predicated region
      $region25: #{_forward_impl.1} parent=11 // pred_check
        %p342 = pneg %p123
      $region26: #{_forward_impl.1} parent=11 // pred_check_branch
        %344 = sbr.rel (%p342) target = $region28
      $region27: #{_forward_impl.1} parent=11 // pred_region
        _
      $region28: #{_forward_impl.1} parent=11 // pred_fallthru
        _
      // Predicated region
      $region29: #{_forward_impl.1} parent=11 // pred_check
        %p345 = pneg %p144
      $region30: #{_forward_impl.1} parent=11 // pred_check_branch
        %347 = sbr.rel (%p345) target = $region32
      $region31: #{_forward_impl.1} parent=11 // pred_region
        _
      $region32: #{_forward_impl.1} parent=11 // pred_fallthru
        _
      // Predicated region
      $region33: #{_forward_impl.1} parent=11 // pred_check
        %p348 = pneg %p165
      $region34: #{_forward_impl.1} parent=11 // pred_check_branch
        %350 = sbr.rel (%p348) target = $region36
      $region35: #{_forward_impl.1} parent=11 // pred_region
        _
      $region36: #{_forward_impl.1} parent=11 // pred_fallthru
        _
      // Predicated region
      $region37: #{_forward_impl.1} parent=11 // pred_check
        %p351 = pneg %p186
      $region38: #{_forward_impl.1} parent=11 // pred_check_branch
        %353 = sbr.rel (%p351) target = $region40
      $region39: #{_forward_impl.1} parent=11 // pred_region
        _
      $region40: #{_forward_impl.1} parent=11 // pred_fallthru
        _
      // Predicated region
      $region41: #{_forward_impl.1} parent=11 // pred_check
        %p354 = pneg %p207
      $region42: #{_forward_impl.1} parent=11 // pred_check_branch
        %356 = sbr.rel (%p354) target = $region44
      $region43: #{_forward_impl.1} parent=11 // pred_region
        _
      $region44: #{_forward_impl.1} parent=11 // pred_fallthru
        _
      // Predicated region
      $region45: #{_forward_impl.1} parent=11 // pred_check
        %p357 = pneg %p280
      $region46: #{_forward_impl.1} parent=11 // pred_check_branch
        %359 = sbr.rel (%p357) target = $region48
      $region47: #{_forward_impl.1} parent=11 // pred_region
        _
      $region48: #{_forward_impl.1} parent=11 // pred_fallthru
        _
    $region12: #{_forward_impl.1} parent=5 // pred_fallthru
      _
    %p360 = scmp.lt.s32.totalorder %s17, 4
    // Predicated region
    $region49: #{_forward_impl.1} parent=5 // pred_check
      %p361 = pneg %p360
    $region50: #{_forward_impl.1} parent=5 // pred_check_branch
      %363 = sbr.rel (%p361) target = $region52
    $region51: #{_forward_impl.1} parent=5 // pred_region
      // Predicated region
      $region53: #{_forward_impl.1} parent=51 // pred_check
        %p364 = pneg %p227
      $region54: #{_forward_impl.1} parent=51 // pred_check_branch
        %366 = sbr.rel (%p364) target = $region56
      $region55: #{_forward_impl.1} parent=51 // pred_region
        %p367 = scmp.lt.s32.totalorder %s25, 3
        %s368 = scalar_select %p367, %s25, 3
        %s369 = smul.addr %s368, 16
        %s370 = smul.addr %s369, 4
        %s371 = scalar_lea.vmem %s8, %s370
      $region56: #{_forward_impl.1} parent=51 // pred_fallthru
        _
      // Predicated region
      $region57: #{_forward_impl.1} parent=51 // pred_check
        %p372 = pneg %p253
      $region58: #{_forward_impl.1} parent=51 // pred_check_branch
        %374 = sbr.rel (%p372) target = $region60
      $region59: #{_forward_impl.1} parent=51 // pred_region
        %p375 = scmp.lt.s32.totalorder %s25, 3
        %s376 = scalar_select %p375, %s25, 3
        %s377 = smul.addr %s376, 16
        %s378 = smul.addr %s377, 4
        %s379 = scalar_lea.vmem %s9, %s378
      $region60: #{_forward_impl.1} parent=51 // pred_fallthru
        _
    $region52: #{_forward_impl.1} parent=5 // pred_fallthru
      _
    %p380 = scmp.le.s32.totalorder 1, %s17
    %p381 = scmp.lt.s32.totalorder %s17, 5
    %p382 = pnand %p380, %p381
    %p383 = pneg %p382
    // Predicated region
    $region61: #{_forward_impl.1} parent=5 // pred_check
      _
    $region62: #{_forward_impl.1} parent=5 // pred_check_branch
      %385 = sbr.rel (%p382) target = $region64
    $region63: #{_forward_impl.1} parent=5 // pred_region
      %s386 = ssub.s32 %s17, 1
      %s387 = smul.u32 16, %s26
      %p388 = scmp.lt.s32.totalorder %s387, 15
      %s389 = scalar_select %p388, %s387, 15
      %s390 = smul.addr %s389, 4
      %s391 = scalar_lea.vmem %s0, %s390
      %p392 = pneg %p55
      %p393 = pneg %p52
      %s394 = smul.u32 16, %s26
      %p395 = scmp.lt.s32.totalorder %s394, 15
      %s396 = scalar_select %p395, %s394, 15
      %s397 = smul.addr %s396, 8
      %s398 = scalar_lea.vmem %s1, %s397
      %p399 = pneg %p81
      %p400 = pneg %p78
      %p401 = pneg %p102
      %p402 = pneg %p99
      %p403 = pneg %p123
      %p404 = pneg %p120
      %p405 = pneg %p144
      %p406 = pneg %p141
      %p407 = pneg %p165
      %p408 = pneg %p162
      %p409 = pneg %p186
      %p410 = pneg %p183
      %p411 = pneg %p207
      %p412 = pneg %p204
      %p413 = scmp.lt.s32.totalorder %s27, 3
      %s414 = scalar_select %p413, %s27, 3
      %s415 = smul.addr %s414, 16
      %s416 = smul.addr %s415, 4
      %s417 = scalar_lea.vmem %s8, %s416
      %p418 = pneg %p233
      %p419 = pneg %p230
      %p420 = scmp.lt.s32.totalorder %s27, 3
      %s421 = scalar_select %p420, %s27, 3
      %s422 = smul.addr %s421, 16
      %s423 = smul.addr %s422, 4
      %s424 = scalar_lea.vmem %s9, %s423
      %p425 = pneg %p259
      %p426 = pneg %p256
      %p427 = pneg %p280
      %p428 = pneg %p277
      %p429 = pneg %p306
      %p430 = pneg %p303
      %s431 = smul.u32 16, %s26
      %p432 = scmp.lt.s32.totalorder %s431, 15
      %s433 = scalar_select %p432, %s431, 15
      %s434 = smul.addr %s433, 8
      %s435 = scalar_lea.vmem %s11, %s434
      %s436 = smul.u32 16, %s26
      %p437 = scmp.lt.s32.totalorder %s436, 15
      %s438 = scalar_select %p437, %s436, 15
      %s439 = smul.addr %s438, 4
      %s440 = scalar_lea.vmem %s0, %s439
      %s441 = smul.u32 16, %s26
      %s442 = smul.u32 16, %s26
      %p443 = scmp.lt.s32.totalorder %s442, 15
      %s444 = scalar_select %p443, %s442, 15
      %s445 = smul.addr %s444, 8
      %s446 = scalar_lea.vmem %s1, %s445
      %s447 = smul.u32 16, %s26
      %p448 = scmp.lt.s32.totalorder %s27, 3
      %s449 = scalar_select %p448, %s27, 3
      %s450 = smul.addr %s449, 16
      %s451 = smul.addr %s450, 4
      %s452 = scalar_lea.vmem %s8, %s451
      %p453 = scmp.lt.s32.totalorder %s27, 3
      %s454 = scalar_select %p453, %s27, 3
      %s455 = smul.addr %s454, 16
      %s456 = smul.addr %s455, 4
      %s457 = scalar_lea.vmem %s9, %s456
      %s458 = smul.u32 16, %s26
      %p459 = scmp.lt.s32.totalorder %s458, 15
      %s460 = scalar_select %p459, %s458, 15
      %s461 = smul.addr %s460, 8
      %s462 = scalar_lea.vmem %s11, %s461
      %s463 = smul.u32 16, %s26
      %p465 = scmp.eq.s32.totalorder %s27, 0
      // Predicated region
      $region65: #{_forward_impl.1} parent=63 // pred_check
        %p466 = pneg %p465
      $region66: #{_forward_impl.1} parent=63 // pred_check_branch
        %468 = sbr.rel (%p466) target = $region68
      $region67: #{_forward_impl.1} parent=63 // pred_region
        %v469 = vld [vmem:[%s440] sm:$0xf]
        %v470 = vld [vmem:[%s440 + $0x4] sm:$0xf]
        %v471 = vld [vmem:[%s440 + $0x8] sm:$0xf]
        %v472 = vld [vmem:[%s440 + $0xc] sm:$0xf]
        %v473 = vld [vmem:[%s440 + $0x10] sm:$0xf]
        %v474 = vld [vmem:[%s440 + $0x14] sm:$0xf]
        %v475 = vld [vmem:[%s440 + $0x18] sm:$0xf]
        %v476 = vld [vmem:[%s440 + $0x1c] sm:$0xf]
        %v477 = vld [vmem:[%s440 + $0x20] sm:$0xf]
        %v478 = vld [vmem:[%s440 + $0x24] sm:$0xf]
        %v479 = vld [vmem:[%s440 + $0x28] sm:$0xf]
        %v480 = vld [vmem:[%s440 + $0x2c] sm:$0xf]
        %v481 = vld [vmem:[%s440 + $0x30] sm:$0xf]
        %v482 = vld [vmem:[%s440 + $0x34] sm:$0xf]
        %v483 = vld [vmem:[%s440 + $0x38] sm:$0xf]
        %v484 = vld [vmem:[%s440 + $0x3c] sm:$0xf]
        %v485 = vld [vmem:[%s2] sm:$0xf]
        %v486 = vld [vmem:[%s2 + $0x4] sm:$0xf]
        %v487 = vld [vmem:[%s2 + $0x8] sm:$0xf]
        %v488 = vld [vmem:[%s2 + $0xc] sm:$0xf]
        %v489 = vld [vmem:[%s2 + $0x10] sm:$0xf]
        %v490 = vld [vmem:[%s2 + $0x14] sm:$0xf]
        %v491 = vld [vmem:[%s2 + $0x18] sm:$0xf]
        %v492 = vld [vmem:[%s2 + $0x1c] sm:$0xf]
        %v493 = vld [vmem:[%s2 + $0x20] sm:$0xf]
        %v494 = vld [vmem:[%s2 + $0x24] sm:$0xf]
        %v495 = vld [vmem:[%s2 + $0x28] sm:$0xf]
        %v496 = vld [vmem:[%s2 + $0x2c] sm:$0xf]
        %v497 = vld [vmem:[%s2 + $0x30] sm:$0xf]
        %v498 = vld [vmem:[%s2 + $0x34] sm:$0xf]
        %v499 = vld [vmem:[%s2 + $0x38] sm:$0xf]
        %v500 = vld [vmem:[%s2 + $0x3c] sm:$0xf]
        %v517 = vunpack.c.l.b16 %v469
        %v518 = vunpack.c.l.b16 %v470
        %v519 = vunpack.c.l.b16 %v471
        %v520 = vunpack.c.l.b16 %v472
        %v521 = vunpack.c.l.b16 %v473
        %v522 = vunpack.c.l.b16 %v474
        %v523 = vunpack.c.l.b16 %v475
        %v524 = vunpack.c.l.b16 %v476
        %v525 = vunpack.c.l.b16 %v477
        %v526 = vunpack.c.l.b16 %v478
        %v527 = vunpack.c.l.b16 %v479
        %v528 = vunpack.c.l.b16 %v480
        %v529 = vunpack.c.l.b16 %v481
        %v530 = vunpack.c.l.b16 %v482
        %v531 = vunpack.c.l.b16 %v483
        %v532 = vunpack.c.l.b16 %v484
        %v533 = vpack.c.b16 %v518, %v517
        %v534 = vpack.c.b16 %v520, %v519
        %v535 = vpack.c.b16 %v522, %v521
        %v536 = vpack.c.b16 %v524, %v523
        %v537 = vpack.c.b16 %v526, %v525
        %v538 = vpack.c.b16 %v528, %v527
        %v539 = vpack.c.b16 %v530, %v529
        %v540 = vpack.c.b16 %v532, %v531
        %v565 = vunpack.c.l.b16 %v485
        %v566 = vunpack.c.l.b16 %v486
        %v567 = vunpack.c.l.b16 %v487
        %v568 = vunpack.c.l.b16 %v488
        %v569 = vunpack.c.l.b16 %v489
        %v570 = vunpack.c.l.b16 %v490
        %v571 = vunpack.c.l.b16 %v491
        %v572 = vunpack.c.l.b16 %v492
        %v573 = vunpack.c.l.b16 %v493
        %v574 = vunpack.c.l.b16 %v494
        %v575 = vunpack.c.l.b16 %v495
        %v576 = vunpack.c.l.b16 %v496
        %v577 = vunpack.c.l.b16 %v497
        %v578 = vunpack.c.l.b16 %v498
        %v579 = vunpack.c.l.b16 %v499
        %v580 = vunpack.c.l.b16 %v500
        %v581 = vpack.c.b16 %v566, %v565
        %v582 = vpack.c.b16 %v568, %v567
        %v583 = vpack.c.b16 %v570, %v569
        %v584 = vpack.c.b16 %v572, %v571
        %v585 = vpack.c.b16 %v574, %v573
        %v586 = vpack.c.b16 %v576, %v575
        %v587 = vpack.c.b16 %v578, %v577
        %v588 = vpack.c.b16 %v580, %v579
        %597 = vmatprep.subr.bf16.mxu0 0
        %598 = vmatpush1.bf16.msra.mxu0 %v581
        %599 = vmatprep.subr.bf16.mxu0 0
        %600 = vmatpush1.bf16.msra.mxu0 %v582
        %601 = vmatprep.subr.bf16.mxu0 0
        %602 = vmatpush1.bf16.msra.mxu0 %v583
        %603 = vmatprep.subr.bf16.mxu0 0
        %604 = vmatpush1.bf16.msra.mxu0 %v584
        %605 = vmatprep.subr.bf16.mxu0 0
        %606 = vmatpush1.bf16.msra.mxu0 %v585
        %607 = vmatprep.subr.bf16.mxu0 0
        %608 = vmatpush1.bf16.msra.mxu0 %v586
        %609 = vmatprep.subr.bf16.mxu0 0
        %610 = vmatpush1.bf16.msra.mxu0 %v587
        %611 = vmatprep.subr.bf16.mxu0 0
        %612 = vmatpush1.bf16.msra.mxu0 %v588
        %613 = vmatprep.subr.bf16.mxu0 0
        %614 = vmatpush1.bf16.msra.mxu0 0
        %615 = vmatprep.subr.bf16.mxu0 0
        %616 = vmatpush1.bf16.msra.mxu0 0
        %617 = vmatprep.subr.bf16.mxu0 0
        %618 = vmatpush1.bf16.msra.mxu0 0
        %619 = vmatprep.subr.bf16.mxu0 0
        %620 = vmatpush1.bf16.msra.mxu0 0
        %621 = vmatprep.subr.bf16.mxu0 0
        %622 = vmatpush1.bf16.msra.mxu0 0
        %623 = vmatprep.subr.bf16.mxu0 0
        %624 = vmatpush1.bf16.msra.mxu0 0
        %625 = vmatprep.subr.bf16.mxu0 0
        %626 = vmatpush1.bf16.msra.mxu0 0
        %627 = vmatprep.subr.bf16.mxu0 0
        %628 = vmatpush1.bf16.msra.mxu0 0
        %629 = vmatprep.mubr.bf16.mxu0 0
        %630 = vmatmul.mubr.bf16.gmra.mrb[0].mxu0 %v533
        %v631 = vpop.f32.mrb[0].mxu0
        %v632 = vadd.f32 0.0, %v631
        %v633 = vpop.f32.mrb[0].mxu0
        %v634 = vpop.f32.mrb[0].mxu0
        %v635 = vadd.f32 0.0, %v634
        %v636 = vpop.f32.mrb[0].mxu0
        %637 = vmatprep.mubr.bf16.mxu0 0
        %638 = vmatmul.mubr.bf16.gmra.mrb[0].mxu0 %v534
        %v639 = vpop.f32.mrb[0].mxu0
        %v640 = vadd.f32 0.0, %v639
        %v641 = vpop.f32.mrb[0].mxu0
        %v642 = vpop.f32.mrb[0].mxu0
        %v643 = vadd.f32 0.0, %v642
        %v644 = vpop.f32.mrb[0].mxu0
        %645 = vmatprep.mubr.bf16.mxu0 0
        %646 = vmatmul.mubr.bf16.gmra.mrb[0].mxu0 %v535
        %v647 = vpop.f32.mrb[0].mxu0
        %v648 = vadd.f32 0.0, %v647
        %v649 = vpop.f32.mrb[0].mxu0
        %v650 = vpop.f32.mrb[0].mxu0
        %v651 = vadd.f32 0.0, %v650
        %v652 = vpop.f32.mrb[0].mxu0
        %653 = vmatprep.mubr.bf16.mxu0 0
        %654 = vmatmul.mubr.bf16.gmra.mrb[0].mxu0 %v536
        %v655 = vpop.f32.mrb[0].mxu0
        %v656 = vadd.f32 0.0, %v655
        %v657 = vpop.f32.mrb[0].mxu0
        %v658 = vpop.f32.mrb[0].mxu0
        %v659 = vadd.f32 0.0, %v658
        %v660 = vpop.f32.mrb[0].mxu0
        %661 = vmatprep.mubr.bf16.mxu0 0
        %662 = vmatmul.mubr.bf16.gmra.mrb[0].mxu0 %v537
        %v663 = vpop.f32.mrb[0].mxu0
        %v664 = vadd.f32 0.0, %v663
        %v665 = vpop.f32.mrb[0].mxu0
        %v666 = vpop.f32.mrb[0].mxu0
        %v667 = vadd.f32 0.0, %v666
        %v668 = vpop.f32.mrb[0].mxu0
        %669 = vmatprep.mubr.bf16.mxu0 0
        %670 = vmatmul.mubr.bf16.gmra.mrb[0].mxu0 %v538
        %v671 = vpop.f32.mrb[0].mxu0
        %v672 = vadd.f32 0.0, %v671
        %v673 = vpop.f32.mrb[0].mxu0
        %v674 = vpop.f32.mrb[0].mxu0
        %v675 = vadd.f32 0.0, %v674
        %v676 = vpop.f32.mrb[0].mxu0
        %677 = vmatprep.mubr.bf16.mxu0 0
        %678 = vmatmul.mubr.bf16.gmra.mrb[0].mxu0 %v539
        %v679 = vpop.f32.mrb[0].mxu0
        %v680 = vadd.f32 0.0, %v679
        %v681 = vpop.f32.mrb[0].mxu0
        %v682 = vpop.f32.mrb[0].mxu0
        %v683 = vadd.f32 0.0, %v682
        %v684 = vpop.f32.mrb[0].mxu0
        %685 = vmatprep.mubr.bf16.mxu0 0
        %686 = vmatmul.mubr.bf16.gmra.mrb[0].mxu0 %v540
        %v687 = vpop.f32.mrb[0].mxu0
        %v688 = vadd.f32 0.0, %v687
        %v689 = vpop.f32.mrb[0].mxu0
        %v690 = vpop.f32.mrb[0].mxu0
        %v691 = vadd.f32 0.0, %v690
        %v692 = vpop.f32.mrb[0].mxu0
        %693 = vdwg.mxu0
        %v694 = vld [vmem:[%s446] sm:$0xff]
        %v695 = vld [vmem:[%s446 + $0x8] sm:$0xff]
        %v696 = vld [vmem:[%s446 + $0x10] sm:$0xff]
        %v697 = vld [vmem:[%s446 + $0x18] sm:$0xff]
        %v698 = vld [vmem:[%s446 + $0x20] sm:$0xff]
        %v699 = vld [vmem:[%s446 + $0x28] sm:$0xff]
        %v700 = vld [vmem:[%s446 + $0x30] sm:$0xff]
        %v701 = vld [vmem:[%s446 + $0x38] sm:$0xff]
        %v702 = vld [vmem:[%s446 + $0x40] sm:$0xff]
        %v703 = vld [vmem:[%s446 + $0x48] sm:$0xff]
        %v704 = vld [vmem:[%s446 + $0x50] sm:$0xff]
        %v705 = vld [vmem:[%s446 + $0x58] sm:$0xff]
        %v706 = vld [vmem:[%s446 + $0x60] sm:$0xff]
        %v707 = vld [vmem:[%s446 + $0x68] sm:$0xff]
        %v708 = vld [vmem:[%s446 + $0x70] sm:$0xff]
        %v709 = vld [vmem:[%s446 + $0x78] sm:$0xff]
        %v710 = vlaneseq
        %v711 = vand.u32 %v710, 127
        %vm712 = vcmp.lt.s32.totalorder %v711, 4
        %713 = vadd.xlane.f32.xlu0 %v694
        %v714 = vpop.xlane.xlu0 %713
        %715 = vadd.xlane.f32.xlu0 %v695
        %v716 = vpop.xlane.xlu0 %715
        %717 = vadd.xlane.f32.xlu0 %v696
        %v718 = vpop.xlane.xlu0 %717
        %719 = vadd.xlane.f32.xlu0 %v697
        %v720 = vpop.xlane.xlu0 %719
        %721 = vadd.xlane.f32.xlu0 %v698
        %v722 = vpop.xlane.xlu0 %721
        %723 = vadd.xlane.f32.xlu0 %v699
        %v724 = vpop.xlane.xlu0 %723
        %725 = vadd.xlane.f32.xlu0 %v700
        %v726 = vpop.xlane.xlu0 %725
        %727 = vadd.xlane.f32.xlu0 %v701
        %v728 = vpop.xlane.xlu0 %727
        %729 = vadd.xlane.f32.xlu0 %v702
        %v730 = vpop.xlane.xlu0 %729
        %731 = vadd.xlane.f32.xlu0 %v703
        %v732 = vpop.xlane.xlu0 %731
        %733 = vadd.xlane.f32.xlu0 %v704
        %v734 = vpop.xlane.xlu0 %733
        %735 = vadd.xlane.f32.xlu0 %v705
        %v736 = vpop.xlane.xlu0 %735
        %737 = vadd.xlane.f32.xlu0 %v706
        %v738 = vpop.xlane.xlu0 %737
        %739 = vadd.xlane.f32.xlu0 %v707
        %v740 = vpop.xlane.xlu0 %739
        %741 = vadd.xlane.f32.xlu0 %v708
        %v742 = vpop.xlane.xlu0 %741
        %743 = vadd.xlane.f32.xlu0 %v709
        %v744 = vpop.xlane.xlu0 %743
        %v745 = vmul.f32 %v714, 0.25
        %v746 = vmul.f32 %v716, 0.25
        %v747 = vmul.f32 %v718, 0.25
        %v748 = vmul.f32 %v720, 0.25
        %v749 = vmul.f32 %v722, 0.25
        %v750 = vmul.f32 %v724, 0.25
        %v751 = vmul.f32 %v726, 0.25
        %v752 = vmul.f32 %v728, 0.25
        %v753 = vmul.f32 %v730, 0.25
        %v754 = vmul.f32 %v732, 0.25
        %v755 = vmul.f32 %v734, 0.25
        %v756 = vmul.f32 %v736, 0.25
        %v757 = vmul.f32 %v738, 0.25
        %v758 = vmul.f32 %v740, 0.25
        %v759 = vmul.f32 %v742, 0.25
        %v760 = vmul.f32 %v744, 0.25
        %v761 = vsub.f32 %v694, %v745
        %v762 = vsub.f32 %v695, %v746
        %v763 = vsub.f32 %v696, %v747
        %v764 = vsub.f32 %v697, %v748
        %v765 = vsub.f32 %v698, %v749
        %v766 = vsub.f32 %v699, %v750
        %v767 = vsub.f32 %v700, %v751
        %v768 = vsub.f32 %v701, %v752
        %v769 = vsub.f32 %v702, %v753
        %v770 = vsub.f32 %v703, %v754
        %v771 = vsub.f32 %v704, %v755
        %v772 = vsub.f32 %v705, %v756
        %v773 = vsub.f32 %v706, %v757
        %v774 = vsub.f32 %v707, %v758
        %v775 = vsub.f32 %v708, %v759
        %v776 = vsub.f32 %v709, %v760
        %v777 = vsel %vm712, %v761, 0.0
        %v778 = vsel %vm712, %v762, 0.0
        %v779 = vsel %vm712, %v763, 0.0
        %v780 = vsel %vm712, %v764, 0.0
        %v781 = vsel %vm712, %v765, 0.0
        %v782 = vsel %vm712, %v766, 0.0
        %v783 = vsel %vm712, %v767, 0.0
        %v784 = vsel %vm712, %v768, 0.0
        %v785 = vsel %vm712, %v769, 0.0
        %v786 = vsel %vm712, %v770, 0.0
        %v787 = vsel %vm712, %v771, 0.0
        %v788 = vsel %vm712, %v772, 0.0
        %v789 = vsel %vm712, %v773, 0.0
        %v790 = vsel %vm712, %v774, 0.0
        %v791 = vsel %vm712, %v775, 0.0
        %v792 = vsel %vm712, %v776, 0.0
        %v793 = vmul.f32 %v777, %v777
        %v794 = vmul.f32 %v778, %v778
        %v795 = vmul.f32 %v779, %v779
        %v796 = vmul.f32 %v780, %v780
        %v797 = vmul.f32 %v781, %v781
        %v798 = vmul.f32 %v782, %v782
        %v799 = vmul.f32 %v783, %v783
        %v800 = vmul.f32 %v784, %v784
        %v801 = vmul.f32 %v785, %v785
        %v802 = vmul.f32 %v786, %v786
        %v803 = vmul.f32 %v787, %v787
        %v804 = vmul.f32 %v788, %v788
        %v805 = vmul.f32 %v789, %v789
        %v806 = vmul.f32 %v790, %v790
        %v807 = vmul.f32 %v791, %v791
        %v808 = vmul.f32 %v792, %v792
        %809 = vadd.xlane.f32.xlu0 %v793
        %v810 = vpop.xlane.xlu0 %809
        %811 = vadd.xlane.f32.xlu0 %v794
        %v812 = vpop.xlane.xlu0 %811
        %813 = vadd.xlane.f32.xlu0 %v795
        %v814 = vpop.xlane.xlu0 %813
        %815 = vadd.xlane.f32.xlu0 %v796
        %v816 = vpop.xlane.xlu0 %815
        %817 = vadd.xlane.f32.xlu0 %v797
        %v818 = vpop.xlane.xlu0 %817
        %819 = vadd.xlane.f32.xlu0 %v798
        %v820 = vpop.xlane.xlu0 %819
        %821 = vadd.xlane.f32.xlu0 %v799
        %v822 = vpop.xlane.xlu0 %821
        %823 = vadd.xlane.f32.xlu0 %v800
        %v824 = vpop.xlane.xlu0 %823
        %825 = vadd.xlane.f32.xlu0 %v801
        %v826 = vpop.xlane.xlu0 %825
        %827 = vadd.xlane.f32.xlu0 %v802
        %v828 = vpop.xlane.xlu0 %827
        %829 = vadd.xlane.f32.xlu0 %v803
        %v830 = vpop.xlane.xlu0 %829
        %831 = vadd.xlane.f32.xlu0 %v804
        %v832 = vpop.xlane.xlu0 %831
        %833 = vadd.xlane.f32.xlu0 %v805
        %v834 = vpop.xlane.xlu0 %833
        %835 = vadd.xlane.f32.xlu0 %v806
        %v836 = vpop.xlane.xlu0 %835
        %837 = vadd.xlane.f32.xlu0 %v807
        %v838 = vpop.xlane.xlu0 %837
        %839 = vadd.xlane.f32.xlu0 %v808
        %v840 = vpop.xlane.xlu0 %839
        %v841 = vmul.f32 %v810, 0.25
        %v842 = vmul.f32 %v812, 0.25
        %v843 = vmul.f32 %v814, 0.25
        %v844 = vmul.f32 %v816, 0.25
        %v845 = vmul.f32 %v818, 0.25
        %v846 = vmul.f32 %v820, 0.25
        %v847 = vmul.f32 %v822, 0.25
        %v848 = vmul.f32 %v824, 0.25
        %v849 = vmul.f32 %v826, 0.25
        %v850 = vmul.f32 %v828, 0.25
        %v851 = vmul.f32 %v830, 0.25
        %v852 = vmul.f32 %v832, 0.25
        %v853 = vmul.f32 %v834, 0.25
        %v854 = vmul.f32 %v836, 0.25
        %v855 = vmul.f32 %v838, 0.25
        %v856 = vmul.f32 %v840, 0.25
        %v857 = vadd.f32 %v841, 1e-05
        %v858 = vadd.f32 %v842, 1e-05
        %v859 = vadd.f32 %v843, 1e-05
        %v860 = vadd.f32 %v844, 1e-05
        %v861 = vadd.f32 %v845, 1e-05
        %v862 = vadd.f32 %v846, 1e-05
        %v863 = vadd.f32 %v847, 1e-05
        %v864 = vadd.f32 %v848, 1e-05
        %v865 = vadd.f32 %v849, 1e-05
        %v866 = vadd.f32 %v850, 1e-05
        %v867 = vadd.f32 %v851, 1e-05
        %v868 = vadd.f32 %v852, 1e-05
        %v869 = vadd.f32 %v853, 1e-05
        %v870 = vadd.f32 %v854, 1e-05
        %v871 = vadd.f32 %v855, 1e-05
        %v872 = vadd.f32 %v856, 1e-05
        %v873 = vrsqrt.pop %v857
        %v874 = vrsqrt.pop %v858
        %v875 = vrsqrt.pop %v859
        %v876 = vrsqrt.pop %v860
        %v877 = vrsqrt.pop %v861
        %v878 = vrsqrt.pop %v862
        %v879 = vrsqrt.pop %v863
        %v880 = vrsqrt.pop %v864
        %v881 = vrsqrt.pop %v865
        %v882 = vrsqrt.pop %v866
        %v883 = vrsqrt.pop %v867
        %v884 = vrsqrt.pop %v868
        %v885 = vrsqrt.pop %v869
        %v886 = vrsqrt.pop %v870
        %v887 = vrsqrt.pop %v871
        %v888 = vrsqrt.pop %v872
        %v889 = vmul.f32 %v777, %v873
        %v890 = vmul.f32 %v778, %v874
        %v891 = vmul.f32 %v779, %v875
        %v892 = vmul.f32 %v780, %v876
        %v893 = vmul.f32 %v781, %v877
        %v894 = vmul.f32 %v782, %v878
        %v895 = vmul.f32 %v783, %v879
        %v896 = vmul.f32 %v784, %v880
        %v897 = vmul.f32 %v785, %v881
        %v898 = vmul.f32 %v786, %v882
        %v899 = vmul.f32 %v787, %v883
        %v900 = vmul.f32 %v788, %v884
        %v901 = vmul.f32 %v789, %v885
        %v902 = vmul.f32 %v790, %v886
        %v903 = vmul.f32 %v791, %v887
        %v904 = vmul.f32 %v792, %v888
        %v905 = vld [vmem:[%s3] sm:$0x1]
        %v907 = vlaneseq
        %v908 = vshrl.u32 %v907, 7
        %v909 = vsub.s32 0, %v908
        %v910 = vrot.slane %v905, %v909
        %v912 = vmul.f32 %v889, %v910
        %v913 = vmul.f32 %v890, %v910
        %v914 = vmul.f32 %v891, %v910
        %v915 = vmul.f32 %v892, %v910
        %v916 = vmul.f32 %v893, %v910
        %v917 = vmul.f32 %v894, %v910
        %v918 = vmul.f32 %v895, %v910
        %v919 = vmul.f32 %v896, %v910
        %v920 = vmul.f32 %v897, %v910
        %v921 = vmul.f32 %v898, %v910
        %v922 = vmul.f32 %v899, %v910
        %v923 = vmul.f32 %v900, %v910
        %v924 = vmul.f32 %v901, %v910
        %v925 = vmul.f32 %v902, %v910
        %v926 = vmul.f32 %v903, %v910
        %v927 = vmul.f32 %v904, %v910
        %v928 = vld [vmem:[%s4] sm:$0x1]
        %v930 = vlaneseq
        %v931 = vshrl.u32 %v930, 7
        %v932 = vsub.s32 0, %v931
        %v933 = vrot.slane %v928, %v932
        %v935 = vadd.f32 %v912, %v933
        %v936 = vadd.f32 %v913, %v933
        %v937 = vadd.f32 %v914, %v933
        %v938 = vadd.f32 %v915, %v933
        %v939 = vadd.f32 %v916, %v933
        %v940 = vadd.f32 %v917, %v933
        %v941 = vadd.f32 %v918, %v933
        %v942 = vadd.f32 %v919, %v933
        %v943 = vadd.f32 %v920, %v933
        %v944 = vadd.f32 %v921, %v933
        %v945 = vadd.f32 %v922, %v933
        %v946 = vadd.f32 %v923, %v933
        %v947 = vadd.f32 %v924, %v933
        %v948 = vadd.f32 %v925, %v933
        %v949 = vadd.f32 %v926, %v933
        %v950 = vadd.f32 %v927, %v933
        %v951 = vpack.c.bf16 %v936, %v935
        %v952 = vpack.c.bf16 %v938, %v937
        %v953 = vpack.c.bf16 %v940, %v939
        %v954 = vpack.c.bf16 %v942, %v941
        %v955 = vpack.c.bf16 %v944, %v943
        %v956 = vpack.c.bf16 %v946, %v945
        %v957 = vpack.c.bf16 %v948, %v947
        %v958 = vpack.c.bf16 %v950, %v949
        %v959 = vld [vmem:[%s5] sm:$0xf]
        %v960 = vld [vmem:[%s5 + $0x4] sm:$0xf]
        %v961 = vld [vmem:[%s5 + $0x8] sm:$0xf]
        %v962 = vld [vmem:[%s5 + $0xc] sm:$0xf]
        %v963 = vld [vmem:[%s5 + $0x10] sm:$0xf]
        %v964 = vld [vmem:[%s5 + $0x14] sm:$0xf]
        %v965 = vld [vmem:[%s5 + $0x18] sm:$0xf]
        %v966 = vld [vmem:[%s5 + $0x1c] sm:$0xf]
        %v967 = vld [vmem:[%s5 + $0x20] sm:$0xf]
        %v968 = vld [vmem:[%s5 + $0x24] sm:$0xf]
        %v969 = vld [vmem:[%s5 + $0x28] sm:$0xf]
        %v970 = vld [vmem:[%s5 + $0x2c] sm:$0xf]
        %v971 = vld [vmem:[%s5 + $0x30] sm:$0xf]
        %v972 = vld [vmem:[%s5 + $0x34] sm:$0xf]
        %v973 = vld [vmem:[%s5 + $0x38] sm:$0xf]
        %v974 = vld [vmem:[%s5 + $0x3c] sm:$0xf]
        %v991 = vunpack.c.l.b16 %v959
        %v992 = vunpack.c.l.b16 %v960
        %v993 = vunpack.c.l.b16 %v961
        %v994 = vunpack.c.l.b16 %v962
        %v995 = vunpack.c.l.b16 %v963
        %v996 = vunpack.c.l.b16 %v964
        %v997 = vunpack.c.l.b16 %v965
        %v998 = vunpack.c.l.b16 %v966
        %v999 = vunpack.c.l.b16 %v967
        %v1000 = vunpack.c.l.b16 %v968
        %v1001 = vunpack.c.l.b16 %v969
        %v1002 = vunpack.c.l.b16 %v970
        %v1003 = vunpack.c.l.b16 %v971
        %v1004 = vunpack.c.l.b16 %v972
        %v1005 = vunpack.c.l.b16 %v973
        %v1006 = vunpack.c.l.b16 %v974
        %v1007 = vpack.c.b16 %v992, %v991
        %v1008 = vpack.c.b16 %v994, %v993
        %v1009 = vpack.c.b16 %v996, %v995
        %v1010 = vpack.c.b16 %v998, %v997
        %v1011 = vpack.c.b16 %v1000, %v999
        %v1012 = vpack.c.b16 %v1002, %v1001
        %v1013 = vpack.c.b16 %v1004, %v1003
        %v1014 = vpack.c.b16 %v1006, %v1005
        %1023 = vmatprep.subr.bf16.mxu0 0
        %1024 = vmatpush1.bf16.msra.mxu0 %v1007
        %1025 = vmatprep.subr.bf16.mxu0 0
        %1026 = vmatpush1.bf16.msra.mxu0 %v1008
        %1027 = vmatprep.subr.bf16.mxu0 0
        %1028 = vmatpush1.bf16.msra.mxu0 %v1009
        %1029 = vmatprep.subr.bf16.mxu0 0
        %1030 = vmatpush1.bf16.msra.mxu0 %v1010
        %1031 = vmatprep.subr.bf16.mxu0 0
        %1032 = vmatpush1.bf16.msra.mxu0 %v1011
        %1033 = vmatprep.subr.bf16.mxu0 0
        %1034 = vmatpush1.bf16.msra.mxu0 %v1012
        %1035 = vmatprep.subr.bf16.mxu0 0
        %1036 = vmatpush1.bf16.msra.mxu0 %v1013
        %1037 = vmatprep.subr.bf16.mxu0 0
        %1038 = vmatpush1.bf16.msra.mxu0 %v1014
        %1039 = vmatprep.subr.bf16.mxu0 0
        %1040 = vmatpush1.bf16.msra.mxu0 0
        %1041 = vmatprep.subr.bf16.mxu0 0
        %1042 = vmatpush1.bf16.msra.mxu0 0
        %1043 = vmatprep.subr.bf16.mxu0 0
        %1044 = vmatpush1.bf16.msra.mxu0 0
        %1045 = vmatprep.subr.bf16.mxu0 0
        %1046 = vmatpush1.bf16.msra.mxu0 0
        %1047 = vmatprep.subr.bf16.mxu0 0
        %1048 = vmatpush1.bf16.msra.mxu0 0
        %1049 = vmatprep.subr.bf16.mxu0 0
        %1050 = vmatpush1.bf16.msra.mxu0 0
        %1051 = vmatprep.subr.bf16.mxu0 0
        %1052 = vmatpush1.bf16.msra.mxu0 0
        %1053 = vmatprep.subr.bf16.mxu0 0
        %1054 = vmatpush1.bf16.msra.mxu0 0
        %1055 = vmatprep.mubr.bf16.mxu0 0
        %1056 = vmatmul.mubr.bf16.gmra.mrb[0].mxu0 %v951
        %v1057 = vpop.f32.mrb[0].mxu0
        %v1058 = vadd.f32 0.0, %v1057
        %v1059 = vpop.f32.mrb[0].mxu0
        %v1060 = vpop.f32.mrb[0].mxu0
        %v1061 = vadd.f32 0.0, %v1060
        %v1062 = vpop.f32.mrb[0].mxu0
        %1063 = vmatprep.mubr.bf16.mxu0 0
        %1064 = vmatmul.mubr.bf16.gmra.mrb[0].mxu0 %v952
        %v1065 = vpop.f32.mrb[0].mxu0
        %v1066 = vadd.f32 0.0, %v1065
        %v1067 = vpop.f32.mrb[0].mxu0
        %v1068 = vpop.f32.mrb[0].mxu0
        %v1069 = vadd.f32 0.0, %v1068
        %v1070 = vpop.f32.mrb[0].mxu0
        %1071 = vmatprep.mubr.bf16.mxu0 0
        %1072 = vmatmul.mubr.bf16.gmra.mrb[0].mxu0 %v953
        %v1073 = vpop.f32.mrb[0].mxu0
        %v1074 = vadd.f32 0.0, %v1073
        %v1075 = vpop.f32.mrb[0].mxu0
        %v1076 = vpop.f32.mrb[0].mxu0
        %v1077 = vadd.f32 0.0, %v1076
        %v1078 = vpop.f32.mrb[0].mxu0
        %1079 = vmatprep.mubr.bf16.mxu0 0
        %1080 = vmatmul.mubr.bf16.gmra.mrb[0].mxu0 %v954
        %v1081 = vpop.f32.mrb[0].mxu0
        %v1082 = vadd.f32 0.0, %v1081
        %v1083 = vpop.f32.mrb[0].mxu0
        %v1084 = vpop.f32.mrb[0].mxu0
        %v1085 = vadd.f32 0.0, %v1084
        %v1086 = vpop.f32.mrb[0].mxu0
        %1087 = vmatprep.mubr.bf16.mxu0 0
        %1088 = vmatmul.mubr.bf16.gmra.mrb[0].mxu0 %v955
        %v1089 = vpop.f32.mrb[0].mxu0
        %v1090 = vadd.f32 0.0, %v1089
        %v1091 = vpop.f32.mrb[0].mxu0
        %v1092 = vpop.f32.mrb[0].mxu0
        %v1093 = vadd.f32 0.0, %v1092
        %v1094 = vpop.f32.mrb[0].mxu0
        %1095 = vmatprep.mubr.bf16.mxu0 0
        %1096 = vmatmul.mubr.bf16.gmra.mrb[0].mxu0 %v956
        %v1097 = vpop.f32.mrb[0].mxu0
        %v1098 = vadd.f32 0.0, %v1097
        %v1099 = vpop.f32.mrb[0].mxu0
        %v1100 = vpop.f32.mrb[0].mxu0
        %v1101 = vadd.f32 0.0, %v1100
        %v1102 = vpop.f32.mrb[0].mxu0
        %1103 = vmatprep.mubr.bf16.mxu0 0
        %1104 = vmatmul.mubr.bf16.gmra.mrb[0].mxu0 %v957
        %v1105 = vpop.f32.mrb[0].mxu0
        %v1106 = vadd.f32 0.0, %v1105
        %v1107 = vpop.f32.mrb[0].mxu0
        %v1108 = vpop.f32.mrb[0].mxu0
        %v1109 = vadd.f32 0.0, %v1108
        %v1110 = vpop.f32.mrb[0].mxu0
        %1111 = vmatprep.mubr.bf16.mxu0 0
        %1112 = vmatmul.mubr.bf16.gmra.mrb[0].mxu0 %v958
        %v1113 = vpop.f32.mrb[0].mxu0
        %v1114 = vadd.f32 0.0, %v1113
        %v1115 = vpop.f32.mrb[0].mxu0
        %v1116 = vpop.f32.mrb[0].mxu0
        %v1117 = vadd.f32 0.0, %v1116
        %v1118 = vpop.f32.mrb[0].mxu0
        %1119 = vdwg.mxu0
        %v1120 = vpack.c.bf16 %v635, %v632
        %v1121 = vpack.c.bf16 %v643, %v640
        %v1122 = vpack.c.bf16 %v651, %v648
        %v1123 = vpack.c.bf16 %v659, %v656
        %v1124 = vpack.c.bf16 %v667, %v664
        %v1125 = vpack.c.bf16 %v675, %v672
        %v1126 = vpack.c.bf16 %v683, %v680
        %v1127 = vpack.c.bf16 %v691, %v688
        %v1128 = vld [vmem:[%s6] sm:$0xf]
        %v1129 = vld [vmem:[%s6 + $0x4] sm:$0xf]
        %v1130 = vld [vmem:[%s6 + $0x8] sm:$0xf]
        %v1131 = vld [vmem:[%s6 + $0xc] sm:$0xf]
        %v1132 = vld [vmem:[%s6 + $0x10] sm:$0xf]
        %v1133 = vld [vmem:[%s6 + $0x14] sm:$0xf]
        %v1134 = vld [vmem:[%s6 + $0x18] sm:$0xf]
        %v1135 = vld [vmem:[%s6 + $0x1c] sm:$0xf]
        %v1136 = vld [vmem:[%s6 + $0x20] sm:$0xf]
        %v1137 = vld [vmem:[%s6 + $0x24] sm:$0xf]
        %v1138 = vld [vmem:[%s6 + $0x28] sm:$0xf]
        %v1139 = vld [vmem:[%s6 + $0x2c] sm:$0xf]
        %v1140 = vld [vmem:[%s6 + $0x30] sm:$0xf]
        %v1141 = vld [vmem:[%s6 + $0x34] sm:$0xf]
        %v1142 = vld [vmem:[%s6 + $0x38] sm:$0xf]
        %v1143 = vld [vmem:[%s6 + $0x3c] sm:$0xf]
        %v1144 = vpack.c.bf16 %v1061, %v1058
        %v1145 = vpack.c.bf16 %v1069, %v1066
        %v1146 = vpack.c.bf16 %v1077, %v1074
        %v1147 = vpack.c.bf16 %v1085, %v1082
        %v1148 = vpack.c.bf16 %v1093, %v1090
        %v1149 = vpack.c.bf16 %v1101, %v1098
        %v1150 = vpack.c.bf16 %v1109, %v1106
        %v1151 = vpack.c.bf16 %v1117, %v1114
        %v1152 = vld [vmem:[%s7] sm:$0xf]
        %v1153 = vld [vmem:[%s7 + $0x4] sm:$0xf]
        %v1154 = vld [vmem:[%s7 + $0x8] sm:$0xf]
        %v1155 = vld [vmem:[%s7 + $0xc] sm:$0xf]
        %v1156 = vld [vmem:[%s7 + $0x10] sm:$0xf]
        %v1157 = vld [vmem:[%s7 + $0x14] sm:$0xf]
        %v1158 = vld [vmem:[%s7 + $0x18] sm:$0xf]
        %v1159 = vld [vmem:[%s7 + $0x1c] sm:$0xf]
        %v1160 = vld [vmem:[%s7 + $0x20] sm:$0xf]
        %v1161 = vld [vmem:[%s7 + $0x24] sm:$0xf]
        %v1162 = vld [vmem:[%s7 + $0x28] sm:$0xf]
        %v1163 = vld [vmem:[%s7 + $0x2c] sm:$0xf]
        %v1164 = vld [vmem:[%s7 + $0x30] sm:$0xf]
        %v1165 = vld [vmem:[%s7 + $0x34] sm:$0xf]
        %v1166 = vld [vmem:[%s7 + $0x38] sm:$0xf]
        %v1167 = vld [vmem:[%s7 + $0x3c] sm:$0xf]
        %v1184 = vunpack.c.l.b16 %v1152
        %v1185 = vunpack.c.l.b16 %v1153
        %v1186 = vunpack.c.l.b16 %v1154
        %v1187 = vunpack.c.l.b16 %v1155
        %v1188 = vunpack.c.l.b16 %v1156
        %v1189 = vunpack.c.l.b16 %v1157
        %v1190 = vunpack.c.l.b16 %v1158
        %v1191 = vunpack.c.l.b16 %v1159
        %v1192 = vunpack.c.l.b16 %v1160
        %v1193 = vunpack.c.l.b16 %v1161
        %v1194 = vunpack.c.l.b16 %v1162
        %v1195 = vunpack.c.l.b16 %v1163
        %v1196 = vunpack.c.l.b16 %v1164
        %v1197 = vunpack.c.l.b16 %v1165
        %v1198 = vunpack.c.l.b16 %v1166
        %v1199 = vunpack.c.l.b16 %v1167
        %v1200 = vpack.c.b16 %v1185, %v1184
        %v1201 = vpack.c.b16 %v1187, %v1186
        %v1202 = vpack.c.b16 %v1189, %v1188
        %v1203 = vpack.c.b16 %v1191, %v1190
        %v1204 = vpack.c.b16 %v1193, %v1192
        %v1205 = vpack.c.b16 %v1195, %v1194
        %v1206 = vpack.c.b16 %v1197, %v1196
        %v1207 = vpack.c.b16 %v1199, %v1198
        %1216 = vmatprep.subr.bf16.mxu0 0
        %1217 = vmatpush1.bf16.msra.mxu0 %v1200
        %1218 = vmatprep.subr.bf16.mxu0 0
        %1219 = vmatpush1.bf16.msra.mxu0 %v1201
        %1220 = vmatprep.subr.bf16.mxu0 0
        %1221 = vmatpush1.bf16.msra.mxu0 %v1202
        %1222 = vmatprep.subr.bf16.mxu0 0
        %1223 = vmatpush1.bf16.msra.mxu0 %v1203
        %1224 = vmatprep.subr.bf16.mxu0 0
        %1225 = vmatpush1.bf16.msra.mxu0 %v1204
        %1226 = vmatprep.subr.bf16.mxu0 0
        %1227 = vmatpush1.bf16.msra.mxu0 %v1205
        %1228 = vmatprep.subr.bf16.mxu0 0
        %1229 = vmatpush1.bf16.msra.mxu0 %v1206
        %1230 = vmatprep.subr.bf16.mxu0 0
        %1231 = vmatpush1.bf16.msra.mxu0 %v1207
        %1232 = vmatprep.subr.bf16.mxu0 0
        %1233 = vmatpush1.bf16.msra.mxu0 0
        %1234 = vmatprep.subr.bf16.mxu0 0
        %1235 = vmatpush1.bf16.msra.mxu0 0
        %1236 = vmatprep.subr.bf16.mxu0 0
        %1237 = vmatpush1.bf16.msra.mxu0 0
        %1238 = vmatprep.subr.bf16.mxu0 0
        %1239 = vmatpush1.bf16.msra.mxu0 0
        %1240 = vmatprep.subr.bf16.mxu0 0
        %1241 = vmatpush1.bf16.msra.mxu0 0
        %1242 = vmatprep.subr.bf16.mxu0 0
        %1243 = vmatpush1.bf16.msra.mxu0 0
        %1244 = vmatprep.subr.bf16.mxu0 0
        %1245 = vmatpush1.bf16.msra.mxu0 0
        %1246 = vmatprep.subr.bf16.mxu0 0
        %1247 = vmatpush1.bf16.msra.mxu0 0
        %1248 = vmatprep.mubr.bf16.mxu0 0
        %1249 = vmatmul.mubr.bf16.gmra.mrb[0].mxu0 %v1144
        %v1250 = vpop.f32.mrb[0].mxu0
        %v1251 = vadd.f32 0.0, %v1250
        %v1252 = vpop.f32.mrb[0].mxu0
        %v1253 = vpop.f32.mrb[0].mxu0
        %v1254 = vadd.f32 0.0, %v1253
        %v1255 = vpop.f32.mrb[0].mxu0
        %1256 = vmatprep.mubr.bf16.mxu0 0
        %1257 = vmatmul.mubr.bf16.gmra.mrb[0].mxu0 %v1145
        %v1258 = vpop.f32.mrb[0].mxu0
        %v1259 = vadd.f32 0.0, %v1258
        %v1260 = vpop.f32.mrb[0].mxu0
        %v1261 = vpop.f32.mrb[0].mxu0
        %v1262 = vadd.f32 0.0, %v1261
        %v1263 = vpop.f32.mrb[0].mxu0
        %1264 = vmatprep.mubr.bf16.mxu0 0
        %1265 = vmatmul.mubr.bf16.gmra.mrb[0].mxu0 %v1146
        %v1266 = vpop.f32.mrb[0].mxu0
        %v1267 = vadd.f32 0.0, %v1266
        %v1268 = vpop.f32.mrb[0].mxu0
        %v1269 = vpop.f32.mrb[0].mxu0
        %v1270 = vadd.f32 0.0, %v1269
        %v1271 = vpop.f32.mrb[0].mxu0
        %1272 = vmatprep.mubr.bf16.mxu0 0
        %1273 = vmatmul.mubr.bf16.gmra.mrb[0].mxu0 %v1147
        %v1274 = vpop.f32.mrb[0].mxu0
        %v1275 = vadd.f32 0.0, %v1274
        %v1276 = vpop.f32.mrb[0].mxu0
        %v1277 = vpop.f32.mrb[0].mxu0
        %v1278 = vadd.f32 0.0, %v1277
        %v1279 = vpop.f32.mrb[0].mxu0
        %1280 = vmatprep.mubr.bf16.mxu0 0
        %1281 = vmatmul.mubr.bf16.gmra.mrb[0].mxu0 %v1148
        %v1282 = vpop.f32.mrb[0].mxu0
        %v1283 = vadd.f32 0.0, %v1282
        %v1284 = vpop.f32.mrb[0].mxu0
        %v1285 = vpop.f32.mrb[0].mxu0
        %v1286 = vadd.f32 0.0, %v1285
        %v1287 = vpop.f32.mrb[0].mxu0
        %1288 = vmatprep.mubr.bf16.mxu0 0
        %1289 = vmatmul.mubr.bf16.gmra.mrb[0].mxu0 %v1149
        %v1290 = vpop.f32.mrb[0].mxu0
        %v1291 = vadd.f32 0.0, %v1290
        %v1292 = vpop.f32.mrb[0].mxu0
        %v1293 = vpop.f32.mrb[0].mxu0
        %v1294 = vadd.f32 0.0, %v1293
        %v1295 = vpop.f32.mrb[0].mxu0
        %1296 = vmatprep.mubr.bf16.mxu0 0
        %1297 = vmatmul.mubr.bf16.gmra.mrb[0].mxu0 %v1150
        %v1298 = vpop.f32.mrb[0].mxu0
        %v1299 = vadd.f32 0.0, %v1298
        %v1300 = vpop.f32.mrb[0].mxu0
        %v1301 = vpop.f32.mrb[0].mxu0
        %v1302 = vadd.f32 0.0, %v1301
        %v1303 = vpop.f32.mrb[0].mxu0
        %1304 = vmatprep.mubr.bf16.mxu0 0
        %1305 = vmatmul.mubr.bf16.gmra.mrb[0].mxu0 %v1151
        %v1306 = vpop.f32.mrb[0].mxu0
        %v1307 = vadd.f32 0.0, %v1306
        %v1308 = vpop.f32.mrb[0].mxu0
        %v1309 = vpop.f32.mrb[0].mxu0
        %v1310 = vadd.f32 0.0, %v1309
        %v1311 = vpop.f32.mrb[0].mxu0
        %1312 = vdwg.mxu0
        %v1329 = vunpack.c.l.b16 %v1128
        %v1330 = vunpack.c.l.b16 %v1129
        %v1331 = vunpack.c.l.b16 %v1130
        %v1332 = vunpack.c.l.b16 %v1131
        %v1333 = vunpack.c.l.b16 %v1132
        %v1334 = vunpack.c.l.b16 %v1133
        %v1335 = vunpack.c.l.b16 %v1134
        %v1336 = vunpack.c.l.b16 %v1135
        %v1337 = vunpack.c.l.b16 %v1136
        %v1338 = vunpack.c.l.b16 %v1137
        %v1339 = vunpack.c.l.b16 %v1138
        %v1340 = vunpack.c.l.b16 %v1139
        %v1341 = vunpack.c.l.b16 %v1140
        %v1342 = vunpack.c.l.b16 %v1141
        %v1343 = vunpack.c.l.b16 %v1142
        %v1344 = vunpack.c.l.b16 %v1143
        %v1345 = vpack.c.b16 %v1330, %v1329
        %v1346 = vpack.c.b16 %v1332, %v1331
        %v1347 = vpack.c.b16 %v1334, %v1333
        %v1348 = vpack.c.b16 %v1336, %v1335
        %v1349 = vpack.c.b16 %v1338, %v1337
        %v1350 = vpack.c.b16 %v1340, %v1339
        %v1351 = vpack.c.b16 %v1342, %v1341
        %v1352 = vpack.c.b16 %v1344, %v1343
        %1361 = vmatprep.subr.bf16.mxu0 0
        %1362 = vmatpush1.bf16.msra.mxu0 %v1345
        %1363 = vmatprep.subr.bf16.mxu0 0
        %1364 = vmatpush1.bf16.msra.mxu0 %v1346
        %1365 = vmatprep.subr.bf16.mxu0 0
        %1366 = vmatpush1.bf16.msra.mxu0 %v1347
        %1367 = vmatprep.subr.bf16.mxu0 0
        %1368 = vmatpush1.bf16.msra.mxu0 %v1348
        %1369 = vmatprep.subr.bf16.mxu0 0
        %1370 = vmatpush1.bf16.msra.mxu0 %v1349
        %1371 = vmatprep.subr.bf16.mxu0 0
        %1372 = vmatpush1.bf16.msra.mxu0 %v1350
        %1373 = vmatprep.subr.bf16.mxu0 0
        %1374 = vmatpush1.bf16.msra.mxu0 %v1351
        %1375 = vmatprep.subr.bf16.mxu0 0
        %1376 = vmatpush1.bf16.msra.mxu0 %v1352
        %1377 = vmatprep.subr.bf16.mxu0 0
        %1378 = vmatpush1.bf16.msra.mxu0 0
        %1379 = vmatprep.subr.bf16.mxu0 0
        %1380 = vmatpush1.bf16.msra.mxu0 0
        %1381 = vmatprep.subr.bf16.mxu0 0
        %1382 = vmatpush1.bf16.msra.mxu0 0
        %1383 = vmatprep.subr.bf16.mxu0 0
        %1384 = vmatpush1.bf16.msra.mxu0 0
        %1385 = vmatprep.subr.bf16.mxu0 0
        %1386 = vmatpush1.bf16.msra.mxu0 0
        %1387 = vmatprep.subr.bf16.mxu0 0
        %1388 = vmatpush1.bf16.msra.mxu0 0
        %1389 = vmatprep.subr.bf16.mxu0 0
        %1390 = vmatpush1.bf16.msra.mxu0 0
        %1391 = vmatprep.subr.bf16.mxu0 0
        %1392 = vmatpush1.bf16.msra.mxu0 0
        %1393 = vmatprep.mubr.bf16.mxu0 0
        %1394 = vmatmul.mubr.bf16.gmra.mrb[0].mxu0 %v1120
        %v1395 = vpop.f32.mrb[0].mxu0
        %v1396 = vadd.f32 %v1251, %v1395
        %v1397 = vpop.f32.mrb[0].mxu0
        %v1398 = vpop.f32.mrb[0].mxu0
        %v1399 = vadd.f32 %v1254, %v1398
        %v1400 = vpop.f32.mrb[0].mxu0
        %1401 = vmatprep.mubr.bf16.mxu0 0
        %1402 = vmatmul.mubr.bf16.gmra.mrb[0].mxu0 %v1121
        %v1403 = vpop.f32.mrb[0].mxu0
        %v1404 = vadd.f32 %v1259, %v1403
        %v1405 = vpop.f32.mrb[0].mxu0
        %v1406 = vpop.f32.mrb[0].mxu0
        %v1407 = vadd.f32 %v1262, %v1406
        %v1408 = vpop.f32.mrb[0].mxu0
        %1409 = vmatprep.mubr.bf16.mxu0 0
        %1410 = vmatmul.mubr.bf16.gmra.mrb[0].mxu0 %v1122
        %v1411 = vpop.f32.mrb[0].mxu0
        %v1412 = vadd.f32 %v1267, %v1411
        %v1413 = vpop.f32.mrb[0].mxu0
        %v1414 = vpop.f32.mrb[0].mxu0
        %v1415 = vadd.f32 %v1270, %v1414
        %v1416 = vpop.f32.mrb[0].mxu0
        %1417 = vmatprep.mubr.bf16.mxu0 0
        %1418 = vmatmul.mubr.bf16.gmra.mrb[0].mxu0 %v1123
        %v1419 = vpop.f32.mrb[0].mxu0
        %v1420 = vadd.f32 %v1275, %v1419
        %v1421 = vpop.f32.mrb[0].mxu0
        %v1422 = vpop.f32.mrb[0].mxu0
        %v1423 = vadd.f32 %v1278, %v1422
        %v1424 = vpop.f32.mrb[0].mxu0
        %1425 = vmatprep.mubr.bf16.mxu0 0
        %1426 = vmatmul.mubr.bf16.gmra.mrb[0].mxu0 %v1124
        %v1427 = vpop.f32.mrb[0].mxu0
        %v1428 = vadd.f32 %v1283, %v1427
        %v1429 = vpop.f32.mrb[0].mxu0
        %v1430 = vpop.f32.mrb[0].mxu0
        %v1431 = vadd.f32 %v1286, %v1430
        %v1432 = vpop.f32.mrb[0].mxu0
        %1433 = vmatprep.mubr.bf16.mxu0 0
        %1434 = vmatmul.mubr.bf16.gmra.mrb[0].mxu0 %v1125
        %v1435 = vpop.f32.mrb[0].mxu0
        %v1436 = vadd.f32 %v1291, %v1435
        %v1437 = vpop.f32.mrb[0].mxu0
        %v1438 = vpop.f32.mrb[0].mxu0
        %v1439 = vadd.f32 %v1294, %v1438
        %v1440 = vpop.f32.mrb[0].mxu0
        %1441 = vmatprep.mubr.bf16.mxu0 0
        %1442 = vmatmul.mubr.bf16.gmra.mrb[0].mxu0 %v1126
        %v1443 = vpop.f32.mrb[0].mxu0
        %v1444 = vadd.f32 %v1299, %v1443
        %v1445 = vpop.f32.mrb[0].mxu0
        %v1446 = vpop.f32.mrb[0].mxu0
        %v1447 = vadd.f32 %v1302, %v1446
        %v1448 = vpop.f32.mrb[0].mxu0
        %1449 = vmatprep.mubr.bf16.mxu0 0
        %1450 = vmatmul.mubr.bf16.gmra.mrb[0].mxu0 %v1127
        %v1451 = vpop.f32.mrb[0].mxu0
        %v1452 = vadd.f32 %v1307, %v1451
        %v1453 = vpop.f32.mrb[0].mxu0
        %v1454 = vpop.f32.mrb[0].mxu0
        %v1455 = vadd.f32 %v1310, %v1454
        %v1456 = vpop.f32.mrb[0].mxu0
        %1457 = vdwg.mxu0
        %1458 = vst [vmem:[#allocation2] sm:$0xff] %v1396
        %1459 = vst [vmem:[#allocation2 + $0x8] sm:$0xff] %v1399
        %1460 = vst [vmem:[#allocation2 + $0x10] sm:$0xff] %v1404
        %1461 = vst [vmem:[#allocation2 + $0x18] sm:$0xff] %v1407
        %1462 = vst [vmem:[#allocation2 + $0x20] sm:$0xff] %v1412
        %1463 = vst [vmem:[#allocation2 + $0x28] sm:$0xff] %v1415
        %1464 = vst [vmem:[#allocation2 + $0x30] sm:$0xff] %v1420
        %1465 = vst [vmem:[#allocation2 + $0x38] sm:$0xff] %v1423
        %1466 = vst [vmem:[#allocation2 + $0x40] sm:$0xff] %v1428
        %1467 = vst [vmem:[#allocation2 + $0x48] sm:$0xff] %v1431
        %1468 = vst [vmem:[#allocation2 + $0x50] sm:$0xff] %v1436
        %1469 = vst [vmem:[#allocation2 + $0x58] sm:$0xff] %v1439
        %1470 = vst [vmem:[#allocation2 + $0x60] sm:$0xff] %v1444
        %1471 = vst [vmem:[#allocation2 + $0x68] sm:$0xff] %v1447
        %1472 = vst [vmem:[#allocation2 + $0x70] sm:$0xff] %v1452
        %1473 = vst [vmem:[#allocation2 + $0x78] sm:$0xff] %v1455
        %1474 = vst [vmem:[#allocation3] sm:$0xff] %v1396
        %1475 = vst [vmem:[#allocation3 + $0x8] sm:$0xff] %v1399
        %1476 = vst [vmem:[#allocation3 + $0x10] sm:$0xff] %v1404
        %1477 = vst [vmem:[#allocation3 + $0x18] sm:$0xff] %v1407
        %1478 = vst [vmem:[#allocation3 + $0x20] sm:$0xff] %v1412
        %1479 = vst [vmem:[#allocation3 + $0x28] sm:$0xff] %v1415
        %1480 = vst [vmem:[#allocation3 + $0x30] sm:$0xff] %v1420
        %1481 = vst [vmem:[#allocation3 + $0x38] sm:$0xff] %v1423
        %1482 = vst [vmem:[#allocation3 + $0x40] sm:$0xff] %v1428
        %1483 = vst [vmem:[#allocation3 + $0x48] sm:$0xff] %v1431
        %1484 = vst [vmem:[#allocation3 + $0x50] sm:$0xff] %v1436
        %1485 = vst [vmem:[#allocation3 + $0x58] sm:$0xff] %v1439
        %1486 = vst [vmem:[#allocation3 + $0x60] sm:$0xff] %v1444
        %1487 = vst [vmem:[#allocation3 + $0x68] sm:$0xff] %v1447
        %1488 = vst [vmem:[#allocation3 + $0x70] sm:$0xff] %v1452
        %1489 = vst [vmem:[#allocation3 + $0x78] sm:$0xff] %v1455
      $region68: #{_forward_impl.1} parent=63 // pred_fallthru
        _
      %v1490 = vld [vmem:[#allocation2] sm:$0xff]
      %v1491 = vld [vmem:[#allocation2 + $0x8] sm:$0xff]
      %v1492 = vld [vmem:[#allocation2 + $0x10] sm:$0xff]
      %v1493 = vld [vmem:[#allocation2 + $0x18] sm:$0xff]
      %v1494 = vld [vmem:[#allocation2 + $0x20] sm:$0xff]
      %v1495 = vld [vmem:[#allocation2 + $0x28] sm:$0xff]
      %v1496 = vld [vmem:[#allocation2 + $0x30] sm:$0xff]
      %v1497 = vld [vmem:[#allocation2 + $0x38] sm:$0xff]
      %v1498 = vld [vmem:[#allocation2 + $0x40] sm:$0xff]
      %v1499 = vld [vmem:[#allocation2 + $0x48] sm:$0xff]
      %v1500 = vld [vmem:[#allocation2 + $0x50] sm:$0xff]
      %v1501 = vld [vmem:[#allocation2 + $0x58] sm:$0xff]
      %v1502 = vld [vmem:[#allocation2 + $0x60] sm:$0xff]
      %v1503 = vld [vmem:[#allocation2 + $0x68] sm:$0xff]
      %v1504 = vld [vmem:[#allocation2 + $0x70] sm:$0xff]
      %v1505 = vld [vmem:[#allocation2 + $0x78] sm:$0xff]
      %v1506 = vpack.c.bf16 %v1491, %v1490
      %v1507 = vpack.c.bf16 %v1493, %v1492
      %v1508 = vpack.c.bf16 %v1495, %v1494
      %v1509 = vpack.c.bf16 %v1497, %v1496
      %v1510 = vpack.c.bf16 %v1499, %v1498
      %v1511 = vpack.c.bf16 %v1501, %v1500
      %v1512 = vpack.c.bf16 %v1503, %v1502
      %v1513 = vpack.c.bf16 %v1505, %v1504
      %v1514 = vld [vmem:[%s452] sm:$0xf]
      %v1515 = vld [vmem:[%s452 + $0x4] sm:$0xf]
      %v1516 = vld [vmem:[%s452 + $0x8] sm:$0xf]
      %v1517 = vld [vmem:[%s452 + $0xc] sm:$0xf]
      %v1518 = vld [vmem:[%s452 + $0x10] sm:$0xf]
      %v1519 = vld [vmem:[%s452 + $0x14] sm:$0xf]
      %v1520 = vld [vmem:[%s452 + $0x18] sm:$0xf]
      %v1521 = vld [vmem:[%s452 + $0x1c] sm:$0xf]
      %v1522 = vld [vmem:[%s452 + $0x20] sm:$0xf]
      %v1523 = vld [vmem:[%s452 + $0x24] sm:$0xf]
      %v1524 = vld [vmem:[%s452 + $0x28] sm:$0xf]
      %v1525 = vld [vmem:[%s452 + $0x2c] sm:$0xf]
      %v1526 = vld [vmem:[%s452 + $0x30] sm:$0xf]
      %v1527 = vld [vmem:[%s452 + $0x34] sm:$0xf]
      %v1528 = vld [vmem:[%s452 + $0x38] sm:$0xf]
      %v1529 = vld [vmem:[%s452 + $0x3c] sm:$0xf]
      %v1546 = vunpack.c.l.b16 %v1514
      %v1547 = vunpack.c.l.b16 %v1515
      %v1548 = vunpack.c.l.b16 %v1516
      %v1549 = vunpack.c.l.b16 %v1517
      %v1550 = vunpack.c.l.b16 %v1518
      %v1551 = vunpack.c.l.b16 %v1519
      %v1552 = vunpack.c.l.b16 %v1520
      %v1553 = vunpack.c.l.b16 %v1521
      %v1554 = vunpack.c.l.b16 %v1522
      %v1555 = vunpack.c.l.b16 %v1523
      %v1556 = vunpack.c.l.b16 %v1524
      %v1557 = vunpack.c.l.b16 %v1525
      %v1558 = vunpack.c.l.b16 %v1526
      %v1559 = vunpack.c.l.b16 %v1527
      %v1560 = vunpack.c.l.b16 %v1528
      %v1561 = vunpack.c.l.b16 %v1529
      %v1562 = vpack.c.b16 %v1547, %v1546
      %v1563 = vpack.c.b16 %v1549, %v1548
      %v1564 = vpack.c.b16 %v1551, %v1550
      %v1565 = vpack.c.b16 %v1553, %v1552
      %v1566 = vpack.c.b16 %v1555, %v1554
      %v1567 = vpack.c.b16 %v1557, %v1556
      %v1568 = vpack.c.b16 %v1559, %v1558
      %v1569 = vpack.c.b16 %v1561, %v1560
      %1578 = vmatprep.subr.bf16.mxu0 0
      %1579 = vmatpush1.bf16.msra.mxu0 %v1562
      %1580 = vmatprep.subr.bf16.mxu0 0
      %1581 = vmatpush1.bf16.msra.mxu0 %v1563
      %1582 = vmatprep.subr.bf16.mxu0 0
      %1583 = vmatpush1.bf16.msra.mxu0 %v1564
      %1584 = vmatprep.subr.bf16.mxu0 0
      %1585 = vmatpush1.bf16.msra.mxu0 %v1565
      %1586 = vmatprep.subr.bf16.mxu0 0
      %1587 = vmatpush1.bf16.msra.mxu0 %v1566
      %1588 = vmatprep.subr.bf16.mxu0 0
      %1589 = vmatpush1.bf16.msra.mxu0 %v1567
      %1590 = vmatprep.subr.bf16.mxu0 0
      %1591 = vmatpush1.bf16.msra.mxu0 %v1568
      %1592 = vmatprep.subr.bf16.mxu0 0
      %1593 = vmatpush1.bf16.msra.mxu0 %v1569
      %1594 = vmatprep.subr.bf16.mxu0 0
      %1595 = vmatpush1.bf16.msra.mxu0 0
      %1596 = vmatprep.subr.bf16.mxu0 0
      %1597 = vmatpush1.bf16.msra.mxu0 0
      %1598 = vmatprep.subr.bf16.mxu0 0
      %1599 = vmatpush1.bf16.msra.mxu0 0
      %1600 = vmatprep.subr.bf16.mxu0 0
      %1601 = vmatpush1.bf16.msra.mxu0 0
      %1602 = vmatprep.subr.bf16.mxu0 0
      %1603 = vmatpush1.bf16.msra.mxu0 0
      %1604 = vmatprep.subr.bf16.mxu0 0
      %1605 = vmatpush1.bf16.msra.mxu0 0
      %1606 = vmatprep.subr.bf16.mxu0 0
      %1607 = vmatpush1.bf16.msra.mxu0 0
      %1608 = vmatprep.subr.bf16.mxu0 0
      %1609 = vmatpush1.bf16.msra.mxu0 0
      %1610 = vmatprep.mubr.bf16.mxu0 0
      %1611 = vmatmul.mubr.bf16.gmra.mrb[0].mxu0 %v1506
      %v1612 = vpop.f32.mrb[0].mxu0
      %v1613 = vadd.f32 0.0, %v1612
      %v1614 = vpop.f32.mrb[0].mxu0
      %v1615 = vpop.f32.mrb[0].mxu0
      %v1616 = vadd.f32 0.0, %v1615
      %v1617 = vpop.f32.mrb[0].mxu0
      %1618 = vmatprep.mubr.bf16.mxu0 0
      %1619 = vmatmul.mubr.bf16.gmra.mrb[0].mxu0 %v1507
      %v1620 = vpop.f32.mrb[0].mxu0
      %v1621 = vadd.f32 0.0, %v1620
      %v1622 = vpop.f32.mrb[0].mxu0
      %v1623 = vpop.f32.mrb[0].mxu0
      %v1624 = vadd.f32 0.0, %v1623
      %v1625 = vpop.f32.mrb[0].mxu0
      %1626 = vmatprep.mubr.bf16.mxu0 0
      %1627 = vmatmul.mubr.bf16.gmra.mrb[0].mxu0 %v1508
      %v1628 = vpop.f32.mrb[0].mxu0
      %v1629 = vadd.f32 0.0, %v1628
      %v1630 = vpop.f32.mrb[0].mxu0
      %v1631 = vpop.f32.mrb[0].mxu0
      %v1632 = vadd.f32 0.0, %v1631
      %v1633 = vpop.f32.mrb[0].mxu0
      %1634 = vmatprep.mubr.bf16.mxu0 0
      %1635 = vmatmul.mubr.bf16.gmra.mrb[0].mxu0 %v1509
      %v1636 = vpop.f32.mrb[0].mxu0
      %v1637 = vadd.f32 0.0, %v1636
      %v1638 = vpop.f32.mrb[0].mxu0
      %v1639 = vpop.f32.mrb[0].mxu0
      %v1640 = vadd.f32 0.0, %v1639
      %v1641 = vpop.f32.mrb[0].mxu0
      %1642 = vmatprep.mubr.bf16.mxu0 0
      %1643 = vmatmul.mubr.bf16.gmra.mrb[0].mxu0 %v1510
      %v1644 = vpop.f32.mrb[0].mxu0
      %v1645 = vadd.f32 0.0, %v1644
      %v1646 = vpop.f32.mrb[0].mxu0
      %v1647 = vpop.f32.mrb[0].mxu0
      %v1648 = vadd.f32 0.0, %v1647
      %v1649 = vpop.f32.mrb[0].mxu0
      %1650 = vmatprep.mubr.bf16.mxu0 0
      %1651 = vmatmul.mubr.bf16.gmra.mrb[0].mxu0 %v1511
      %v1652 = vpop.f32.mrb[0].mxu0
      %v1653 = vadd.f32 0.0, %v1652
      %v1654 = vpop.f32.mrb[0].mxu0
      %v1655 = vpop.f32.mrb[0].mxu0
      %v1656 = vadd.f32 0.0, %v1655
      %v1657 = vpop.f32.mrb[0].mxu0
      %1658 = vmatprep.mubr.bf16.mxu0 0
      %1659 = vmatmul.mubr.bf16.gmra.mrb[0].mxu0 %v1512
      %v1660 = vpop.f32.mrb[0].mxu0
      %v1661 = vadd.f32 0.0, %v1660
      %v1662 = vpop.f32.mrb[0].mxu0
      %v1663 = vpop.f32.mrb[0].mxu0
      %v1664 = vadd.f32 0.0, %v1663
      %v1665 = vpop.f32.mrb[0].mxu0
      %1666 = vmatprep.mubr.bf16.mxu0 0
      %1667 = vmatmul.mubr.bf16.gmra.mrb[0].mxu0 %v1513
      %v1668 = vpop.f32.mrb[0].mxu0
      %v1669 = vadd.f32 0.0, %v1668
      %v1670 = vpop.f32.mrb[0].mxu0
      %v1671 = vpop.f32.mrb[0].mxu0
      %v1672 = vadd.f32 0.0, %v1671
      %v1673 = vpop.f32.mrb[0].mxu0
      %1674 = vdwg.mxu0
      %v1675 = vmul.f32 %v1613, %v1613
      %v1676 = vmul.f32 %v1616, %v1616
      %v1677 = vmul.f32 %v1621, %v1621
      %v1678 = vmul.f32 %v1624, %v1624
      %v1679 = vmul.f32 %v1629, %v1629
      %v1680 = vmul.f32 %v1632, %v1632
      %v1681 = vmul.f32 %v1637, %v1637
      %v1682 = vmul.f32 %v1640, %v1640
      %v1683 = vmul.f32 %v1645, %v1645
      %v1684 = vmul.f32 %v1648, %v1648
      %v1685 = vmul.f32 %v1653, %v1653
      %v1686 = vmul.f32 %v1656, %v1656
      %v1687 = vmul.f32 %v1661, %v1661
      %v1688 = vmul.f32 %v1664, %v1664
      %v1689 = vmul.f32 %v1669, %v1669
      %v1690 = vmul.f32 %v1672, %v1672
      %v1691 = vmul.f32 %v1613, %v1675
      %v1692 = vmul.f32 %v1616, %v1676
      %v1693 = vmul.f32 %v1621, %v1677
      %v1694 = vmul.f32 %v1624, %v1678
      %v1695 = vmul.f32 %v1629, %v1679
      %v1696 = vmul.f32 %v1632, %v1680
      %v1697 = vmul.f32 %v1637, %v1681
      %v1698 = vmul.f32 %v1640, %v1682
      %v1699 = vmul.f32 %v1645, %v1683
      %v1700 = vmul.f32 %v1648, %v1684
      %v1701 = vmul.f32 %v1653, %v1685
      %v1702 = vmul.f32 %v1656, %v1686
      %v1703 = vmul.f32 %v1661, %v1687
      %v1704 = vmul.f32 %v1664, %v1688
      %v1705 = vmul.f32 %v1669, %v1689
      %v1706 = vmul.f32 %v1672, %v1690
      %v1707 = vmul.f32 %v1691, 0.044715
      %v1708 = vmul.f32 %v1692, 0.044715
      %v1709 = vmul.f32 %v1693, 0.044715
      %v1710 = vmul.f32 %v1694, 0.044715
      %v1711 = vmul.f32 %v1695, 0.044715
      %v1712 = vmul.f32 %v1696, 0.044715
      %v1713 = vmul.f32 %v1697, 0.044715
      %v1714 = vmul.f32 %v1698, 0.044715
      %v1715 = vmul.f32 %v1699, 0.044715
      %v1716 = vmul.f32 %v1700, 0.044715
      %v1717 = vmul.f32 %v1701, 0.044715
      %v1718 = vmul.f32 %v1702, 0.044715
      %v1719 = vmul.f32 %v1703, 0.044715
      %v1720 = vmul.f32 %v1704, 0.044715
      %v1721 = vmul.f32 %v1705, 0.044715
      %v1722 = vmul.f32 %v1706, 0.044715
      %v1723 = vadd.f32 %v1613, %v1707
      %v1724 = vadd.f32 %v1616, %v1708
      %v1725 = vadd.f32 %v1621, %v1709
      %v1726 = vadd.f32 %v1624, %v1710
      %v1727 = vadd.f32 %v1629, %v1711
      %v1728 = vadd.f32 %v1632, %v1712
      %v1729 = vadd.f32 %v1637, %v1713
      %v1730 = vadd.f32 %v1640, %v1714
      %v1731 = vadd.f32 %v1645, %v1715
      %v1732 = vadd.f32 %v1648, %v1716
      %v1733 = vadd.f32 %v1653, %v1717
      %v1734 = vadd.f32 %v1656, %v1718
      %v1735 = vadd.f32 %v1661, %v1719
      %v1736 = vadd.f32 %v1664, %v1720
      %v1737 = vadd.f32 %v1669, %v1721
      %v1738 = vadd.f32 %v1672, %v1722
      %v1739 = vmul.f32 %v1723, 0.7978846
      %v1740 = vmul.f32 %v1724, 0.7978846
      %v1741 = vmul.f32 %v1725, 0.7978846
      %v1742 = vmul.f32 %v1726, 0.7978846
      %v1743 = vmul.f32 %v1727, 0.7978846
      %v1744 = vmul.f32 %v1728, 0.7978846
      %v1745 = vmul.f32 %v1729, 0.7978846
      %v1746 = vmul.f32 %v1730, 0.7978846
      %v1747 = vmul.f32 %v1731, 0.7978846
      %v1748 = vmul.f32 %v1732, 0.7978846
      %v1749 = vmul.f32 %v1733, 0.7978846
      %v1750 = vmul.f32 %v1734, 0.7978846
      %v1751 = vmul.f32 %v1735, 0.7978846
      %v1752 = vmul.f32 %v1736, 0.7978846
      %v1753 = vmul.f32 %v1737, 0.7978846
      %v1754 = vmul.f32 %v1738, 0.7978846
      %v1755 = vtanh.pop %v1739
      %v1756 = vtanh.pop %v1740
      %v1757 = vtanh.pop %v1741
      %v1758 = vtanh.pop %v1742
      %v1759 = vtanh.pop %v1743
      %v1760 = vtanh.pop %v1744
      %v1761 = vtanh.pop %v1745
      %v1762 = vtanh.pop %v1746
      %v1763 = vtanh.pop %v1747
      %v1764 = vtanh.pop %v1748
      %v1765 = vtanh.pop %v1749
      %v1766 = vtanh.pop %v1750
      %v1767 = vtanh.pop %v1751
      %v1768 = vtanh.pop %v1752
      %v1769 = vtanh.pop %v1753
      %v1770 = vtanh.pop %v1754
      %v1771 = vadd.f32 %v1755, 1.0
      %v1772 = vadd.f32 %v1756, 1.0
      %v1773 = vadd.f32 %v1757, 1.0
      %v1774 = vadd.f32 %v1758, 1.0
      %v1775 = vadd.f32 %v1759, 1.0
      %v1776 = vadd.f32 %v1760, 1.0
      %v1777 = vadd.f32 %v1761, 1.0
      %v1778 = vadd.f32 %v1762, 1.0
      %v1779 = vadd.f32 %v1763, 1.0
      %v1780 = vadd.f32 %v1764, 1.0
      %v1781 = vadd.f32 %v1765, 1.0
      %v1782 = vadd.f32 %v1766, 1.0
      %v1783 = vadd.f32 %v1767, 1.0
      %v1784 = vadd.f32 %v1768, 1.0
      %v1785 = vadd.f32 %v1769, 1.0
      %v1786 = vadd.f32 %v1770, 1.0
      %v1787 = vmul.f32 %v1771, 0.5
      %v1788 = vmul.f32 %v1772, 0.5
      %v1789 = vmul.f32 %v1773, 0.5
      %v1790 = vmul.f32 %v1774, 0.5
      %v1791 = vmul.f32 %v1775, 0.5
      %v1792 = vmul.f32 %v1776, 0.5
      %v1793 = vmul.f32 %v1777, 0.5
      %v1794 = vmul.f32 %v1778, 0.5
      %v1795 = vmul.f32 %v1779, 0.5
      %v1796 = vmul.f32 %v1780, 0.5
      %v1797 = vmul.f32 %v1781, 0.5
      %v1798 = vmul.f32 %v1782, 0.5
      %v1799 = vmul.f32 %v1783, 0.5
      %v1800 = vmul.f32 %v1784, 0.5
      %v1801 = vmul.f32 %v1785, 0.5
      %v1802 = vmul.f32 %v1786, 0.5
      %v1803 = vmul.f32 %v1613, %v1787
      %v1804 = vmul.f32 %v1616, %v1788
      %v1805 = vmul.f32 %v1621, %v1789
      %v1806 = vmul.f32 %v1624, %v1790
      %v1807 = vmul.f32 %v1629, %v1791
      %v1808 = vmul.f32 %v1632, %v1792
      %v1809 = vmul.f32 %v1637, %v1793
      %v1810 = vmul.f32 %v1640, %v1794
      %v1811 = vmul.f32 %v1645, %v1795
      %v1812 = vmul.f32 %v1648, %v1796
      %v1813 = vmul.f32 %v1653, %v1797
      %v1814 = vmul.f32 %v1656, %v1798
      %v1815 = vmul.f32 %v1661, %v1799
      %v1816 = vmul.f32 %v1664, %v1800
      %v1817 = vmul.f32 %v1669, %v1801
      %v1818 = vmul.f32 %v1672, %v1802
      %v1819 = vpack.c.bf16 %v1804, %v1803
      %v1820 = vpack.c.bf16 %v1806, %v1805
      %v1821 = vpack.c.bf16 %v1808, %v1807
      %v1822 = vpack.c.bf16 %v1810, %v1809
      %v1823 = vpack.c.bf16 %v1812, %v1811
      %v1824 = vpack.c.bf16 %v1814, %v1813
      %v1825 = vpack.c.bf16 %v1816, %v1815
      %v1826 = vpack.c.bf16 %v1818, %v1817
      %v1827 = vld [vmem:[%s457] sm:$0xf]
      %v1828 = vld [vmem:[%s457 + $0x4] sm:$0xf]
      %v1829 = vld [vmem:[%s457 + $0x8] sm:$0xf]
      %v1830 = vld [vmem:[%s457 + $0xc] sm:$0xf]
      %v1831 = vld [vmem:[%s457 + $0x10] sm:$0xf]
      %v1832 = vld [vmem:[%s457 + $0x14] sm:$0xf]
      %v1833 = vld [vmem:[%s457 + $0x18] sm:$0xf]
      %v1834 = vld [vmem:[%s457 + $0x1c] sm:$0xf]
      %v1835 = vld [vmem:[%s457 + $0x20] sm:$0xf]
      %v1836 = vld [vmem:[%s457 + $0x24] sm:$0xf]
      %v1837 = vld [vmem:[%s457 + $0x28] sm:$0xf]
      %v1838 = vld [vmem:[%s457 + $0x2c] sm:$0xf]
      %v1839 = vld [vmem:[%s457 + $0x30] sm:$0xf]
      %v1840 = vld [vmem:[%s457 + $0x34] sm:$0xf]
      %v1841 = vld [vmem:[%s457 + $0x38] sm:$0xf]
      %v1842 = vld [vmem:[%s457 + $0x3c] sm:$0xf]
      %v1859 = vunpack.c.l.b16 %v1827
      %v1860 = vunpack.c.l.b16 %v1828
      %v1861 = vunpack.c.l.b16 %v1829
      %v1862 = vunpack.c.l.b16 %v1830
      %v1863 = vunpack.c.l.b16 %v1831
      %v1864 = vunpack.c.l.b16 %v1832
      %v1865 = vunpack.c.l.b16 %v1833
      %v1866 = vunpack.c.l.b16 %v1834
      %v1867 = vunpack.c.l.b16 %v1835
      %v1868 = vunpack.c.l.b16 %v1836
      %v1869 = vunpack.c.l.b16 %v1837
      %v1870 = vunpack.c.l.b16 %v1838
      %v1871 = vunpack.c.l.b16 %v1839
      %v1872 = vunpack.c.l.b16 %v1840
      %v1873 = vunpack.c.l.b16 %v1841
      %v1874 = vunpack.c.l.b16 %v1842
      %v1875 = vpack.c.b16 %v1860, %v1859
      %v1876 = vpack.c.b16 %v1862, %v1861
      %v1877 = vpack.c.b16 %v1864, %v1863
      %v1878 = vpack.c.b16 %v1866, %v1865
      %v1879 = vpack.c.b16 %v1868, %v1867
      %v1880 = vpack.c.b16 %v1870, %v1869
      %v1881 = vpack.c.b16 %v1872, %v1871
      %v1882 = vpack.c.b16 %v1874, %v1873
      %1891 = vmatprep.subr.bf16.mxu0 0
      %1892 = vmatpush1.bf16.msra.mxu0 %v1875
      %1893 = vmatprep.subr.bf16.mxu0 0
      %1894 = vmatpush1.bf16.msra.mxu0 %v1876
      %1895 = vmatprep.subr.bf16.mxu0 0
      %1896 = vmatpush1.bf16.msra.mxu0 %v1877
      %1897 = vmatprep.subr.bf16.mxu0 0
      %1898 = vmatpush1.bf16.msra.mxu0 %v1878
      %1899 = vmatprep.subr.bf16.mxu0 0
      %1900 = vmatpush1.bf16.msra.mxu0 %v1879
      %1901 = vmatprep.subr.bf16.mxu0 0
      %1902 = vmatpush1.bf16.msra.mxu0 %v1880
      %1903 = vmatprep.subr.bf16.mxu0 0
      %1904 = vmatpush1.bf16.msra.mxu0 %v1881
      %1905 = vmatprep.subr.bf16.mxu0 0
      %1906 = vmatpush1.bf16.msra.mxu0 %v1882
      %1907 = vmatprep.subr.bf16.mxu0 0
      %1908 = vmatpush1.bf16.msra.mxu0 0
      %1909 = vmatprep.subr.bf16.mxu0 0
      %1910 = vmatpush1.bf16.msra.mxu0 0
      %1911 = vmatprep.subr.bf16.mxu0 0
      %1912 = vmatpush1.bf16.msra.mxu0 0
      %1913 = vmatprep.subr.bf16.mxu0 0
      %1914 = vmatpush1.bf16.msra.mxu0 0
      %1915 = vmatprep.subr.bf16.mxu0 0
      %1916 = vmatpush1.bf16.msra.mxu0 0
      %1917 = vmatprep.subr.bf16.mxu0 0
      %1918 = vmatpush1.bf16.msra.mxu0 0
      %1919 = vmatprep.subr.bf16.mxu0 0
      %1920 = vmatpush1.bf16.msra.mxu0 0
      %1921 = vmatprep.subr.bf16.mxu0 0
      %1922 = vmatpush1.bf16.msra.mxu0 0
      %1923 = vmatprep.mubr.bf16.mxu0 0
      %1924 = vmatmul.mubr.bf16.gmra.mrb[0].mxu0 %v1819
      %v1925 = vpop.f32.mrb[0].mxu0
      %v1926 = vadd.f32 0.0, %v1925
      %v1927 = vpop.f32.mrb[0].mxu0
      %v1928 = vpop.f32.mrb[0].mxu0
      %v1929 = vadd.f32 0.0, %v1928
      %v1930 = vpop.f32.mrb[0].mxu0
      %1931 = vmatprep.mubr.bf16.mxu0 0
      %1932 = vmatmul.mubr.bf16.gmra.mrb[0].mxu0 %v1820
      %v1933 = vpop.f32.mrb[0].mxu0
      %v1934 = vadd.f32 0.0, %v1933
      %v1935 = vpop.f32.mrb[0].mxu0
      %v1936 = vpop.f32.mrb[0].mxu0
      %v1937 = vadd.f32 0.0, %v1936
      %v1938 = vpop.f32.mrb[0].mxu0
      %1939 = vmatprep.mubr.bf16.mxu0 0
      %1940 = vmatmul.mubr.bf16.gmra.mrb[0].mxu0 %v1821
      %v1941 = vpop.f32.mrb[0].mxu0
      %v1942 = vadd.f32 0.0, %v1941
      %v1943 = vpop.f32.mrb[0].mxu0
      %v1944 = vpop.f32.mrb[0].mxu0
      %v1945 = vadd.f32 0.0, %v1944
      %v1946 = vpop.f32.mrb[0].mxu0
      %1947 = vmatprep.mubr.bf16.mxu0 0
      %1948 = vmatmul.mubr.bf16.gmra.mrb[0].mxu0 %v1822
      %v1949 = vpop.f32.mrb[0].mxu0
      %v1950 = vadd.f32 0.0, %v1949
      %v1951 = vpop.f32.mrb[0].mxu0
      %v1952 = vpop.f32.mrb[0].mxu0
      %v1953 = vadd.f32 0.0, %v1952
      %v1954 = vpop.f32.mrb[0].mxu0
      %1955 = vmatprep.mubr.bf16.mxu0 0
      %1956 = vmatmul.mubr.bf16.gmra.mrb[0].mxu0 %v1823
      %v1957 = vpop.f32.mrb[0].mxu0
      %v1958 = vadd.f32 0.0, %v1957
      %v1959 = vpop.f32.mrb[0].mxu0
      %v1960 = vpop.f32.mrb[0].mxu0
      %v1961 = vadd.f32 0.0, %v1960
      %v1962 = vpop.f32.mrb[0].mxu0
      %1963 = vmatprep.mubr.bf16.mxu0 0
      %1964 = vmatmul.mubr.bf16.gmra.mrb[0].mxu0 %v1824
      %v1965 = vpop.f32.mrb[0].mxu0
      %v1966 = vadd.f32 0.0, %v1965
      %v1967 = vpop.f32.mrb[0].mxu0
      %v1968 = vpop.f32.mrb[0].mxu0
      %v1969 = vadd.f32 0.0, %v1968
      %v1970 = vpop.f32.mrb[0].mxu0
      %1971 = vmatprep.mubr.bf16.mxu0 0
      %1972 = vmatmul.mubr.bf16.gmra.mrb[0].mxu0 %v1825
      %v1973 = vpop.f32.mrb[0].mxu0
      %v1974 = vadd.f32 0.0, %v1973
      %v1975 = vpop.f32.mrb[0].mxu0
      %v1976 = vpop.f32.mrb[0].mxu0
      %v1977 = vadd.f32 0.0, %v1976
      %v1978 = vpop.f32.mrb[0].mxu0
      %1979 = vmatprep.mubr.bf16.mxu0 0
      %1980 = vmatmul.mubr.bf16.gmra.mrb[0].mxu0 %v1826
      %v1981 = vpop.f32.mrb[0].mxu0
      %v1982 = vadd.f32 0.0, %v1981
      %v1983 = vpop.f32.mrb[0].mxu0
      %v1984 = vpop.f32.mrb[0].mxu0
      %v1985 = vadd.f32 0.0, %v1984
      %v1986 = vpop.f32.mrb[0].mxu0
      %1987 = vdwg.mxu0
      %v1988 = vadd.f32 %v1490, %v1926
      %v1989 = vadd.f32 %v1491, %v1929
      %v1990 = vadd.f32 %v1492, %v1934
      %v1991 = vadd.f32 %v1493, %v1937
      %v1992 = vadd.f32 %v1494, %v1942
      %v1993 = vadd.f32 %v1495, %v1945
      %v1994 = vadd.f32 %v1496, %v1950
      %v1995 = vadd.f32 %v1497, %v1953
      %v1996 = vadd.f32 %v1498, %v1958
      %v1997 = vadd.f32 %v1499, %v1961
      %v1998 = vadd.f32 %v1500, %v1966
      %v1999 = vadd.f32 %v1501, %v1969
      %v2000 = vadd.f32 %v1502, %v1974
      %v2001 = vadd.f32 %v1503, %v1977
      %v2002 = vadd.f32 %v1504, %v1982
      %v2003 = vadd.f32 %v1505, %v1985
      %2004 = vst [vmem:[#allocation2] sm:$0xff] %v1988
      %2005 = vst [vmem:[#allocation2 + $0x8] sm:$0xff] %v1989
      %2006 = vst [vmem:[#allocation2 + $0x10] sm:$0xff] %v1990
      %2007 = vst [vmem:[#allocation2 + $0x18] sm:$0xff] %v1991
      %2008 = vst [vmem:[#allocation2 + $0x20] sm:$0xff] %v1992
      %2009 = vst [vmem:[#allocation2 + $0x28] sm:$0xff] %v1993
      %2010 = vst [vmem:[#allocation2 + $0x30] sm:$0xff] %v1994
      %2011 = vst [vmem:[#allocation2 + $0x38] sm:$0xff] %v1995
      %2012 = vst [vmem:[#allocation2 + $0x40] sm:$0xff] %v1996
      %2013 = vst [vmem:[#allocation2 + $0x48] sm:$0xff] %v1997
      %2014 = vst [vmem:[#allocation2 + $0x50] sm:$0xff] %v1998
      %2015 = vst [vmem:[#allocation2 + $0x58] sm:$0xff] %v1999
      %2016 = vst [vmem:[#allocation2 + $0x60] sm:$0xff] %v2000
      %2017 = vst [vmem:[#allocation2 + $0x68] sm:$0xff] %v2001
      %2018 = vst [vmem:[#allocation2 + $0x70] sm:$0xff] %v2002
      %2019 = vst [vmem:[#allocation2 + $0x78] sm:$0xff] %v2003
      %p2020 = scmp.eq.s32.totalorder %s27, 3
      // Predicated region
      $region69: #{_forward_impl.1} parent=63 // pred_check
        %p2021 = pneg %p2020
      $region70: #{_forward_impl.1} parent=63 // pred_check_branch
        %2023 = sbr.rel (%p2021) target = $region72
      $region71: #{_forward_impl.1} parent=63 // pred_region
        %v2024 = vld [vmem:[#allocation2] sm:$0xff]
        %v2025 = vld [vmem:[#allocation2 + $0x8] sm:$0xff]
        %v2026 = vld [vmem:[#allocation2 + $0x10] sm:$0xff]
        %v2027 = vld [vmem:[#allocation2 + $0x18] sm:$0xff]
        %v2028 = vld [vmem:[#allocation2 + $0x20] sm:$0xff]
        %v2029 = vld [vmem:[#allocation2 + $0x28] sm:$0xff]
        %v2030 = vld [vmem:[#allocation2 + $0x30] sm:$0xff]
        %v2031 = vld [vmem:[#allocation2 + $0x38] sm:$0xff]
        %v2032 = vld [vmem:[#allocation2 + $0x40] sm:$0xff]
        %v2033 = vld [vmem:[#allocation2 + $0x48] sm:$0xff]
        %v2034 = vld [vmem:[#allocation2 + $0x50] sm:$0xff]
        %v2035 = vld [vmem:[#allocation2 + $0x58] sm:$0xff]
        %v2036 = vld [vmem:[#allocation2 + $0x60] sm:$0xff]
        %v2037 = vld [vmem:[#allocation2 + $0x68] sm:$0xff]
        %v2038 = vld [vmem:[#allocation2 + $0x70] sm:$0xff]
        %v2039 = vld [vmem:[#allocation2 + $0x78] sm:$0xff]
        %v2040 = vld [vmem:[#allocation3] sm:$0xff]
        %v2041 = vld [vmem:[#allocation3 + $0x8] sm:$0xff]
        %v2042 = vld [vmem:[#allocation3 + $0x10] sm:$0xff]
        %v2043 = vld [vmem:[#allocation3 + $0x18] sm:$0xff]
        %v2044 = vld [vmem:[#allocation3 + $0x20] sm:$0xff]
        %v2045 = vld [vmem:[#allocation3 + $0x28] sm:$0xff]
        %v2046 = vld [vmem:[#allocation3 + $0x30] sm:$0xff]
        %v2047 = vld [vmem:[#allocation3 + $0x38] sm:$0xff]
        %v2048 = vld [vmem:[#allocation3 + $0x40] sm:$0xff]
        %v2049 = vld [vmem:[#allocation3 + $0x48] sm:$0xff]
        %v2050 = vld [vmem:[#allocation3 + $0x50] sm:$0xff]
        %v2051 = vld [vmem:[#allocation3 + $0x58] sm:$0xff]
        %v2052 = vld [vmem:[#allocation3 + $0x60] sm:$0xff]
        %v2053 = vld [vmem:[#allocation3 + $0x68] sm:$0xff]
        %v2054 = vld [vmem:[#allocation3 + $0x70] sm:$0xff]
        %v2055 = vld [vmem:[#allocation3 + $0x78] sm:$0xff]
        %v2056 = vadd.f32 %v2024, %v2040
        %v2057 = vadd.f32 %v2025, %v2041
        %v2058 = vadd.f32 %v2026, %v2042
        %v2059 = vadd.f32 %v2027, %v2043
        %v2060 = vadd.f32 %v2028, %v2044
        %v2061 = vadd.f32 %v2029, %v2045
        %v2062 = vadd.f32 %v2030, %v2046
        %v2063 = vadd.f32 %v2031, %v2047
        %v2064 = vadd.f32 %v2032, %v2048
        %v2065 = vadd.f32 %v2033, %v2049
        %v2066 = vadd.f32 %v2034, %v2050
        %v2067 = vadd.f32 %v2035, %v2051
        %v2068 = vadd.f32 %v2036, %v2052
        %v2069 = vadd.f32 %v2037, %v2053
        %v2070 = vadd.f32 %v2038, %v2054
        %v2071 = vadd.f32 %v2039, %v2055
        %v2072 = vpack.c.bf16 %v2057, %v2056
        %v2073 = vpack.c.bf16 %v2059, %v2058
        %v2074 = vpack.c.bf16 %v2061, %v2060
        %v2075 = vpack.c.bf16 %v2063, %v2062
        %v2076 = vpack.c.bf16 %v2065, %v2064
        %v2077 = vpack.c.bf16 %v2067, %v2066
        %v2078 = vpack.c.bf16 %v2069, %v2068
        %v2079 = vpack.c.bf16 %v2071, %v2070
        %v2080 = vld [vmem:[%s10] sm:$0xf]
        %v2081 = vld [vmem:[%s10 + $0x4] sm:$0xf]
        %v2082 = vld [vmem:[%s10 + $0x8] sm:$0xf]
        %v2083 = vld [vmem:[%s10 + $0xc] sm:$0xf]
        %v2084 = vld [vmem:[%s10 + $0x10] sm:$0xf]
        %v2085 = vld [vmem:[%s10 + $0x14] sm:$0xf]
        %v2086 = vld [vmem:[%s10 + $0x18] sm:$0xf]
        %v2087 = vld [vmem:[%s10 + $0x1c] sm:$0xf]
        %v2088 = vld [vmem:[%s10 + $0x20] sm:$0xf]
        %v2089 = vld [vmem:[%s10 + $0x24] sm:$0xf]
        %v2090 = vld [vmem:[%s10 + $0x28] sm:$0xf]
        %v2091 = vld [vmem:[%s10 + $0x2c] sm:$0xf]
        %v2092 = vld [vmem:[%s10 + $0x30] sm:$0xf]
        %v2093 = vld [vmem:[%s10 + $0x34] sm:$0xf]
        %v2094 = vld [vmem:[%s10 + $0x38] sm:$0xf]
        %v2095 = vld [vmem:[%s10 + $0x3c] sm:$0xf]
        %v2112 = vunpack.c.l.b16 %v2080
        %v2113 = vunpack.c.l.b16 %v2081
        %v2114 = vunpack.c.l.b16 %v2082
        %v2115 = vunpack.c.l.b16 %v2083
        %v2116 = vunpack.c.l.b16 %v2084
        %v2117 = vunpack.c.l.b16 %v2085
        %v2118 = vunpack.c.l.b16 %v2086
        %v2119 = vunpack.c.l.b16 %v2087
        %v2120 = vunpack.c.l.b16 %v2088
        %v2121 = vunpack.c.l.b16 %v2089
        %v2122 = vunpack.c.l.b16 %v2090
        %v2123 = vunpack.c.l.b16 %v2091
        %v2124 = vunpack.c.l.b16 %v2092
        %v2125 = vunpack.c.l.b16 %v2093
        %v2126 = vunpack.c.l.b16 %v2094
        %v2127 = vunpack.c.l.b16 %v2095
        %v2128 = vpack.c.b16 %v2113, %v2112
        %v2129 = vpack.c.b16 %v2115, %v2114
        %v2130 = vpack.c.b16 %v2117, %v2116
        %v2131 = vpack.c.b16 %v2119, %v2118
        %v2132 = vpack.c.b16 %v2121, %v2120
        %v2133 = vpack.c.b16 %v2123, %v2122
        %v2134 = vpack.c.b16 %v2125, %v2124
        %v2135 = vpack.c.b16 %v2127, %v2126
        %2144 = vmatprep.subr.bf16.mxu0 0
        %2145 = vmatpush1.bf16.msra.mxu0 %v2128
        %2146 = vmatprep.subr.bf16.mxu0 0
        %2147 = vmatpush1.bf16.msra.mxu0 %v2129
        %2148 = vmatprep.subr.bf16.mxu0 0
        %2149 = vmatpush1.bf16.msra.mxu0 %v2130
        %2150 = vmatprep.subr.bf16.mxu0 0
        %2151 = vmatpush1.bf16.msra.mxu0 %v2131
        %2152 = vmatprep.subr.bf16.mxu0 0
        %2153 = vmatpush1.bf16.msra.mxu0 %v2132
        %2154 = vmatprep.subr.bf16.mxu0 0
        %2155 = vmatpush1.bf16.msra.mxu0 %v2133
        %2156 = vmatprep.subr.bf16.mxu0 0
        %2157 = vmatpush1.bf16.msra.mxu0 %v2134
        %2158 = vmatprep.subr.bf16.mxu0 0
        %2159 = vmatpush1.bf16.msra.mxu0 %v2135
        %2160 = vmatprep.subr.bf16.mxu0 0
        %2161 = vmatpush1.bf16.msra.mxu0 0
        %2162 = vmatprep.subr.bf16.mxu0 0
        %2163 = vmatpush1.bf16.msra.mxu0 0
        %2164 = vmatprep.subr.bf16.mxu0 0
        %2165 = vmatpush1.bf16.msra.mxu0 0
        %2166 = vmatprep.subr.bf16.mxu0 0
        %2167 = vmatpush1.bf16.msra.mxu0 0
        %2168 = vmatprep.subr.bf16.mxu0 0
        %2169 = vmatpush1.bf16.msra.mxu0 0
        %2170 = vmatprep.subr.bf16.mxu0 0
        %2171 = vmatpush1.bf16.msra.mxu0 0
        %2172 = vmatprep.subr.bf16.mxu0 0
        %2173 = vmatpush1.bf16.msra.mxu0 0
        %2174 = vmatprep.subr.bf16.mxu0 0
        %2175 = vmatpush1.bf16.msra.mxu0 0
        %2176 = vmatprep.mubr.bf16.mxu0 0
        %2177 = vmatmul.mubr.bf16.gmra.mrb[0].mxu0 %v2072
        %v2178 = vpop.f32.mrb[0].mxu0
        %v2179 = vadd.f32 0.0, %v2178
        %v2180 = vpop.f32.mrb[0].mxu0
        %v2181 = vpop.f32.mrb[0].mxu0
        %v2182 = vadd.f32 0.0, %v2181
        %v2183 = vpop.f32.mrb[0].mxu0
        %2184 = vmatprep.mubr.bf16.mxu0 0
        %2185 = vmatmul.mubr.bf16.gmra.mrb[0].mxu0 %v2073
        %v2186 = vpop.f32.mrb[0].mxu0
        %v2187 = vadd.f32 0.0, %v2186
        %v2188 = vpop.f32.mrb[0].mxu0
        %v2189 = vpop.f32.mrb[0].mxu0
        %v2190 = vadd.f32 0.0, %v2189
        %v2191 = vpop.f32.mrb[0].mxu0
        %2192 = vmatprep.mubr.bf16.mxu0 0
        %2193 = vmatmul.mubr.bf16.gmra.mrb[0].mxu0 %v2074
        %v2194 = vpop.f32.mrb[0].mxu0
        %v2195 = vadd.f32 0.0, %v2194
        %v2196 = vpop.f32.mrb[0].mxu0
        %v2197 = vpop.f32.mrb[0].mxu0
        %v2198 = vadd.f32 0.0, %v2197
        %v2199 = vpop.f32.mrb[0].mxu0
        %2200 = vmatprep.mubr.bf16.mxu0 0
        %2201 = vmatmul.mubr.bf16.gmra.mrb[0].mxu0 %v2075
        %v2202 = vpop.f32.mrb[0].mxu0
        %v2203 = vadd.f32 0.0, %v2202
        %v2204 = vpop.f32.mrb[0].mxu0
        %v2205 = vpop.f32.mrb[0].mxu0
        %v2206 = vadd.f32 0.0, %v2205
        %v2207 = vpop.f32.mrb[0].mxu0
        %2208 = vmatprep.mubr.bf16.mxu0 0
        %2209 = vmatmul.mubr.bf16.gmra.mrb[0].mxu0 %v2076
        %v2210 = vpop.f32.mrb[0].mxu0
        %v2211 = vadd.f32 0.0, %v2210
        %v2212 = vpop.f32.mrb[0].mxu0
        %v2213 = vpop.f32.mrb[0].mxu0
        %v2214 = vadd.f32 0.0, %v2213
        %v2215 = vpop.f32.mrb[0].mxu0
        %2216 = vmatprep.mubr.bf16.mxu0 0
        %2217 = vmatmul.mubr.bf16.gmra.mrb[0].mxu0 %v2077
        %v2218 = vpop.f32.mrb[0].mxu0
        %v2219 = vadd.f32 0.0, %v2218
        %v2220 = vpop.f32.mrb[0].mxu0
        %v2221 = vpop.f32.mrb[0].mxu0
        %v2222 = vadd.f32 0.0, %v2221
        %v2223 = vpop.f32.mrb[0].mxu0
        %2224 = vmatprep.mubr.bf16.mxu0 0
        %2225 = vmatmul.mubr.bf16.gmra.mrb[0].mxu0 %v2078
        %v2226 = vpop.f32.mrb[0].mxu0
        %v2227 = vadd.f32 0.0, %v2226
        %v2228 = vpop.f32.mrb[0].mxu0
        %v2229 = vpop.f32.mrb[0].mxu0
        %v2230 = vadd.f32 0.0, %v2229
        %v2231 = vpop.f32.mrb[0].mxu0
        %2232 = vmatprep.mubr.bf16.mxu0 0
        %2233 = vmatmul.mubr.bf16.gmra.mrb[0].mxu0 %v2079
        %v2234 = vpop.f32.mrb[0].mxu0
        %v2235 = vadd.f32 0.0, %v2234
        %v2236 = vpop.f32.mrb[0].mxu0
        %v2237 = vpop.f32.mrb[0].mxu0
        %v2238 = vadd.f32 0.0, %v2237
        %v2239 = vpop.f32.mrb[0].mxu0
        %2240 = vdwg.mxu0
        %v2241 = vlaneseq
        %v2242 = vand.u32 %v2241, 127
        %vm2243 = vcmp.lt.s32.totalorder %v2242, 2
        %v2244 = vsel %vm2243, %v2179, -1e+30
        %v2245 = vsel %vm2243, %v2182, -1e+30
        %v2246 = vsel %vm2243, %v2187, -1e+30
        %v2247 = vsel %vm2243, %v2190, -1e+30
        %v2248 = vsel %vm2243, %v2195, -1e+30
        %v2249 = vsel %vm2243, %v2198, -1e+30
        %v2250 = vsel %vm2243, %v2203, -1e+30
        %v2251 = vsel %vm2243, %v2206, -1e+30
        %v2252 = vsel %vm2243, %v2211, -1e+30
        %v2253 = vsel %vm2243, %v2214, -1e+30
        %v2254 = vsel %vm2243, %v2219, -1e+30
        %v2255 = vsel %vm2243, %v2222, -1e+30
        %v2256 = vsel %vm2243, %v2227, -1e+30
        %v2257 = vsel %vm2243, %v2230, -1e+30
        %v2258 = vsel %vm2243, %v2235, -1e+30
        %v2259 = vsel %vm2243, %v2238, -1e+30
        %2260 = vmax.xlane.f32.xlu0 %v2244
        %v2261 = vpop.xlane.xlu0 %2260
        %2262 = vmax.xlane.f32.xlu0 %v2245
        %v2263 = vpop.xlane.xlu0 %2262
        %2264 = vmax.xlane.f32.xlu0 %v2246
        %v2265 = vpop.xlane.xlu0 %2264
        %2266 = vmax.xlane.f32.xlu0 %v2247
        %v2267 = vpop.xlane.xlu0 %2266
        %2268 = vmax.xlane.f32.xlu0 %v2248
        %v2269 = vpop.xlane.xlu0 %2268
        %2270 = vmax.xlane.f32.xlu0 %v2249
        %v2271 = vpop.xlane.xlu0 %2270
        %2272 = vmax.xlane.f32.xlu0 %v2250
        %v2273 = vpop.xlane.xlu0 %2272
        %2274 = vmax.xlane.f32.xlu0 %v2251
        %v2275 = vpop.xlane.xlu0 %2274
        %2276 = vmax.xlane.f32.xlu0 %v2252
        %v2277 = vpop.xlane.xlu0 %2276
        %2278 = vmax.xlane.f32.xlu0 %v2253
        %v2279 = vpop.xlane.xlu0 %2278
        %2280 = vmax.xlane.f32.xlu0 %v2254
        %v2281 = vpop.xlane.xlu0 %2280
        %2282 = vmax.xlane.f32.xlu0 %v2255
        %v2283 = vpop.xlane.xlu0 %2282
        %2284 = vmax.xlane.f32.xlu0 %v2256
        %v2285 = vpop.xlane.xlu0 %2284
        %2286 = vmax.xlane.f32.xlu0 %v2257
        %v2287 = vpop.xlane.xlu0 %2286
        %2288 = vmax.xlane.f32.xlu0 %v2258
        %v2289 = vpop.xlane.xlu0 %2288
        %2290 = vmax.xlane.f32.xlu0 %v2259
        %v2291 = vpop.xlane.xlu0 %2290
        %v2292 = vsub.f32 %v2244, %v2261
        %v2293 = vsub.f32 %v2245, %v2263
        %v2294 = vsub.f32 %v2246, %v2265
        %v2295 = vsub.f32 %v2247, %v2267
        %v2296 = vsub.f32 %v2248, %v2269
        %v2297 = vsub.f32 %v2249, %v2271
        %v2298 = vsub.f32 %v2250, %v2273
        %v2299 = vsub.f32 %v2251, %v2275
        %v2300 = vsub.f32 %v2252, %v2277
        %v2301 = vsub.f32 %v2253, %v2279
        %v2302 = vsub.f32 %v2254, %v2281
        %v2303 = vsub.f32 %v2255, %v2283
        %v2304 = vsub.f32 %v2256, %v2285
        %v2305 = vsub.f32 %v2257, %v2287
        %v2306 = vsub.f32 %v2258, %v2289
        %v2307 = vsub.f32 %v2259, %v2291
        %v2308 = vmul.f32 %v2292, 1.442695
        %v2309 = vpow.pop %v2308
        %v2310 = vmul.f32 %v2293, 1.442695
        %v2311 = vpow.pop %v2310
        %v2312 = vmul.f32 %v2294, 1.442695
        %v2313 = vpow.pop %v2312
        %v2314 = vmul.f32 %v2295, 1.442695
        %v2315 = vpow.pop %v2314
        %v2316 = vmul.f32 %v2296, 1.442695
        %v2317 = vpow.pop %v2316
        %v2318 = vmul.f32 %v2297, 1.442695
        %v2319 = vpow.pop %v2318
        %v2320 = vmul.f32 %v2298, 1.442695
        %v2321 = vpow.pop %v2320
        %v2322 = vmul.f32 %v2299, 1.442695
        %v2323 = vpow.pop %v2322
        %v2324 = vmul.f32 %v2300, 1.442695
        %v2325 = vpow.pop %v2324
        %v2326 = vmul.f32 %v2301, 1.442695
        %v2327 = vpow.pop %v2326
        %v2328 = vmul.f32 %v2302, 1.442695
        %v2329 = vpow.pop %v2328
        %v2330 = vmul.f32 %v2303, 1.442695
        %v2331 = vpow.pop %v2330
        %v2332 = vmul.f32 %v2304, 1.442695
        %v2333 = vpow.pop %v2332
        %v2334 = vmul.f32 %v2305, 1.442695
        %v2335 = vpow.pop %v2334
        %v2336 = vmul.f32 %v2306, 1.442695
        %v2337 = vpow.pop %v2336
        %v2338 = vmul.f32 %v2307, 1.442695
        %v2339 = vpow.pop %v2338
        %2340 = vadd.xlane.f32.xlu0 %v2309
        %v2341 = vpop.xlane.xlu0 %2340
        %2342 = vadd.xlane.f32.xlu0 %v2311
        %v2343 = vpop.xlane.xlu0 %2342
        %2344 = vadd.xlane.f32.xlu0 %v2313
        %v2345 = vpop.xlane.xlu0 %2344
        %2346 = vadd.xlane.f32.xlu0 %v2315
        %v2347 = vpop.xlane.xlu0 %2346
        %2348 = vadd.xlane.f32.xlu0 %v2317
        %v2349 = vpop.xlane.xlu0 %2348
        %2350 = vadd.xlane.f32.xlu0 %v2319
        %v2351 = vpop.xlane.xlu0 %2350
        %2352 = vadd.xlane.f32.xlu0 %v2321
        %v2353 = vpop.xlane.xlu0 %2352
        %2354 = vadd.xlane.f32.xlu0 %v2323
        %v2355 = vpop.xlane.xlu0 %2354
        %2356 = vadd.xlane.f32.xlu0 %v2325
        %v2357 = vpop.xlane.xlu0 %2356
        %2358 = vadd.xlane.f32.xlu0 %v2327
        %v2359 = vpop.xlane.xlu0 %2358
        %2360 = vadd.xlane.f32.xlu0 %v2329
        %v2361 = vpop.xlane.xlu0 %2360
        %2362 = vadd.xlane.f32.xlu0 %v2331
        %v2363 = vpop.xlane.xlu0 %2362
        %2364 = vadd.xlane.f32.xlu0 %v2333
        %v2365 = vpop.xlane.xlu0 %2364
        %2366 = vadd.xlane.f32.xlu0 %v2335
        %v2367 = vpop.xlane.xlu0 %2366
        %2368 = vadd.xlane.f32.xlu0 %v2337
        %v2369 = vpop.xlane.xlu0 %2368
        %2370 = vadd.xlane.f32.xlu0 %v2339
        %v2371 = vpop.xlane.xlu0 %2370
        %v2372 = vrcp.pop %v2341
        %v2373 = vmul.f32 %v2309, %v2372
        %v2374 = vrcp.pop %v2343
        %v2375 = vmul.f32 %v2311, %v2374
        %v2376 = vrcp.pop %v2345
        %v2377 = vmul.f32 %v2313, %v2376
        %v2378 = vrcp.pop %v2347
        %v2379 = vmul.f32 %v2315, %v2378
        %v2380 = vrcp.pop %v2349
        %v2381 = vmul.f32 %v2317, %v2380
        %v2382 = vrcp.pop %v2351
        %v2383 = vmul.f32 %v2319, %v2382
        %v2384 = vrcp.pop %v2353
        %v2385 = vmul.f32 %v2321, %v2384
        %v2386 = vrcp.pop %v2355
        %v2387 = vmul.f32 %v2323, %v2386
        %v2388 = vrcp.pop %v2357
        %v2389 = vmul.f32 %v2325, %v2388
        %v2390 = vrcp.pop %v2359
        %v2391 = vmul.f32 %v2327, %v2390
        %v2392 = vrcp.pop %v2361
        %v2393 = vmul.f32 %v2329, %v2392
        %v2394 = vrcp.pop %v2363
        %v2395 = vmul.f32 %v2331, %v2394
        %v2396 = vrcp.pop %v2365
        %v2397 = vmul.f32 %v2333, %v2396
        %v2398 = vrcp.pop %v2367
        %v2399 = vmul.f32 %v2335, %v2398
        %v2400 = vrcp.pop %v2369
        %v2401 = vmul.f32 %v2337, %v2400
        %v2402 = vrcp.pop %v2371
        %v2403 = vmul.f32 %v2339, %v2402
        %2404 = vst [vmem:[%s462] sm:$0xff] %v2373
        %2405 = vst [vmem:[%s462 + $0x8] sm:$0xff] %v2375
        %2406 = vst [vmem:[%s462 + $0x10] sm:$0xff] %v2377
        %2407 = vst [vmem:[%s462 + $0x18] sm:$0xff] %v2379
        %2408 = vst [vmem:[%s462 + $0x20] sm:$0xff] %v2381
        %2409 = vst [vmem:[%s462 + $0x28] sm:$0xff] %v2383
        %2410 = vst [vmem:[%s462 + $0x30] sm:$0xff] %v2385
        %2411 = vst [vmem:[%s462 + $0x38] sm:$0xff] %v2387
        %2412 = vst [vmem:[%s462 + $0x40] sm:$0xff] %v2389
        %2413 = vst [vmem:[%s462 + $0x48] sm:$0xff] %v2391
        %2414 = vst [vmem:[%s462 + $0x50] sm:$0xff] %v2393
        %2415 = vst [vmem:[%s462 + $0x58] sm:$0xff] %v2395
        %2416 = vst [vmem:[%s462 + $0x60] sm:$0xff] %v2397
        %2417 = vst [vmem:[%s462 + $0x68] sm:$0xff] %v2399
        %2418 = vst [vmem:[%s462 + $0x70] sm:$0xff] %v2401
        %2419 = vst [vmem:[%s462 + $0x78] sm:$0xff] %v2403
      $region72: #{_forward_impl.1} parent=63 // pred_fallthru
        _
      %s2420 = smul.u32 16, %s26
      %p2421 = scmp.lt.s32.totalorder %s2420, 15
      %s2422 = scalar_select %p2421, %s2420, 15
      %s2423 = smul.addr %s2422, 8
      %s2424 = scalar_lea.vmem %s11, %s2423
      // Predicated region
      $region73: #{_forward_impl.1} parent=63 // pred_check
        %p2425 = pneg %p303
      $region74: #{_forward_impl.1} parent=63 // pred_check_branch
        %2427 = sbr.rel (%p2425) target = $region76
      $region75: #{_forward_impl.1} parent=63 // pred_region
        %s2428 = smul.u32 16, %s26
      $region76: #{_forward_impl.1} parent=63 // pred_fallthru
        _
      // Predicated region
      $region77: #{_forward_impl.1} parent=63 // pred_check
        %p2429 = pneg %p303
      $region78: #{_forward_impl.1} parent=63 // pred_check_branch
        %2431 = sbr.rel (%p2429) target = $region80
      $region79: #{_forward_impl.1} parent=63 // pred_region
        %s2432 = smul.u32 16, %s26
        %p2433 = scmp.lt.s32.totalorder %s2432, 15
        %s2434 = scalar_select %p2433, %s2432, 15
        %s2435 = smul.addr %s2434, 8
        %s2436 = scalar_lea.vmem %s11, %s2435
      $region80: #{_forward_impl.1} parent=63 // pred_fallthru
        _
    $region64: #{_forward_impl.1} parent=5 // pred_fallthru
      _
    %p2437 = scmp.le.s32.totalorder 2, %s17
    // Predicated region
    $region81: #{_forward_impl.1} parent=5 // pred_check
      %p2438 = pneg %p2437
    $region82: #{_forward_impl.1} parent=5 // pred_check_branch
      %2440 = sbr.rel (%p2438) target = $region84
    $region83: #{_forward_impl.1} parent=5 // pred_region
      %s2441 = ssub.s32 %s17, 2
    $region84: #{_forward_impl.1} parent=5 // pred_fallthru
      _
  $region6: #{_forward_impl.1} parent=0 // loop_footer
    %s21 = sadd.s32 1, %s17
  $region7: #{_forward_impl.1} parent=0 // loop_footer_branch
    %16 = sbr.rel target = $region3
  $region8: #{_forward_impl.1} parent=0 // loop_exit
    _

</llo_original>
